<compile_context>
chip_gen: v7x
topology: tpu7x:2x2x1
jax: 0.10.0
libtpu: 0.0.40
codegen_flags: <defaults>
</compile_context>

<pallas_src>
import jax
import jax.numpy as jnp
import numpy as np
from jax.experimental import pallas as pl
from jax.experimental.pallas import tpu as pltpu

# Static layer configuration (PyTorch: Conv2d(k, stride, pad) [+ BN + LeakyReLU]).
_LAYER_CFG = (
    # name      k  s  pad  has_bn
    ("layer_1", 5, 4, 3, True),
    ("layer_2", 4, 2, 1, True),
    ("layer_3", 3, 2, 0, False),
)
_BN_EPS = 1e-5
_LRELU_SLOPE = 0.2
_LANES = 128


def _round_up(x, m):
    return (x + m - 1) // m * m


# ----------------------------------------------------------------------------
# Pallas kernel
# ----------------------------------------------------------------------------
def _make_conv_kernel(*, NB, Mr, Gw, OW, kk, Cg, C_out,
                      apply_in_act, collect_stats, add_bias):
    """Fused [input BN+LeakyReLU] -> stride-1 kk x kk conv (one wide-K matmul)
       -> [bias] -> [per-step BN partial stats].

    Refs (per grid step = NB images):
      x_ref     : (NB, R, Cg)   bf16   row-flattened space-to-depth input
      scale_ref : (1, Cg)       f32    (only if apply_in_act)
      shift_ref : (1, Cg)       f32    (only if apply_in_act)
      w_ref     : (K, Cp)       bf16   K = kk*kk*Cg, Cp = 128-padded Cout
      b_ref     : (1, Cp)       f32    (only if add_bias)
      y_ref     : (NB, Mr, C_out)      raw conv output (Mr = OH*Gw rows,
                                        garbage columns w>=OW dropped outside)
      stat_ref  : (2, Cp)       f32    per-step [sum, sum of squares] partials
      patch_ref : (NB*Mr, K)    bf16   VMEM scratch (matmul-ready patches)
    """
    TM = NB * Mr

    def kernel(*refs):
        refs = list(refs)
        x_ref = refs.pop(0)
        scale_ref = refs.pop(0) if apply_in_act else None
        shift_ref = refs.pop(0) if apply_in_act else None
        w_ref = refs.pop(0)
        b_ref = refs.pop(0) if add_bias else None
        y_ref = refs.pop(0)
        stat_ref = refs.pop(0) if collect_stats else None
        patch_ref = refs.pop(0)
        assert not refs

        # Fused input-side BatchNorm affine + LeakyReLU (folded scale/shift of
        # the PREVIOUS layer), applied once to the whole VMEM tile.
        if apply_in_act:
            xf = x_ref[...].astype(jnp.float32)
            xf = xf * scale_ref[...] + shift_ref[...]
            xf = jnp.where(xf >= 0.0, xf, _LRELU_SLOPE * xf)
            x_src = xf.astype(jnp.bfloat16)

        # Patch gather: NB*kk*kk large contiguous 2-D slab copies into the
        # matmul-ready (TM, kk*kk*Cg) scratch.  No per-row copies, no reshapes.
        for b in range(NB):
            for gi in range(kk):
                for gj in range(kk):
                    idx = gi * kk + gj
                    start = gi * Gw + gj
                    if apply_in_act:
                        slab = x_src[b, start:start + Mr, :]
                    else:
                        slab = x_ref[b, pl.ds(start, Mr), :]
                    patch_ref[pl.ds(b * Mr, Mr), pl.ds(idx * Cg, Cg)] = slab

        # Single wide-K MXU matmul for the whole image-block row tile.
        acc = jnp.dot(patch_ref[...], w_ref[...],
                      preferred_element_type=jnp.float32)        # (TM, Cp) f32
        if add_bias:
            acc = acc + b_ref[...]

        # Per-image stores of the real output channels (lane slice only).
        for b in range(NB):
            y_ref[b, :, :] = acc[b * Mr:(b + 1) * Mr, :C_out].astype(y_ref.dtype)

        if collect_stats:
            # Per-grid-step BatchNorm partial sums (reduced in XLA outside).
            # Mask out the kk-1 garbage columns (w >= OW) of every output row.
            rid = jax.lax.broadcasted_iota(jnp.int32, (TM, 1), 0)
            valid = (rid % Gw) < OW
            a0 = jnp.where(valid, acc, 0.0)
            stat_ref[0:1, :] = jnp.sum(a0, axis=0, keepdims=True)
            stat_ref[1:2, :] = jnp.sum(a0 * a0, axis=0, keepdims=True)

    return kernel


# ----------------------------------------------------------------------------
# Cheap wrapper-side layout transforms (each ~1x read/write of the activation)
# ----------------------------------------------------------------------------
def _space_to_depth_input(x, k, s, pad, pad_value=None):
    """NHWC -> (N, R, s*s*C) row-flattened grid so a stride-s conv becomes a
    stride-1 kk x kk conv (kk = ceil(k/s)) over contiguous flat-row windows.

    If `pad_value` (per-channel) is given, spatial padding uses that value
    instead of zero (used to fuse the previous layer's BN+LeakyReLU into the
    consuming conv kernel: pad_value = -shift/scale maps to exactly 0 after the
    fused affine + LeakyReLU)."""
    N, H, W, C = x.shape
    OH = (H + 2 * pad - k) // s + 1
    OW = (W + 2 * pad - k) // s + 1
    kk = (k - 1) // s + 1
    Gh, Gw = OH + kk - 1, OW + kk - 1
    Ht, Wt = Gh * s, Gw * s
    pad_cfg = ((0, 0),
               (pad, max(Ht - H - pad, 0)),
               (pad, max(Wt - W - pad, 0)),
               (0, 0))
    needs_pad = (pad > 0) or (Ht > H) or (Wt > W)
    if (pad_value is None) or (not needs_pad):
        xp = jnp.pad(x, pad_cfg)
    else:
        pv = pad_value.reshape(1, 1, 1, C).astype(x.dtype)
        xp = jnp.pad(x - pv, pad_cfg) + pv
    xp = xp[:, :Ht, :Wt, :]
    xs = xp.reshape(N, Gh, s, Gw, s, C).transpose(0, 1, 3, 2, 4, 5)
    xs = xs.reshape(N, Gh * Gw, s * s * C)
    # The last kk*kk patch slab reads kk-1 rows past Gh*Gw (it only feeds the
    # discarded garbage columns) -> append zero rows so the read stays in range.
    R = _round_up(Gh * Gw + kk - 1, 8)
    xs = jnp.pad(xs, ((0, 0), (0, R - Gh * Gw), (0, 0)))
    return xs, OH, OW, kk, Gw


def _weight_to_s2d(w, s, kk, cp):
    """(k, k, Cin, Cout) -> (kk*kk*s*s*Cin, Cp) matching the patch K ordering."""
    k, _, cin, cout = w.shape
    wpad = jnp.pad(w, ((0, kk * s - k), (0, kk * s - k), (0, 0), (0, cp - cout)))
    wpad = wpad.reshape(kk, s, kk, s, cin, cp).transpose(0, 2, 1, 3, 4, 5)
    return wpad.reshape(kk * kk * s * s * cin, cp)


# ----------------------------------------------------------------------------
# pallas_call wrapper
# ----------------------------------------------------------------------------
def _conv_s2d_pallas(xs, ws, *, Gw, OH, OW, kk, C_out,
                     scale=None, shift=None, bias=None,
                     collect_stats=False, out_dtype=jnp.bfloat16,
                     target_rows=512):
    N, R, Cg = xs.shape
    K, Cp = ws.shape
    Mr = OH * Gw                      # matmul rows per image (incl. kk-1 garbage cols/row)
    # Flatten as many whole images as possible into one M row-tile (>= 1):
    # largest divisor of N with NB*Mr <= target_rows.
    NB = 1
    for d in range(1, N + 1):
        if N % d == 0 and d * Mr <= max(target_rows, Mr):
            NB = d
    G = N // NB
    TM = NB * Mr
    apply_in_act = scale is not None
    add_bias = bias is not None

    kernel = _make_conv_kernel(NB=NB, Mr=Mr, Gw=Gw, OW=OW, kk=kk, Cg=Cg,
                               C_out=C_out, apply_in_act=apply_in_act,
                               collect_stats=collect_stats, add_bias=add_bias)

    in_specs = [pl.BlockSpec((NB, R, Cg), lambda g: (g, 0, 0))]
    args = [xs]
    if apply_in_act:
        in_specs += [pl.BlockSpec((1, Cg), lambda g: (0, 0)),
                     pl.BlockSpec((1, Cg), lambda g: (0, 0))]
        args += [scale, shift]
    in_specs.append(pl.BlockSpec((K, Cp), lambda g: (0, 0)))
    args.append(ws)
    if add_bias:
        in_specs.append(pl.BlockSpec((1, Cp), lambda g: (0, 0)))
        args.append(bias)

    y_spec = pl.BlockSpec((NB, Mr, C_out), lambda g: (g, 0, 0))
    y_shape = jax.ShapeDtypeStruct((N, Mr, C_out), out_dtype)
    if collect_stats:
        out_specs = [y_spec, pl.BlockSpec((None, 2, Cp), lambda g: (g, 0, 0))]
        out_shape = [y_shape, jax.ShapeDtypeStruct((G, 2, Cp), jnp.float32)]
    else:
        out_specs = y_spec
        out_shape = y_shape

    # CostEstimate with real Cout (advisory only).
    flops = 2 * N * OH * OW * K * C_out
    bytes_accessed = int(
        xs.size * xs.dtype.itemsize
        + ws.size * ws.dtype.itemsize
        + N * Mr * C_out * jnp.dtype(out_dtype).itemsize
        + (G * 2 * Cp * 4 if collect_stats else 0))
    cost = pl.CostEstimate(flops=flops, transcendentals=0,
                           bytes_accessed=bytes_accessed)

    # Rough per-step VMEM footprint: double-buffered blocks + scratch + f32 acc.
    vmem_est = (2 * (NB * R * Cg * 2 + K * Cp * 2 + NB * Mr * C_out * 4
                     + 4 * Cp * 4 + 4 * Cg * 4)
                + TM * K * 2 + TM * Cp * 4 + (1 << 20))
    vmem_limit = int(min(max(vmem_est, 4 << 20), 32 << 20))

    return pl.pallas_call(
        kernel,
        grid=(G,),
        in_specs=in_specs,
        out_specs=out_specs,
        out_shape=out_shape,
        scratch_shapes=[pltpu.VMEM((TM, K), jnp.bfloat16)],
        compiler_params=pltpu.CompilerParams(
            dimension_semantics=("parallel",),   # stats are per-step partials
            vmem_limit_bytes=vmem_limit),
        cost_estimate=cost,
    )(*args)


# ----------------------------------------------------------------------------
# Parameter init (mirrors the PyTorch weight_init intent)
# ----------------------------------------------------------------------------
def init_encoder_params(key, num_in_channels=1, z_size=32, num_filters=16):
    channels = {
        "layer_1": (num_in_channels, num_filters),
        "layer_2": (num_filters, 2 * num_filters),
        "layer_3": (2 * num_filters, z_size),
    }
    params = {}
    for name, k, _s, _p, has_bn in _LAYER_CFG:
        cin, cout = channels[name]
        key, kw_, kb_, kg_ = jax.random.split(key, 4)
        fan_in, fan_out = cin * k * k, cout * k * k
        std = np.sqrt(2.0 / (fan_in + fan_out))          # xavier_normal, gain=1
        w = std * jax.random.normal(kw_, (k, k, cin, cout), dtype=jnp.float32)
        bound = 1.0 / np.sqrt(fan_in)                    # PyTorch conv-bias default
        b = jax.random.uniform(kb_, (1, cout), minval=-bound, maxval=bound,
                               dtype=jnp.float32)
        p = {"w": w, "b": b}
        if has_bn:
            p["gamma"] = 1.0 + 0.02 * jax.random.normal(kg_, (1, cout),
                                                        dtype=jnp.float32)
            p["beta"] = jnp.zeros((1, cout), dtype=jnp.float32)
        params[name] = p
    return params


# ----------------------------------------------------------------------------
# Forward pass (matches the PyTorch module's forward, training-mode BN)
# ----------------------------------------------------------------------------
@jax.jit
def encoder_forward(params, x_nchw):
    """x_nchw: (N, Cin, H, W) float32 -> z: (N, z_size, OH3, OW3) float32."""
    N = x_nchw.shape[0]
    # Cast to bf16 BEFORE any layout reshuffling.
    x = jnp.transpose(x_nchw.astype(jnp.bfloat16), (0, 2, 3, 1))   # NCHW -> NHWC
    in_scale = None      # pending (not-yet-applied) BN affine of the producing layer
    in_shift = None
    for name, k, s, pad, has_bn in _LAYER_CFG:
        p = params[name]
        w = p["w"]
        cout = w.shape[-1]
        cp = _round_up(cout, _LANES)

        if in_scale is None:
            pad_val = None
            scale_g = shift_g = None
        else:
            safe = jnp.where(jnp.abs(in_scale) < 1e-6, 1e-6, in_scale)
            pad_val = -in_shift / safe        # fused affine+LReLU maps it to 0
            scale_g = jnp.tile(in_scale, s * s)[None, :].astype(jnp.float32)
            shift_g = jnp.tile(in_shift, s * s)[None, :].astype(jnp.float32)

        xs, OH, OW, kk, Gw = _space_to_depth_input(x, k, s, pad, pad_value=pad_val)
        ws = _weight_to_s2d(w, s, kk, cp).astype(jnp.bfloat16)

        if has_bn:
            # Conv bias omitted: exactly cancelled by the BN mean subtraction.
            y, stats = _conv_s2d_pallas(
                xs, ws, Gw=Gw, OH=OH, OW=OW, kk=kk, C_out=cout,
                scale=scale_g, shift=shift_g, collect_stats=True,
                out_dtype=jnp.bfloat16)
            cnt = N * OH * OW
            ssum = jnp.sum(stats, axis=0)                 # reduce per-step partials
            mean = ssum[0, :cout] / cnt
            # var = E[y^2] - E[y]^2 in f32 (cancellation is benign at these
            # magnitudes; y is roughly zero-mean at init).
            var = jnp.maximum(ssum[1, :cout] / cnt - mean * mean, 0.0)
            in_scale = p["gamma"][0] * jax.lax.rsqrt(var + _BN_EPS)
            in_shift = p["beta"][0] - mean * in_scale
            # Raw (pre-BN) activation at real channel width; BN + LeakyReLU are
            # fused into the NEXT layer's kernel.
            x = y.reshape(N, OH, Gw, cout)[:, :, :OW, :]
        else:
            bias = jnp.pad(p["b"], ((0, 0), (0, cp - cout))).astype(jnp.float32)
            y = _conv_s2d_pallas(
                xs, ws, Gw=Gw, OH=OH, OW=OW, kk=kk, C_out=cout,
                scale=scale_g, shift=shift_g, bias=bias,
                collect_stats=False, out_dtype=jnp.float32)
            x = y.reshape(N, OH, Gw, cout)[:, :, :OW, :]
    return jnp.transpose(x, (0, 3, 1, 2)).astype(jnp.float32)   # NHWC -> NCHW


# ----------------------------------------------------------------------------
# Pure-JAX reference (lax.conv) for sanity checking
# ----------------------------------------------------------------------------
def encoder_reference(params, x_nchw):
    x = x_nchw
    for name, k, s, pad, has_bn in _LAYER_CFG:
        p = params[name]
        w = p["w"]                                   # (k, k, cin, cout)
        cout = w.shape[-1]
        w_oihw = jnp.transpose(w, (3, 2, 0, 1))
        # bf16 conv operands (f32 accumulation) to mirror the kernel's precision.
        y = jax.lax.conv_general_dilated(
            x.astype(jnp.bfloat16), w_oihw.astype(jnp.bfloat16),
            window_strides=(s, s), padding=((pad, pad), (pad, pad)),
            dimension_numbers=("NCHW", "OIHW", "NCHW"),
            preferred_element_type=jnp.float32,
        ) + p["b"].reshape(1, cout, 1, 1)
        if has_bn:
            mean = jnp.mean(y, axis=(0, 2, 3), keepdims=True)
            var = jnp.mean((y - mean) ** 2, axis=(0, 2, 3), keepdims=True)
            y = (y - mean) * jax.lax.rsqrt(var + _BN_EPS)
            y = y * p["gamma"].reshape(1, cout, 1, 1) + p["beta"].reshape(1, cout, 1, 1)
            y = jnp.where(y >= 0, y, _LRELU_SLOPE * y)
        x = y.astype(jnp.float32)
    return x


# ----------------------------------------------------------------------------
if __name__ == "__main__":
    key = jax.random.PRNGKey(0)
    k_param, k_x = jax.random.split(key)

    # Small deterministic config: batch=2, 1 input channel, 32x32 image,
    # num_filters=16, z_size=32 (32x32 is the smallest square input for which
    # layer_3's valid 3x3/stride-2 conv produces a non-empty output).
    num_in_channels, z_size, num_filters = 1, 32, 16
    params = init_encoder_params(k_param, num_in_channels=num_in_channels,
                                 z_size=z_size, num_filters=num_filters)
    x = jax.random.normal(k_x, (2, num_in_channels, 32, 32), dtype=jnp.float32)

    z = jax.block_until_ready(encoder_forward(params, x))
    z_ref = jax.block_until_ready(encoder_reference(params, x))

    assert z.shape == (2, z_size, 1, 1), z.shape
    # Tolerance reflects bf16 matmul operands / bf16 intermediate activations.
    assert np.allclose(np.asarray(z), np.asarray(z_ref), rtol=3e-2, atol=4e-2), (
        float(np.max(np.abs(np.asarray(z) - np.asarray(z_ref)))))

    print("KERNEL_OK")
</pallas_src>

<mosaic_0001>
module attributes {stable_mosaic.version = 11 : i64} {
  func.func @kernel(%arg0: i32, %arg1: memref<2x104x16xbf16, #tpu.memory_space<vmem>>, %arg2: memref<64x128xbf16, #tpu.memory_space<vmem>>, %arg3: memref<2x90x16xbf16, #tpu.memory_space<vmem>>, %arg4: memref<1x2x128xf32, #tpu.memory_space<vmem>>, %arg5: memref<180x64xbf16, #tpu.memory_space<vmem>>) attributes {dimension_semantics = [#tpu.dimension_semantics<parallel>], iteration_bounds = array<i64: 1>, scalar_prefetch = 0 : i64, scratch_operands = 1 : i64, tpu.core_type = #tpu.core_type<tc>, window_params = [{transform_indices = @transform_0, window_bounds = array<i64: 2, 104, 16>}, {pipeline_mode = #tpu.pipeline_mode<synchronous>, transform_indices = @transform_1, window_bounds = array<i64: 64, 128>}, {transform_indices = @transform_2, window_bounds = array<i64: 2, 90, 16>}, {transform_indices = @transform_3, window_bounds = array<i64: 1, 2, 128>}]} {
    %c0 = arith.constant 0 : index
    %c0_0 = arith.constant 0 : index
    %c0_1 = arith.constant 0 : index
    %0 = vector.load %arg1[%c0, %c0_0, %c0_1] : memref<2x104x16xbf16, #tpu.memory_space<vmem>>, vector<1x90x16xbf16>
    %1 = vector.shape_cast %0 : vector<1x90x16xbf16> to vector<90x16xbf16>
    %c0_2 = arith.constant 0 : index
    %c0_3 = arith.constant 0 : index
    %2 = vector.load %arg5[%c0_2, %c0_3] : memref<180x64xbf16, #tpu.memory_space<vmem>>, vector<90x16xbf16>
    tpu.vector_store %arg5[%c0_2, %c0_3], %1 {strides = array<i32>} : memref<180x64xbf16, #tpu.memory_space<vmem>>, vector<90x16xbf16>,
    %c0_4 = arith.constant 0 : index
    %c1 = arith.constant 1 : index
    %c0_5 = arith.constant 0 : index
    %3 = vector.load %arg1[%c0_4, %c1, %c0_5] : memref<2x104x16xbf16, #tpu.memory_space<vmem>>, vector<1x90x16xbf16>
    %4 = vector.shape_cast %3 : vector<1x90x16xbf16> to vector<90x16xbf16>
    %c0_6 = arith.constant 0 : index
    %c16 = arith.constant 16 : index
    %5 = vector.load %arg5[%c0_6, %c16] : memref<180x64xbf16, #tpu.memory_space<vmem>>, vector<90x16xbf16>
    tpu.vector_store %arg5[%c0_6, %c16], %4 {strides = array<i32>} : memref<180x64xbf16, #tpu.memory_space<vmem>>, vector<90x16xbf16>,
    %c0_7 = arith.constant 0 : index
    %c10 = arith.constant 10 : index
    %c0_8 = arith.constant 0 : index
    %6 = vector.load %arg1[%c0_7, %c10, %c0_8] : memref<2x104x16xbf16, #tpu.memory_space<vmem>>, vector<1x90x16xbf16>
    %7 = vector.shape_cast %6 : vector<1x90x16xbf16> to vector<90x16xbf16>
    %c0_9 = arith.constant 0 : index
    %c32 = arith.constant 32 : index
    %8 = vector.load %arg5[%c0_9, %c32] : memref<180x64xbf16, #tpu.memory_space<vmem>>, vector<90x16xbf16>
    tpu.vector_store %arg5[%c0_9, %c32], %7 {strides = array<i32>} : memref<180x64xbf16, #tpu.memory_space<vmem>>, vector<90x16xbf16>,
    %c0_10 = arith.constant 0 : index
    %c11 = arith.constant 11 : index
    %c0_11 = arith.constant 0 : index
    %9 = vector.load %arg1[%c0_10, %c11, %c0_11] : memref<2x104x16xbf16, #tpu.memory_space<vmem>>, vector<1x90x16xbf16>
    %10 = vector.shape_cast %9 : vector<1x90x16xbf16> to vector<90x16xbf16>
    %c0_12 = arith.constant 0 : index
    %c48 = arith.constant 48 : index
    %11 = vector.load %arg5[%c0_12, %c48] : memref<180x64xbf16, #tpu.memory_space<vmem>>, vector<90x16xbf16>
    tpu.vector_store %arg5[%c0_12, %c48], %10 {strides = array<i32>} : memref<180x64xbf16, #tpu.memory_space<vmem>>, vector<90x16xbf16>,
    %c1_13 = arith.constant 1 : index
    %c0_14 = arith.constant 0 : index
    %c0_15 = arith.constant 0 : index
    %12 = vector.load %arg1[%c1_13, %c0_14, %c0_15] : memref<2x104x16xbf16, #tpu.memory_space<vmem>>, vector<1x90x16xbf16>
    %13 = vector.shape_cast %12 : vector<1x90x16xbf16> to vector<90x16xbf16>
    %c90 = arith.constant 90 : index
    %c0_16 = arith.constant 0 : index
    %14 = vector.load %arg5[%c90, %c0_16] : memref<180x64xbf16, #tpu.memory_space<vmem>>, vector<90x16xbf16>
    tpu.vector_store %arg5[%c90, %c0_16], %13 {strides = array<i32>} : memref<180x64xbf16, #tpu.memory_space<vmem>>, vector<90x16xbf16>,
    %c1_17 = arith.constant 1 : index
    %c1_18 = arith.constant 1 : index
    %c0_19 = arith.constant 0 : index
    %15 = vector.load %arg1[%c1_17, %c1_18, %c0_19] : memref<2x104x16xbf16, #tpu.memory_space<vmem>>, vector<1x90x16xbf16>
    %16 = vector.shape_cast %15 : vector<1x90x16xbf16> to vector<90x16xbf16>
    %c90_20 = arith.constant 90 : index
    %c16_21 = arith.constant 16 : index
    %17 = vector.load %arg5[%c90_20, %c16_21] : memref<180x64xbf16, #tpu.memory_space<vmem>>, vector<90x16xbf16>
    tpu.vector_store %arg5[%c90_20, %c16_21], %16 {strides = array<i32>} : memref<180x64xbf16, #tpu.memory_space<vmem>>, vector<90x16xbf16>,
    %c1_22 = arith.constant 1 : index
    %c10_23 = arith.constant 10 : index
    %c0_24 = arith.constant 0 : index
    %18 = vector.load %arg1[%c1_22, %c10_23, %c0_24] : memref<2x104x16xbf16, #tpu.memory_space<vmem>>, vector<1x90x16xbf16>
    %19 = vector.shape_cast %18 : vector<1x90x16xbf16> to vector<90x16xbf16>
    %c90_25 = arith.constant 90 : index
    %c32_26 = arith.constant 32 : index
    %20 = vector.load %arg5[%c90_25, %c32_26] : memref<180x64xbf16, #tpu.memory_space<vmem>>, vector<90x16xbf16>
    tpu.vector_store %arg5[%c90_25, %c32_26], %19 {strides = array<i32>} : memref<180x64xbf16, #tpu.memory_space<vmem>>, vector<90x16xbf16>,
    %c1_27 = arith.constant 1 : index
    %c11_28 = arith.constant 11 : index
    %c0_29 = arith.constant 0 : index
    %21 = vector.load %arg1[%c1_27, %c11_28, %c0_29] : memref<2x104x16xbf16, #tpu.memory_space<vmem>>, vector<1x90x16xbf16>
    %22 = vector.shape_cast %21 : vector<1x90x16xbf16> to vector<90x16xbf16>
    %c90_30 = arith.constant 90 : index
    %c48_31 = arith.constant 48 : index
    %23 = vector.load %arg5[%c90_30, %c48_31] : memref<180x64xbf16, #tpu.memory_space<vmem>>, vector<90x16xbf16>
    tpu.vector_store %arg5[%c90_30, %c48_31], %22 {strides = array<i32>} : memref<180x64xbf16, #tpu.memory_space<vmem>>, vector<90x16xbf16>,
    %c0_32 = arith.constant 0 : index
    %c0_33 = arith.constant 0 : index
    %24 = vector.load %arg5[%c0_32, %c0_33] : memref<180x64xbf16, #tpu.memory_space<vmem>>, vector<180x64xbf16>
    %c0_34 = arith.constant 0 : index
    %c0_35 = arith.constant 0 : index
    %25 = vector.load %arg2[%c0_34, %c0_35] : memref<64x128xbf16, #tpu.memory_space<vmem>>, vector<64x128xbf16>
    %cst = arith.constant dense<0.000000e+00> : vector<180x128xf32>
    %26 = tpu.matmul %24, %25, %cst {dimension_numbers = #tpu.dot_dimension_numbers<[1], [0], [0], [1], [0, 0, 1, 1], [], []>} : vector<180x64xbf16>, vector<64x128xbf16>, vector<180x128xf32> -> vector<180x128xf32>
    %27 = vector.extract_strided_slice %26 {offsets = [0, 0], sizes = [90, 16], strides = [1, 1]} : vector<180x128xf32> to vector<90x16xf32>
    %28 = arith.truncf %27 : vector<90x16xf32> to vector<90x16xbf16>
    %c0_36 = arith.constant 0 : index
    %c0_37 = arith.constant 0 : index
    %c0_38 = arith.constant 0 : index
    %29 = vector.load %arg3[%c0_36, %c0_37, %c0_38] : memref<2x90x16xbf16, #tpu.memory_space<vmem>>, vector<1x90x16xbf16>
    %30 = vector.shape_cast %29 : vector<1x90x16xbf16> to vector<90x16xbf16>
    %31 = vector.shape_cast %28 : vector<90x16xbf16> to vector<1x90x16xbf16>
    tpu.vector_store %arg3[%c0_36, %c0_37, %c0_38], %31 {strides = array<i32>} : memref<2x90x16xbf16, #tpu.memory_space<vmem>>, vector<1x90x16xbf16>,
    %32 = vector.extract_strided_slice %26 {offsets = [90, 0], sizes = [90, 16], strides = [1, 1]} : vector<180x128xf32> to vector<90x16xf32>
    %33 = arith.truncf %32 : vector<90x16xf32> to vector<90x16xbf16>
    %c1_39 = arith.constant 1 : index
    %c0_40 = arith.constant 0 : index
    %c0_41 = arith.constant 0 : index
    %34 = vector.load %arg3[%c1_39, %c0_40, %c0_41] : memref<2x90x16xbf16, #tpu.memory_space<vmem>>, vector<1x90x16xbf16>
    %35 = vector.shape_cast %34 : vector<1x90x16xbf16> to vector<90x16xbf16>
    %36 = vector.shape_cast %33 : vector<90x16xbf16> to vector<1x90x16xbf16>
    tpu.vector_store %arg3[%c1_39, %c0_40, %c0_41], %36 {strides = array<i32>} : memref<2x90x16xbf16, #tpu.memory_space<vmem>>, vector<1x90x16xbf16>,
    %37 = tpu.iota {dimensions = array<i32: 0>} : vector<180x1xi32>
    %c10_i32 = arith.constant 10 : i32
    %c0_i32 = arith.constant 0 : i32
    %38 = arith.cmpi eq, %c10_i32, %c0_i32 : i32
    %c1_i32 = arith.constant 1 : i32
    %39 = arith.select %38, %c1_i32, %c10_i32 : i32
    %40 = vector.broadcast %39 : i32 to vector<180x1xi32>
    %41 = arith.remsi %37, %40 : vector<180x1xi32>
    %c0_i32_42 = arith.constant 0 : i32
    %42 = vector.broadcast %c0_i32_42 : i32 to vector<180x1xi32>
    %43 = arith.cmpi ne, %41, %42 : vector<180x1xi32>
    %c0_i32_43 = arith.constant 0 : i32
    %44 = vector.broadcast %c0_i32_43 : i32 to vector<180x1xi32>
    %45 = arith.cmpi slt, %41, %44 : vector<180x1xi32>
    %c0_i32_44 = arith.constant 0 : i32
    %46 = arith.cmpi slt, %39, %c0_i32_44 : i32
    %47 = vector.broadcast %46 : i1 to vector<180x1xi1>
    %48 = vector.broadcast %47 : vector<180x1xi1> to vector<180x1xi1>
    %49 = arith.xori %45, %48 : vector<180x1xi1>
    %50 = arith.andi %49, %43 : vector<180x1xi1>
    %51 = vector.broadcast %39 : i32 to vector<180x1xi32>
    %52 = arith.addi %41, %51 : vector<180x1xi32>
    %53 = arith.select %50, %52, %41 : vector<180x1xi1>, vector<180x1xi32>
    %c9_i32 = arith.constant 9 : i32
    %54 = vector.broadcast %c9_i32 : i32 to vector<180x1xi32>
    %55 = arith.cmpi slt, %53, %54 : vector<180x1xi32>
    %cst_45 = arith.constant 0.000000e+00 : f32
    %56 = vector.shape_cast %55 : vector<180x1xi1> to vector<180x1xi1>
    %57 = vector.broadcast %56 : vector<180x1xi1> to vector<180x128xi1>
    %58 = vector.broadcast %cst_45 : f32 to vector<180x128xf32>
    %59 = arith.select %57, %26, %58 : vector<180x128xi1>, vector<180x128xf32>
    %cst_46 = arith.constant dense<0.000000e+00> : vector<128xf32>
    %60 = vector.multi_reduction <add>, %59, %cst_46 [0] : vector<180x128xf32> to vector<128xf32>
    %61 = vector.shape_cast %60 : vector<128xf32> to vector<1x128xf32>
    %c0_47 = arith.constant 0 : index
    %c0_48 = arith.constant 0 : index
    %c0_49 = arith.constant 0 : index
    %62 = vector.load %arg4[%c0_47, %c0_48, %c0_49] : memref<1x2x128xf32, #tpu.memory_space<vmem>>, vector<1x1x128xf32>
    %63 = vector.shape_cast %62 : vector<1x1x128xf32> to vector<1x128xf32>
    %64 = vector.shape_cast %61 : vector<1x128xf32> to vector<1x1x128xf32>
    tpu.vector_store %arg4[%c0_47, %c0_48, %c0_49], %64 {strides = array<i32>} : memref<1x2x128xf32, #tpu.memory_space<vmem>>, vector<1x1x128xf32>,
    %65 = arith.mulf %59, %59 : vector<180x128xf32>
    %cst_50 = arith.constant dense<0.000000e+00> : vector<128xf32>
    %66 = vector.multi_reduction <add>, %65, %cst_50 [0] : vector<180x128xf32> to vector<128xf32>
    %67 = vector.shape_cast %66 : vector<128xf32> to vector<1x128xf32>
    %c0_51 = arith.constant 0 : index
    %c1_52 = arith.constant 1 : index
    %c0_53 = arith.constant 0 : index
    %68 = vector.load %arg4[%c0_51, %c1_52, %c0_53] : memref<1x2x128xf32, #tpu.memory_space<vmem>>, vector<1x1x128xf32>
    %69 = vector.shape_cast %68 : vector<1x1x128xf32> to vector<1x128xf32>
    %70 = vector.shape_cast %67 : vector<1x128xf32> to vector<1x1x128xf32>
    tpu.vector_store %arg4[%c0_51, %c1_52, %c0_53], %70 {strides = array<i32>} : memref<1x2x128xf32, #tpu.memory_space<vmem>>, vector<1x1x128xf32>,
    return
  }
  func.func @transform_0(%arg0: i32) -> (i32, i32, i32) {
    %c0_i32 = arith.constant 0 : i32
    %c0_i32_0 = arith.constant 0 : i32
    %c0_i32_1 = arith.constant 0 : i32
    return %arg0, %c0_i32, %c0_i32_0 : i32, i32, i32
  }
  func.func @transform_1(%arg0: i32) -> (i32, i32) {
    %c0_i32 = arith.constant 0 : i32
    %c0_i32_0 = arith.constant 0 : i32
    %c0_i32_1 = arith.constant 0 : i32
    return %c0_i32, %c0_i32_0 : i32, i32
  }
  func.func @transform_2(%arg0: i32) -> (i32, i32, i32) {
    %c0_i32 = arith.constant 0 : i32
    %c0_i32_0 = arith.constant 0 : i32
    %c0_i32_1 = arith.constant 0 : i32
    return %arg0, %c0_i32, %c0_i32_0 : i32, i32, i32
  }
  func.func @transform_3(%arg0: i32) -> (i32, i32, i32) {
    %c0_i32 = arith.constant 0 : i32
    %c0_i32_0 = arith.constant 0 : i32
    %c0_i32_1 = arith.constant 0 : i32
    return %arg0, %c0_i32, %c0_i32_0 : i32, i32, i32
  }
}

module attributes {stable_mosaic.version = 11 : i64} {
  func.func @kernel(%arg0: i32, %arg1: memref<2x32x64xbf16, #tpu.memory_space<vmem>>, %arg2: memref<1x64xf32, #tpu.memory_space<vmem>>, %arg3: memref<1x64xf32, #tpu.memory_space<vmem>>, %arg4: memref<256x128xbf16, #tpu.memory_space<vmem>>, %arg5: memref<2x20x32xbf16, #tpu.memory_space<vmem>>, %arg6: memref<1x2x128xf32, #tpu.memory_space<vmem>>, %arg7: memref<40x256xbf16, #tpu.memory_space<vmem>>) attributes {dimension_semantics = [#tpu.dimension_semantics<parallel>], iteration_bounds = array<i64: 1>, scalar_prefetch = 0 : i64, scratch_operands = 1 : i64, tpu.core_type = #tpu.core_type<tc>, window_params = [{transform_indices = @transform_0, window_bounds = array<i64: 2, 32, 64>}, {pipeline_mode = #tpu.pipeline_mode<synchronous>, transform_indices = @transform_1, window_bounds = array<i64: 1, 64>}, {pipeline_mode = #tpu.pipeline_mode<synchronous>, transform_indices = @transform_2, window_bounds = array<i64: 1, 64>}, {pipeline_mode = #tpu.pipeline_mode<synchronous>, transform_indices = @transform_3, window_bounds = array<i64: 256, 128>}, {transform_indices = @transform_4, window_bounds = array<i64: 2, 20, 32>}, {transform_indices = @transform_5, window_bounds = array<i64: 1, 2, 128>}]} {
    %c0 = arith.constant 0 : index
    %c0_0 = arith.constant 0 : index
    %c0_1 = arith.constant 0 : index
    %0 = vector.load %arg1[%c0, %c0_0, %c0_1] : memref<2x32x64xbf16, #tpu.memory_space<vmem>>, vector<2x32x64xbf16>
    %1 = arith.extf %0 : vector<2x32x64xbf16> to vector<2x32x64xf32>
    %c0_2 = arith.constant 0 : index
    %c0_3 = arith.constant 0 : index
    %2 = vector.load %arg2[%c0_2, %c0_3] : memref<1x64xf32, #tpu.memory_space<vmem>>, vector<1x64xf32>
    %3 = vector.shape_cast %2 : vector<1x64xf32> to vector<1x1x64xf32>
    %4 = vector.broadcast %3 : vector<1x1x64xf32> to vector<2x32x64xf32>
    %5 = arith.mulf %1, %4 : vector<2x32x64xf32>
    %c0_4 = arith.constant 0 : index
    %c0_5 = arith.constant 0 : index
    %6 = vector.load %arg3[%c0_4, %c0_5] : memref<1x64xf32, #tpu.memory_space<vmem>>, vector<1x64xf32>
    %7 = vector.shape_cast %6 : vector<1x64xf32> to vector<1x1x64xf32>
    %8 = vector.broadcast %7 : vector<1x1x64xf32> to vector<2x32x64xf32>
    %9 = arith.addf %5, %8 : vector<2x32x64xf32>
    %cst = arith.constant 0.000000e+00 : f32
    %10 = vector.broadcast %cst : f32 to vector<2x32x64xf32>
    %11 = arith.cmpf oge, %9, %10 : vector<2x32x64xf32>
    %cst_6 = arith.constant 2.000000e-01 : f32
    %12 = vector.broadcast %cst_6 : f32 to vector<2x32x64xf32>
    %13 = arith.mulf %12, %9 : vector<2x32x64xf32>
    %14 = arith.select %11, %9, %13 : vector<2x32x64xi1>, vector<2x32x64xf32>
    %15 = arith.truncf %14 : vector<2x32x64xf32> to vector<2x32x64xbf16>
    %16 = vector.extract_strided_slice %15 {offsets = [0, 0, 0], sizes = [1, 20, 64], strides = [1, 1, 1]} : vector<2x32x64xbf16> to vector<1x20x64xbf16>
    %17 = vector.shape_cast %16 : vector<1x20x64xbf16> to vector<20x64xbf16>
    %c0_7 = arith.constant 0 : index
    %c0_8 = arith.constant 0 : index
    %18 = vector.load %arg7[%c0_7, %c0_8] : memref<40x256xbf16, #tpu.memory_space<vmem>>, vector<20x64xbf16>
    tpu.vector_store %arg7[%c0_7, %c0_8], %17 {strides = array<i32>} : memref<40x256xbf16, #tpu.memory_space<vmem>>, vector<20x64xbf16>,
    %19 = vector.extract_strided_slice %15 {offsets = [0, 1, 0], sizes = [1, 20, 64], strides = [1, 1, 1]} : vector<2x32x64xbf16> to vector<1x20x64xbf16>
    %20 = vector.shape_cast %19 : vector<1x20x64xbf16> to vector<20x64xbf16>
    %c0_9 = arith.constant 0 : index
    %c64 = arith.constant 64 : index
    %21 = vector.load %arg7[%c0_9, %c64] : memref<40x256xbf16, #tpu.memory_space<vmem>>, vector<20x64xbf16>
    tpu.vector_store %arg7[%c0_9, %c64], %20 {strides = array<i32>} : memref<40x256xbf16, #tpu.memory_space<vmem>>, vector<20x64xbf16>,
    %22 = vector.extract_strided_slice %15 {offsets = [0, 5, 0], sizes = [1, 20, 64], strides = [1, 1, 1]} : vector<2x32x64xbf16> to vector<1x20x64xbf16>
    %23 = vector.shape_cast %22 : vector<1x20x64xbf16> to vector<20x64xbf16>
    %c0_10 = arith.constant 0 : index
    %c128 = arith.constant 128 : index
    %24 = vector.load %arg7[%c0_10, %c128] : memref<40x256xbf16, #tpu.memory_space<vmem>>, vector<20x64xbf16>
    tpu.vector_store %arg7[%c0_10, %c128], %23 {strides = array<i32>} : memref<40x256xbf16, #tpu.memory_space<vmem>>, vector<20x64xbf16>,
    %25 = vector.extract_strided_slice %15 {offsets = [0, 6, 0], sizes = [1, 20, 64], strides = [1, 1, 1]} : vector<2x32x64xbf16> to vector<1x20x64xbf16>
    %26 = vector.shape_cast %25 : vector<1x20x64xbf16> to vector<20x64xbf16>
    %c0_11 = arith.constant 0 : index
    %c192 = arith.constant 192 : index
    %27 = vector.load %arg7[%c0_11, %c192] : memref<40x256xbf16, #tpu.memory_space<vmem>>, vector<20x64xbf16>
    tpu.vector_store %arg7[%c0_11, %c192], %26 {strides = array<i32>} : memref<40x256xbf16, #tpu.memory_space<vmem>>, vector<20x64xbf16>,
    %28 = vector.extract_strided_slice %15 {offsets = [1, 0, 0], sizes = [1, 20, 64], strides = [1, 1, 1]} : vector<2x32x64xbf16> to vector<1x20x64xbf16>
    %29 = vector.shape_cast %28 : vector<1x20x64xbf16> to vector<20x64xbf16>
    %c20 = arith.constant 20 : index
    %c0_12 = arith.constant 0 : index
    %30 = vector.load %arg7[%c20, %c0_12] : memref<40x256xbf16, #tpu.memory_space<vmem>>, vector<20x64xbf16>
    tpu.vector_store %arg7[%c20, %c0_12], %29 {strides = array<i32>} : memref<40x256xbf16, #tpu.memory_space<vmem>>, vector<20x64xbf16>,
    %31 = vector.extract_strided_slice %15 {offsets = [1, 1, 0], sizes = [1, 20, 64], strides = [1, 1, 1]} : vector<2x32x64xbf16> to vector<1x20x64xbf16>
    %32 = vector.shape_cast %31 : vector<1x20x64xbf16> to vector<20x64xbf16>
    %c20_13 = arith.constant 20 : index
    %c64_14 = arith.constant 64 : index
    %33 = vector.load %arg7[%c20_13, %c64_14] : memref<40x256xbf16, #tpu.memory_space<vmem>>, vector<20x64xbf16>
    tpu.vector_store %arg7[%c20_13, %c64_14], %32 {strides = array<i32>} : memref<40x256xbf16, #tpu.memory_space<vmem>>, vector<20x64xbf16>,
    %34 = vector.extract_strided_slice %15 {offsets = [1, 5, 0], sizes = [1, 20, 64], strides = [1, 1, 1]} : vector<2x32x64xbf16> to vector<1x20x64xbf16>
    %35 = vector.shape_cast %34 : vector<1x20x64xbf16> to vector<20x64xbf16>
    %c20_15 = arith.constant 20 : index
    %c128_16 = arith.constant 128 : index
    %36 = vector.load %arg7[%c20_15, %c128_16] : memref<40x256xbf16, #tpu.memory_space<vmem>>, vector<20x64xbf16>
    tpu.vector_store %arg7[%c20_15, %c128_16], %35 {strides = array<i32>} : memref<40x256xbf16, #tpu.memory_space<vmem>>, vector<20x64xbf16>,
    %37 = vector.extract_strided_slice %15 {offsets = [1, 6, 0], sizes = [1, 20, 64], strides = [1, 1, 1]} : vector<2x32x64xbf16> to vector<1x20x64xbf16>
    %38 = vector.shape_cast %37 : vector<1x20x64xbf16> to vector<20x64xbf16>
    %c20_17 = arith.constant 20 : index
    %c192_18 = arith.constant 192 : index
    %39 = vector.load %arg7[%c20_17, %c192_18] : memref<40x256xbf16, #tpu.memory_space<vmem>>, vector<20x64xbf16>
    tpu.vector_store %arg7[%c20_17, %c192_18], %38 {strides = array<i32>} : memref<40x256xbf16, #tpu.memory_space<vmem>>, vector<20x64xbf16>,
    %c0_19 = arith.constant 0 : index
    %c0_20 = arith.constant 0 : index
    %40 = vector.load %arg7[%c0_19, %c0_20] : memref<40x256xbf16, #tpu.memory_space<vmem>>, vector<40x256xbf16>
    %c0_21 = arith.constant 0 : index
    %c0_22 = arith.constant 0 : index
    %41 = vector.load %arg4[%c0_21, %c0_22] : memref<256x128xbf16, #tpu.memory_space<vmem>>, vector<256x128xbf16>
    %cst_23 = arith.constant dense<0.000000e+00> : vector<40x128xf32>
    %42 = tpu.matmul %40, %41, %cst_23 {dimension_numbers = #tpu.dot_dimension_numbers<[1], [0], [0], [1], [0, 0, 1, 1], [], []>} : vector<40x256xbf16>, vector<256x128xbf16>, vector<40x128xf32> -> vector<40x128xf32>
    %43 = vector.extract_strided_slice %42 {offsets = [0, 0], sizes = [20, 32], strides = [1, 1]} : vector<40x128xf32> to vector<20x32xf32>
    %44 = arith.truncf %43 : vector<20x32xf32> to vector<20x32xbf16>
    %c0_24 = arith.constant 0 : index
    %c0_25 = arith.constant 0 : index
    %c0_26 = arith.constant 0 : index
    %45 = vector.load %arg5[%c0_24, %c0_25, %c0_26] : memref<2x20x32xbf16, #tpu.memory_space<vmem>>, vector<1x20x32xbf16>
    %46 = vector.shape_cast %45 : vector<1x20x32xbf16> to vector<20x32xbf16>
    %47 = vector.shape_cast %44 : vector<20x32xbf16> to vector<1x20x32xbf16>
    tpu.vector_store %arg5[%c0_24, %c0_25, %c0_26], %47 {strides = array<i32>} : memref<2x20x32xbf16, #tpu.memory_space<vmem>>, vector<1x20x32xbf16>,
    %48 = vector.extract_strided_slice %42 {offsets = [20, 0], sizes = [20, 32], strides = [1, 1]} : vector<40x128xf32> to vector<20x32xf32>
    %49 = arith.truncf %48 : vector<20x32xf32> to vector<20x32xbf16>
    %c1 = arith.constant 1 : index
    %c0_27 = arith.constant 0 : index
    %c0_28 = arith.constant 0 : index
    %50 = vector.load %arg5[%c1, %c0_27, %c0_28] : memref<2x20x32xbf16, #tpu.memory_space<vmem>>, vector<1x20x32xbf16>
    %51 = vector.shape_cast %50 : vector<1x20x32xbf16> to vector<20x32xbf16>
    %52 = vector.shape_cast %49 : vector<20x32xbf16> to vector<1x20x32xbf16>
    tpu.vector_store %arg5[%c1, %c0_27, %c0_28], %52 {strides = array<i32>} : memref<2x20x32xbf16, #tpu.memory_space<vmem>>, vector<1x20x32xbf16>,
    %53 = tpu.iota {dimensions = array<i32: 0>} : vector<40x1xi32>
    %c5_i32 = arith.constant 5 : i32
    %c0_i32 = arith.constant 0 : i32
    %54 = arith.cmpi eq, %c5_i32, %c0_i32 : i32
    %c1_i32 = arith.constant 1 : i32
    %55 = arith.select %54, %c1_i32, %c5_i32 : i32
    %56 = vector.broadcast %55 : i32 to vector<40x1xi32>
    %57 = arith.remsi %53, %56 : vector<40x1xi32>
    %c0_i32_29 = arith.constant 0 : i32
    %58 = vector.broadcast %c0_i32_29 : i32 to vector<40x1xi32>
    %59 = arith.cmpi ne, %57, %58 : vector<40x1xi32>
    %c0_i32_30 = arith.constant 0 : i32
    %60 = vector.broadcast %c0_i32_30 : i32 to vector<40x1xi32>
    %61 = arith.cmpi slt, %57, %60 : vector<40x1xi32>
    %c0_i32_31 = arith.constant 0 : i32
    %62 = arith.cmpi slt, %55, %c0_i32_31 : i32
    %63 = vector.broadcast %62 : i1 to vector<40x1xi1>
    %64 = vector.broadcast %63 : vector<40x1xi1> to vector<40x1xi1>
    %65 = arith.xori %61, %64 : vector<40x1xi1>
    %66 = arith.andi %65, %59 : vector<40x1xi1>
    %67 = vector.broadcast %55 : i32 to vector<40x1xi32>
    %68 = arith.addi %57, %67 : vector<40x1xi32>
    %69 = arith.select %66, %68, %57 : vector<40x1xi1>, vector<40x1xi32>
    %c4_i32 = arith.constant 4 : i32
    %70 = vector.broadcast %c4_i32 : i32 to vector<40x1xi32>
    %71 = arith.cmpi slt, %69, %70 : vector<40x1xi32>
    %cst_32 = arith.constant 0.000000e+00 : f32
    %72 = vector.shape_cast %71 : vector<40x1xi1> to vector<40x1xi1>
    %73 = vector.broadcast %72 : vector<40x1xi1> to vector<40x128xi1>
    %74 = vector.broadcast %cst_32 : f32 to vector<40x128xf32>
    %75 = arith.select %73, %42, %74 : vector<40x128xi1>, vector<40x128xf32>
    %cst_33 = arith.constant dense<0.000000e+00> : vector<128xf32>
    %76 = vector.multi_reduction <add>, %75, %cst_33 [0] : vector<40x128xf32> to vector<128xf32>
    %77 = vector.shape_cast %76 : vector<128xf32> to vector<1x128xf32>
    %c0_34 = arith.constant 0 : index
    %c0_35 = arith.constant 0 : index
    %c0_36 = arith.constant 0 : index
    %78 = vector.load %arg6[%c0_34, %c0_35, %c0_36] : memref<1x2x128xf32, #tpu.memory_space<vmem>>, vector<1x1x128xf32>
    %79 = vector.shape_cast %78 : vector<1x1x128xf32> to vector<1x128xf32>
    %80 = vector.shape_cast %77 : vector<1x128xf32> to vector<1x1x128xf32>
    tpu.vector_store %arg6[%c0_34, %c0_35, %c0_36], %80 {strides = array<i32>} : memref<1x2x128xf32, #tpu.memory_space<vmem>>, vector<1x1x128xf32>,
    %81 = arith.mulf %75, %75 : vector<40x128xf32>
    %cst_37 = arith.constant dense<0.000000e+00> : vector<128xf32>
    %82 = vector.multi_reduction <add>, %81, %cst_37 [0] : vector<40x128xf32> to vector<128xf32>
    %83 = vector.shape_cast %82 : vector<128xf32> to vector<1x128xf32>
    %c0_38 = arith.constant 0 : index
    %c1_39 = arith.constant 1 : index
    %c0_40 = arith.constant 0 : index
    %84 = vector.load %arg6[%c0_38, %c1_39, %c0_40] : memref<1x2x128xf32, #tpu.memory_space<vmem>>, vector<1x1x128xf32>
    %85 = vector.shape_cast %84 : vector<1x1x128xf32> to vector<1x128xf32>
    %86 = vector.shape_cast %83 : vector<1x128xf32> to vector<1x1x128xf32>
    tpu.vector_store %arg6[%c0_38, %c1_39, %c0_40], %86 {strides = array<i32>} : memref<1x2x128xf32, #tpu.memory_space<vmem>>, vector<1x1x128xf32>,
    return
  }
  func.func @transform_0(%arg0: i32) -> (i32, i32, i32) {
    %c0_i32 = arith.constant 0 : i32
    %c0_i32_0 = arith.constant 0 : i32
    %c0_i32_1 = arith.constant 0 : i32
    return %arg0, %c0_i32, %c0_i32_0 : i32, i32, i32
  }
  func.func @transform_1(%arg0: i32) -> (i32, i32) {
    %c0_i32 = arith.constant 0 : i32
    %c0_i32_0 = arith.constant 0 : i32
    %c0_i32_1 = arith.constant 0 : i32
    return %c0_i32, %c0_i32_0 : i32, i32
  }
  func.func @transform_2(%arg0: i32) -> (i32, i32) {
    %c0_i32 = arith.constant 0 : i32
    %c0_i32_0 = arith.constant 0 : i32
    %c0_i32_1 = arith.constant 0 : i32
    return %c0_i32, %c0_i32_0 : i32, i32
  }
  func.func @transform_3(%arg0: i32) -> (i32, i32) {
    %c0_i32 = arith.constant 0 : i32
    %c0_i32_0 = arith.constant 0 : i32
    %c0_i32_1 = arith.constant 0 : i32
    return %c0_i32, %c0_i32_0 : i32, i32
  }
  func.func @transform_4(%arg0: i32) -> (i32, i32, i32) {
    %c0_i32 = arith.constant 0 : i32
    %c0_i32_0 = arith.constant 0 : i32
    %c0_i32_1 = arith.constant 0 : i32
    return %arg0, %c0_i32, %c0_i32_0 : i32, i32, i32
  }
  func.func @transform_5(%arg0: i32) -> (i32, i32, i32) {
    %c0_i32 = arith.constant 0 : i32
    %c0_i32_0 = arith.constant 0 : i32
    %c0_i32_1 = arith.constant 0 : i32
    return %arg0, %c0_i32, %c0_i32_0 : i32, i32, i32
  }
}

module attributes {stable_mosaic.version = 11 : i64} {
  func.func @kernel(%arg0: i32, %arg1: memref<2x8x128xbf16, #tpu.memory_space<vmem>>, %arg2: memref<1x128xf32, #tpu.memory_space<vmem>>, %arg3: memref<1x128xf32, #tpu.memory_space<vmem>>, %arg4: memref<512x128xbf16, #tpu.memory_space<vmem>>, %arg5: memref<1x128xf32, #tpu.memory_space<vmem>>, %arg6: memref<2x2x32xf32, #tpu.memory_space<vmem>>, %arg7: memref<4x512xbf16, #tpu.memory_space<vmem>>) attributes {dimension_semantics = [#tpu.dimension_semantics<parallel>], iteration_bounds = array<i64: 1>, scalar_prefetch = 0 : i64, scratch_operands = 1 : i64, tpu.core_type = #tpu.core_type<tc>, window_params = [{transform_indices = @transform_0, window_bounds = array<i64: 2, 8, 128>}, {pipeline_mode = #tpu.pipeline_mode<synchronous>, transform_indices = @transform_1, window_bounds = array<i64: 1, 128>}, {pipeline_mode = #tpu.pipeline_mode<synchronous>, transform_indices = @transform_2, window_bounds = array<i64: 1, 128>}, {pipeline_mode = #tpu.pipeline_mode<synchronous>, transform_indices = @transform_3, window_bounds = array<i64: 512, 128>}, {pipeline_mode = #tpu.pipeline_mode<synchronous>, transform_indices = @transform_4, window_bounds = array<i64: 1, 128>}, {transform_indices = @transform_5, window_bounds = array<i64: 2, 2, 32>}]} {
    %c0 = arith.constant 0 : index
    %c0_0 = arith.constant 0 : index
    %c0_1 = arith.constant 0 : index
    %0 = vector.load %arg1[%c0, %c0_0, %c0_1] : memref<2x8x128xbf16, #tpu.memory_space<vmem>>, vector<2x8x128xbf16>
    %1 = arith.extf %0 : vector<2x8x128xbf16> to vector<2x8x128xf32>
    %c0_2 = arith.constant 0 : index
    %c0_3 = arith.constant 0 : index
    %2 = vector.load %arg2[%c0_2, %c0_3] : memref<1x128xf32, #tpu.memory_space<vmem>>, vector<1x128xf32>
    %3 = vector.shape_cast %2 : vector<1x128xf32> to vector<1x1x128xf32>
    %4 = vector.broadcast %3 : vector<1x1x128xf32> to vector<2x8x128xf32>
    %5 = arith.mulf %1, %4 : vector<2x8x128xf32>
    %c0_4 = arith.constant 0 : index
    %c0_5 = arith.constant 0 : index
    %6 = vector.load %arg3[%c0_4, %c0_5] : memref<1x128xf32, #tpu.memory_space<vmem>>, vector<1x128xf32>
    %7 = vector.shape_cast %6 : vector<1x128xf32> to vector<1x1x128xf32>
    %8 = vector.broadcast %7 : vector<1x1x128xf32> to vector<2x8x128xf32>
    %9 = arith.addf %5, %8 : vector<2x8x128xf32>
    %cst = arith.constant 0.000000e+00 : f32
    %10 = vector.broadcast %cst : f32 to vector<2x8x128xf32>
    %11 = arith.cmpf oge, %9, %10 : vector<2x8x128xf32>
    %cst_6 = arith.constant 2.000000e-01 : f32
    %12 = vector.broadcast %cst_6 : f32 to vector<2x8x128xf32>
    %13 = arith.mulf %12, %9 : vector<2x8x128xf32>
    %14 = arith.select %11, %9, %13 : vector<2x8x128xi1>, vector<2x8x128xf32>
    %15 = arith.truncf %14 : vector<2x8x128xf32> to vector<2x8x128xbf16>
    %16 = vector.extract_strided_slice %15 {offsets = [0, 0, 0], sizes = [1, 2, 128], strides = [1, 1, 1]} : vector<2x8x128xbf16> to vector<1x2x128xbf16>
    %17 = vector.shape_cast %16 : vector<1x2x128xbf16> to vector<2x128xbf16>
    %c0_7 = arith.constant 0 : index
    %c0_8 = arith.constant 0 : index
    %18 = vector.load %arg7[%c0_7, %c0_8] : memref<4x512xbf16, #tpu.memory_space<vmem>>, vector<2x128xbf16>
    tpu.vector_store %arg7[%c0_7, %c0_8], %17 {strides = array<i32>} : memref<4x512xbf16, #tpu.memory_space<vmem>>, vector<2x128xbf16>,
    %19 = vector.extract_strided_slice %15 {offsets = [0, 1, 0], sizes = [1, 2, 128], strides = [1, 1, 1]} : vector<2x8x128xbf16> to vector<1x2x128xbf16>
    %20 = vector.shape_cast %19 : vector<1x2x128xbf16> to vector<2x128xbf16>
    %c0_9 = arith.constant 0 : index
    %c128 = arith.constant 128 : index
    %21 = vector.load %arg7[%c0_9, %c128] : memref<4x512xbf16, #tpu.memory_space<vmem>>, vector<2x128xbf16>
    tpu.vector_store %arg7[%c0_9, %c128], %20 {strides = array<i32>} : memref<4x512xbf16, #tpu.memory_space<vmem>>, vector<2x128xbf16>,
    %22 = vector.extract_strided_slice %15 {offsets = [0, 2, 0], sizes = [1, 2, 128], strides = [1, 1, 1]} : vector<2x8x128xbf16> to vector<1x2x128xbf16>
    %23 = vector.shape_cast %22 : vector<1x2x128xbf16> to vector<2x128xbf16>
    %c0_10 = arith.constant 0 : index
    %c256 = arith.constant 256 : index
    %24 = vector.load %arg7[%c0_10, %c256] : memref<4x512xbf16, #tpu.memory_space<vmem>>, vector<2x128xbf16>
    tpu.vector_store %arg7[%c0_10, %c256], %23 {strides = array<i32>} : memref<4x512xbf16, #tpu.memory_space<vmem>>, vector<2x128xbf16>,
    %25 = vector.extract_strided_slice %15 {offsets = [0, 3, 0], sizes = [1, 2, 128], strides = [1, 1, 1]} : vector<2x8x128xbf16> to vector<1x2x128xbf16>
    %26 = vector.shape_cast %25 : vector<1x2x128xbf16> to vector<2x128xbf16>
    %c0_11 = arith.constant 0 : index
    %c384 = arith.constant 384 : index
    %27 = vector.load %arg7[%c0_11, %c384] : memref<4x512xbf16, #tpu.memory_space<vmem>>, vector<2x128xbf16>
    tpu.vector_store %arg7[%c0_11, %c384], %26 {strides = array<i32>} : memref<4x512xbf16, #tpu.memory_space<vmem>>, vector<2x128xbf16>,
    %28 = vector.extract_strided_slice %15 {offsets = [1, 0, 0], sizes = [1, 2, 128], strides = [1, 1, 1]} : vector<2x8x128xbf16> to vector<1x2x128xbf16>
    %29 = vector.shape_cast %28 : vector<1x2x128xbf16> to vector<2x128xbf16>
    %c2 = arith.constant 2 : index
    %c0_12 = arith.constant 0 : index
    %30 = vector.load %arg7[%c2, %c0_12] : memref<4x512xbf16, #tpu.memory_space<vmem>>, vector<2x128xbf16>
    tpu.vector_store %arg7[%c2, %c0_12], %29 {strides = array<i32>} : memref<4x512xbf16, #tpu.memory_space<vmem>>, vector<2x128xbf16>,
    %31 = vector.extract_strided_slice %15 {offsets = [1, 1, 0], sizes = [1, 2, 128], strides = [1, 1, 1]} : vector<2x8x128xbf16> to vector<1x2x128xbf16>
    %32 = vector.shape_cast %31 : vector<1x2x128xbf16> to vector<2x128xbf16>
    %c2_13 = arith.constant 2 : index
    %c128_14 = arith.constant 128 : index
    %33 = vector.load %arg7[%c2_13, %c128_14] : memref<4x512xbf16, #tpu.memory_space<vmem>>, vector<2x128xbf16>
    tpu.vector_store %arg7[%c2_13, %c128_14], %32 {strides = array<i32>} : memref<4x512xbf16, #tpu.memory_space<vmem>>, vector<2x128xbf16>,
    %34 = vector.extract_strided_slice %15 {offsets = [1, 2, 0], sizes = [1, 2, 128], strides = [1, 1, 1]} : vector<2x8x128xbf16> to vector<1x2x128xbf16>
    %35 = vector.shape_cast %34 : vector<1x2x128xbf16> to vector<2x128xbf16>
    %c2_15 = arith.constant 2 : index
    %c256_16 = arith.constant 256 : index
    %36 = vector.load %arg7[%c2_15, %c256_16] : memref<4x512xbf16, #tpu.memory_space<vmem>>, vector<2x128xbf16>
    tpu.vector_store %arg7[%c2_15, %c256_16], %35 {strides = array<i32>} : memref<4x512xbf16, #tpu.memory_space<vmem>>, vector<2x128xbf16>,
    %37 = vector.extract_strided_slice %15 {offsets = [1, 3, 0], sizes = [1, 2, 128], strides = [1, 1, 1]} : vector<2x8x128xbf16> to vector<1x2x128xbf16>
    %38 = vector.shape_cast %37 : vector<1x2x128xbf16> to vector<2x128xbf16>
    %c2_17 = arith.constant 2 : index
    %c384_18 = arith.constant 384 : index
    %39 = vector.load %arg7[%c2_17, %c384_18] : memref<4x512xbf16, #tpu.memory_space<vmem>>, vector<2x128xbf16>
    tpu.vector_store %arg7[%c2_17, %c384_18], %38 {strides = array<i32>} : memref<4x512xbf16, #tpu.memory_space<vmem>>, vector<2x128xbf16>,
    %c0_19 = arith.constant 0 : index
    %c0_20 = arith.constant 0 : index
    %40 = vector.load %arg7[%c0_19, %c0_20] : memref<4x512xbf16, #tpu.memory_space<vmem>>, vector<4x512xbf16>
    %c0_21 = arith.constant 0 : index
    %c0_22 = arith.constant 0 : index
    %41 = vector.load %arg4[%c0_21, %c0_22] : memref<512x128xbf16, #tpu.memory_space<vmem>>, vector<512x128xbf16>
    %cst_23 = arith.constant dense<0.000000e+00> : vector<4x128xf32>
    %42 = tpu.matmul %40, %41, %cst_23 {dimension_numbers = #tpu.dot_dimension_numbers<[1], [0], [0], [1], [0, 0, 1, 1], [], []>} : vector<4x512xbf16>, vector<512x128xbf16>, vector<4x128xf32> -> vector<4x128xf32>
    %c0_24 = arith.constant 0 : index
    %c0_25 = arith.constant 0 : index
    %43 = vector.load %arg5[%c0_24, %c0_25] : memref<1x128xf32, #tpu.memory_space<vmem>>, vector<1x128xf32>
    %44 = vector.broadcast %43 : vector<1x128xf32> to vector<4x128xf32>
    %45 = arith.addf %42, %44 : vector<4x128xf32>
    %46 = vector.extract_strided_slice %45 {offsets = [0, 0], sizes = [2, 32], strides = [1, 1]} : vector<4x128xf32> to vector<2x32xf32>
    %c0_26 = arith.constant 0 : index
    %c0_27 = arith.constant 0 : index
    %c0_28 = arith.constant 0 : index
    %47 = vector.load %arg6[%c0_26, %c0_27, %c0_28] : memref<2x2x32xf32, #tpu.memory_space<vmem>>, vector<1x2x32xf32>
    %48 = vector.shape_cast %47 : vector<1x2x32xf32> to vector<2x32xf32>
    %49 = vector.shape_cast %46 : vector<2x32xf32> to vector<1x2x32xf32>
    tpu.vector_store %arg6[%c0_26, %c0_27, %c0_28], %49 {strides = array<i32>} : memref<2x2x32xf32, #tpu.memory_space<vmem>>, vector<1x2x32xf32>,
    %50 = vector.extract_strided_slice %45 {offsets = [2, 0], sizes = [2, 32], strides = [1, 1]} : vector<4x128xf32> to vector<2x32xf32>
    %c1 = arith.constant 1 : index
    %c0_29 = arith.constant 0 : index
    %c0_30 = arith.constant 0 : index
    %51 = vector.load %arg6[%c1, %c0_29, %c0_30] : memref<2x2x32xf32, #tpu.memory_space<vmem>>, vector<1x2x32xf32>
    %52 = vector.shape_cast %51 : vector<1x2x32xf32> to vector<2x32xf32>
    %53 = vector.shape_cast %50 : vector<2x32xf32> to vector<1x2x32xf32>
    tpu.vector_store %arg6[%c1, %c0_29, %c0_30], %53 {strides = array<i32>} : memref<2x2x32xf32, #tpu.memory_space<vmem>>, vector<1x2x32xf32>,
    return
  }
  func.func @transform_0(%arg0: i32) -> (i32, i32, i32) {
    %c0_i32 = arith.constant 0 : i32
    %c0_i32_0 = arith.constant 0 : i32
    %c0_i32_1 = arith.constant 0 : i32
    return %arg0, %c0_i32, %c0_i32_0 : i32, i32, i32
  }
  func.func @transform_1(%arg0: i32) -> (i32, i32) {
    %c0_i32 = arith.constant 0 : i32
    %c0_i32_0 = arith.constant 0 : i32
    %c0_i32_1 = arith.constant 0 : i32
    return %c0_i32, %c0_i32_0 : i32, i32
  }
  func.func @transform_2(%arg0: i32) -> (i32, i32) {
    %c0_i32 = arith.constant 0 : i32
    %c0_i32_0 = arith.constant 0 : i32
    %c0_i32_1 = arith.constant 0 : i32
    return %c0_i32, %c0_i32_0 : i32, i32
  }
  func.func @transform_3(%arg0: i32) -> (i32, i32) {
    %c0_i32 = arith.constant 0 : i32
    %c0_i32_0 = arith.constant 0 : i32
    %c0_i32_1 = arith.constant 0 : i32
    return %c0_i32, %c0_i32_0 : i32, i32
  }
  func.func @transform_4(%arg0: i32) -> (i32, i32) {
    %c0_i32 = arith.constant 0 : i32
    %c0_i32_0 = arith.constant 0 : i32
    %c0_i32_1 = arith.constant 0 : i32
    return %c0_i32, %c0_i32_0 : i32, i32
  }
  func.func @transform_5(%arg0: i32) -> (i32, i32, i32) {
    %c0_i32 = arith.constant 0 : i32
    %c0_i32_0 = arith.constant 0 : i32
    %c0_i32_1 = arith.constant 0 : i32
    return %arg0, %c0_i32, %c0_i32_0 : i32, i32, i32
  }
}

</mosaic_0001>

<llo_original>
// kernel: tile.23
$region0: #{tile.23}
  #allocation0 [shape = 's32[1]{0}', space=sflag, size = 0x4, scoped, tag = 'scoped memory for tile.23']
  %s0 = inlined_call_operand.vmem [shape: f32[16], index: 0, kind: input, shape index: {}]
  %s1 = inlined_call_operand.vmem [shape: f32[4,16], index: 1, kind: output, shape index: {}]
  // Predicated region
  $region2: #{tile.23} parent=0 // pred_check
    _
  $region3: #{tile.23} parent=0 // pred_check_branch
    %3 = sbr.rel (0) target = $region5
  $region4: #{tile.23} parent=0 // pred_region
    _
  $region5: #{tile.23} parent=0 // pred_fallthru
    _
  %v4 = vld [vmem:[%s0] ss:$0 sm:$0xff]
  %5 = vst [vmem:[%s1] sm:$0xf] %v4

// kernel: tile.24
$region0: #{tile.24}
  %s0 = inlined_call_operand.vmem [shape: f32[4,16], index: 0, kind: input, shape index: {}]
  %s1 = inlined_call_operand.vmem [shape: f32[1,64], index: 1, kind: output, shape index: {}]
  $region1: #{tile.24} parent=0
    #allocation0 [shape = 'u8[4096]{0}', space=vmem, size = 0x1000, scoped, tag = 'scoped mem for output reshape']
    #allocation1 [shape = 'u8[4096]{0}', space=vmem, size = 0x1000, scoped, tag = 'scoped mem for input reshape']
    %s3 = sshllo.u32 0, 4
    %v4 = vld [vmem:[%s0] sm:%s3]
    %5 = vst [vmem:[#allocation1] sm:%s3] %v4
    %v6 = vld [vmem:[#allocation1] sm:$0x1]
    %vm7 = vcmask 130048
    %8 = vst.msk [vmem:[#allocation0] sm:$0x1] %vm7, %v6
    %s9 = scalar_lea.vmem [#allocation1], 3
    %v10 = vld [vmem:[%s9] sm:$0x1]
    %11 = vrot.lane.b32.xlu0 %v10, 48
    %v12 = vpop.permute.xlu0 %11
    %vm13 = vcmask 523648
    %14 = vst.msk [vmem:[#allocation0] sm:$0x1] %vm13, %v12
    %s15 = scalar_lea.vmem [#allocation1], 2
    %v16 = vld [vmem:[%s15] sm:$0x1]
    %17 = vrot.lane.b32.xlu0 %v16, 32
    %v18 = vpop.permute.xlu0 %17
    %vm19 = vcmask 392448
    %20 = vst.msk [vmem:[#allocation0] sm:$0x1] %vm19, %v18
    %s21 = scalar_lea.vmem [#allocation1], 1
    %v22 = vld [vmem:[%s21] sm:$0x1]
    %23 = vrot.lane.b32.xlu0 %v22, 16
    %v24 = vpop.permute.xlu0 %23
    %vm25 = vcmask 261248
    %26 = vst.msk [vmem:[#allocation0] sm:$0x1] %vm25, %v24
    %s28 = sshllo.u32 0, 1
    %v30 = vld [vmem:[#allocation0] sm:%s28]
    %s31 = sshllo.u32 0, 1
    %32 = vst [vmem:[%s1] sm:%s31] %v30

// kernel: tile.33
$region0: #{tile.33}
  #allocation0 [shape = 's32[1]{0}', space=sflag, size = 0x4, scoped, tag = 'scoped memory for tile.33']
  %s0 = inlined_call_operand.vmem [shape: f32[32], index: 0, kind: input, shape index: {}]
  %s1 = inlined_call_operand.vmem [shape: f32[4,32], index: 1, kind: output, shape index: {}]
  // Predicated region
  $region2: #{tile.33} parent=0 // pred_check
    _
  $region3: #{tile.33} parent=0 // pred_check_branch
    %3 = sbr.rel (0) target = $region5
  $region4: #{tile.33} parent=0 // pred_region
    _
  $region5: #{tile.33} parent=0 // pred_fallthru
    _
  %v4 = vld [vmem:[%s0] ss:$0 sm:$0xff]
  %5 = vst [vmem:[%s1] sm:$0xf] %v4

// kernel: tile.34
$region0: #{tile.34}
  %s0 = inlined_call_operand.vmem [shape: f32[4,32], index: 0, kind: input, shape index: {}]
  %s1 = inlined_call_operand.vmem [shape: f32[1,128], index: 1, kind: output, shape index: {}]
  $region1: #{tile.34} parent=0
    #allocation0 [shape = 'u8[4096]{0}', space=vmem, size = 0x1000, scoped, tag = 'scoped mem for output reshape']
    #allocation1 [shape = 'u8[4096]{0}', space=vmem, size = 0x1000, scoped, tag = 'scoped mem for input reshape']
    %s3 = sshllo.u32 0, 4
    %v4 = vld [vmem:[%s0] sm:%s3]
    %5 = vst [vmem:[#allocation1] sm:%s3] %v4
    %v6 = vld [vmem:[#allocation1] sm:$0x1]
    %vm7 = vcmask 261120
    %8 = vst.msk [vmem:[#allocation0] sm:$0x1] %vm7, %v6
    %s9 = scalar_lea.vmem [#allocation1], 3
    %v10 = vld [vmem:[%s9] sm:$0x1]
    %11 = vrot.lane.b32.xlu0 %v10, 96
    %v12 = vpop.permute.xlu0 %11
    %vm13 = vcmask 1048320
    %14 = vst.msk [vmem:[#allocation0] sm:$0x1] %vm13, %v12
    %s15 = scalar_lea.vmem [#allocation1], 2
    %v16 = vld [vmem:[%s15] sm:$0x1]
    %17 = vrot.lane.b32.xlu0 %v16, 64
    %v18 = vpop.permute.xlu0 %17
    %vm19 = vcmask 785920
    %20 = vst.msk [vmem:[#allocation0] sm:$0x1] %vm19, %v18
    %s21 = scalar_lea.vmem [#allocation1], 1
    %v22 = vld [vmem:[%s21] sm:$0x1]
    %23 = vrot.lane.b32.xlu0 %v22, 32
    %v24 = vpop.permute.xlu0 %23
    %vm25 = vcmask 523520
    %26 = vst.msk [vmem:[#allocation0] sm:$0x1] %vm25, %v24
    %s28 = sshllo.u32 0, 1
    %v30 = vld [vmem:[#allocation0] sm:%s28]
    %s31 = sshllo.u32 0, 1
    %32 = vst [vmem:[%s1] sm:%s31] %v30

// kernel: encoder_forward.4
$region0: #{encoder_forward.4}
  #allocation0 [shape = 'u32[]', space=smem, size = 0x4, offset = 0x4, fixed_abs, tag = 'smem constant byte address 0x4 - core index']
  #allocation1 [shape = 'u32[144,128]{1,0:T(1,128)}', space=vmem, size = 0x12000, scoped, tag = 'internal scratch']
  #allocation2 [shape = 'bf16[40,256]{1,0:T(8,128)(2,1)}', space=vmem, size = 0x5000, scoped, tag = 'scratch operand']
  %s0 = inlined_call_operand.vmem [shape: bf16[2,32,64], index: 0, kind: input, shape index: {}]
  %s1 = inlined_call_operand.vmem [shape: f32[1,64], index: 1, kind: input, shape index: {}]
  %s2 = inlined_call_operand.vmem [shape: f32[1,64], index: 2, kind: input, shape index: {}]
  %s3 = inlined_call_operand.vmem [shape: bf16[256,128], index: 3, kind: input, shape index: {}]
  %s4 = inlined_call_operand.vmem [shape: bf16[2,20,32], index: 4, kind: output, shape index: {0}]
  %s5 = inlined_call_operand.vmem [shape: f32[1,2,128], index: 5, kind: output, shape index: {1}]
  %6 = xla_tuple %s4, %s5
  %s7 = sld [smem:[#allocation0]]
  $region34: #{encoder_forward.4} parent=0
    _
  %s9 = ssub.s32 1, %s7
  %s10 = scalar_select 0, %s9, %s7
  // Predicated region
  $region2: #{encoder_forward.4} parent=0 // pred_check
    _
  $region3: #{encoder_forward.4} parent=0 // pred_check_branch
    %12 = sbr.rel (0) target = $region5
  $region4: #{encoder_forward.4} parent=0 // pred_region
    _
  $region5: #{encoder_forward.4} parent=0 // pred_fallthru
    _
  // Predicated region
  $region6: #{encoder_forward.4} parent=0 // pred_check
    _
  $region7: #{encoder_forward.4} parent=0 // pred_check_branch
    %14 = sbr.rel (0) target = $region9
  $region8: #{encoder_forward.4} parent=0 // pred_region
    _
  $region9: #{encoder_forward.4} parent=0 // pred_fallthru
    _
  // Predicated region
  $region10: #{encoder_forward.4} parent=0 // pred_check
    _
  $region11: #{encoder_forward.4} parent=0 // pred_check_branch
    %16 = sbr.rel (0) target = $region13
  $region12: #{encoder_forward.4} parent=0 // pred_region
    _
  $region13: #{encoder_forward.4} parent=0 // pred_fallthru
    _
  // Predicated region
  $region14: #{encoder_forward.4} parent=0 // pred_check
    _
  $region15: #{encoder_forward.4} parent=0 // pred_check_branch
    %18 = sbr.rel (0) target = $region17
  $region16: #{encoder_forward.4} parent=0 // pred_region
    _
  $region17: #{encoder_forward.4} parent=0 // pred_fallthru
    _
  %v20 = vld [vmem:[%s0] sm:$0xf]
  %v21 = vld [vmem:[%s0 + $0x4] sm:$0xf]
  %v22 = vld [vmem:[%s0 + $0x8] sm:$0xf]
  %v23 = vld [vmem:[%s0 + $0xc] sm:$0xf]
  %v24 = vld [vmem:[%s0 + $0x10] sm:$0xf]
  %v25 = vld [vmem:[%s0 + $0x14] sm:$0xf]
  %v26 = vld [vmem:[%s0 + $0x18] sm:$0xf]
  %v27 = vld [vmem:[%s0 + $0x1c] sm:$0xf]
  %v28 = vunpack.c.l.bf16 %v20
  %v29 = vunpack.c.l.bf16 %v21
  %v30 = vunpack.c.l.bf16 %v22
  %v31 = vunpack.c.l.bf16 %v23
  %v32 = vunpack.c.l.bf16 %v24
  %v33 = vunpack.c.l.bf16 %v25
  %v34 = vunpack.c.l.bf16 %v26
  %v35 = vunpack.c.l.bf16 %v27
  %v36 = vld [vmem:[%s1] sm:$0x1]
  %v38 = vlaneseq
  %v39 = vshrl.u32 %v38, 7
  %v40 = vsub.s32 0, %v39
  %v41 = vrot.slane %v36, %v40
  %v43 = vmul.f32 %v28, %v41
  %v44 = vmul.f32 %v29, %v41
  %v45 = vmul.f32 %v30, %v41
  %v46 = vmul.f32 %v31, %v41
  %v47 = vmul.f32 %v32, %v41
  %v48 = vmul.f32 %v33, %v41
  %v49 = vmul.f32 %v34, %v41
  %v50 = vmul.f32 %v35, %v41
  %v51 = vld [vmem:[%s2] sm:$0x1]
  %v53 = vlaneseq
  %v54 = vshrl.u32 %v53, 7
  %v55 = vsub.s32 0, %v54
  %v56 = vrot.slane %v51, %v55
  %v58 = vadd.f32 %v43, %v56
  %v59 = vadd.f32 %v44, %v56
  %v60 = vadd.f32 %v45, %v56
  %v61 = vadd.f32 %v46, %v56
  %v62 = vadd.f32 %v47, %v56
  %v63 = vadd.f32 %v48, %v56
  %v64 = vadd.f32 %v49, %v56
  %v65 = vadd.f32 %v50, %v56
  %vm66 = vcmp.ge.f32.partialorder %v58, 0.0
  %vm67 = vcmp.ge.f32.partialorder %v59, 0.0
  %vm68 = vcmp.ge.f32.partialorder %v60, 0.0
  %vm69 = vcmp.ge.f32.partialorder %v61, 0.0
  %vm70 = vcmp.ge.f32.partialorder %v62, 0.0
  %vm71 = vcmp.ge.f32.partialorder %v63, 0.0
  %vm72 = vcmp.ge.f32.partialorder %v64, 0.0
  %vm73 = vcmp.ge.f32.partialorder %v65, 0.0
  %v74 = vmul.f32 %v58, 0.2
  %v75 = vmul.f32 %v59, 0.2
  %v76 = vmul.f32 %v60, 0.2
  %v77 = vmul.f32 %v61, 0.2
  %v78 = vmul.f32 %v62, 0.2
  %v79 = vmul.f32 %v63, 0.2
  %v80 = vmul.f32 %v64, 0.2
  %v81 = vmul.f32 %v65, 0.2
  %v82 = vsel %vm66, %v58, %v74
  %v83 = vsel %vm67, %v59, %v75
  %v84 = vsel %vm68, %v60, %v76
  %v85 = vsel %vm69, %v61, %v77
  %v86 = vsel %vm70, %v62, %v78
  %v87 = vsel %vm71, %v63, %v79
  %v88 = vsel %vm72, %v64, %v80
  %v89 = vsel %vm73, %v65, %v81
  %v90 = vpack.c.bf16 %v83, %v82
  %v91 = vpack.c.bf16 %v85, %v84
  %v92 = vpack.c.bf16 %v87, %v86
  %v93 = vpack.c.bf16 %v89, %v88
  %v96 = vunpack.c.l.b16 %v90
  %v97 = vunpack.c.h.b16 %v90
  %v98 = vunpack.c.l.b16 %v91
  %v99 = vpack.c.b16 %v96, %v96
  %v100 = vpack.c.b16 %v97, %v97
  %v101 = vpack.c.b16 %v98, %v98
  %vm105 = vcmask 519168
  %106 = vst.msk [vmem:[#allocation2] sm:$0xf] %vm105, %v99
  %107 = vst.msk [vmem:[#allocation2 + $0x8] sm:$0xf] %vm105, %v100
  %vm108 = vcmask 517120
  %109 = vst.msk [vmem:[#allocation2 + $0x10] sm:$0x3] %vm108, %v101
  %vm110 = vsmask.f32 3328
  %vm111 = vsmask.f32 7440
  %vm112 = vmor %vm110, %vm111
  %v114 = vshrl.u32 %v99, 16
  %v116 = vrot.slane %v114, 4
  %v117 = vshll.u32 %v99, 16
  %v119 = vrot.slane %v117, 5
  %v120 = vor.u32 %v116, %v119
  %v121 = vrot.slane %v120, 4
  %v123 = vshll.u32 %v100, 16
  %v125 = vrot.slane %v123, 5
  %v126 = vsel %vm112, %v121, %v125
  %v127 = vshrl.u32 %v100, 16
  %v129 = vrot.slane %v127, 4
  %v130 = vor.u32 %v129, %v125
  %v131 = vrot.slane %v130, 4
  %v133 = vshll.u32 %v101, 16
  %v135 = vrot.slane %v133, 5
  %v136 = vsel %vm112, %v131, %v135
  %v137 = vshrl.u32 %v101, 16
  %v139 = vrot.slane %v137, 4
  %v140 = vor.u32 %v139, %v135
  %v141 = vrot.slane %v140, 4
  %142 = vrot.lane.b32.xlu0 %v126, 64
  %v143 = vpop.permute.xlu0 %142
  %144 = vrot.lane.b32.xlu0 %v136, 64
  %v145 = vpop.permute.xlu0 %144
  %146 = vrot.lane.b32.xlu0 %v141, 64
  %v147 = vpop.permute.xlu0 %146
  %vm151 = vcmask 1043968
  %152 = vst.msk [vmem:[#allocation2] sm:$0xf] %vm151, %v143
  %153 = vst.msk [vmem:[#allocation2 + $0x8] sm:$0xf] %vm151, %v145
  %vm154 = vcmask 1041920
  %155 = vst.msk [vmem:[#allocation2 + $0x10] sm:$0x3] %vm154, %v147
  %v156 = vunpack.c.h.b16 %v91
  %v157 = vpack.c.b16 %v156, %v156
  %vm158 = vsmask.f32 1280
  %vm159 = vsmask.f32 5392
  %vm160 = vmor %vm158, %vm159
  %v161 = vrot.slane %v114, 6
  %v162 = vrot.slane %v117, 7
  %v163 = vor.u32 %v161, %v162
  %v164 = vrot.slane %v163, 4
  %v165 = vrot.slane %v127, 6
  %v166 = vrot.slane %v123, 7
  %v167 = vor.u32 %v165, %v166
  %v168 = vsel %vm160, %v164, %v167
  %v169 = vrot.slane %v167, 4
  %v170 = vrot.slane %v137, 6
  %v171 = vrot.slane %v133, 7
  %v172 = vor.u32 %v170, %v171
  %v173 = vsel %vm160, %v169, %v172
  %v174 = vrot.slane %v172, 4
  %v176 = vshll.u32 %v157, 16
  %v178 = vrot.slane %v176, 7
  %v179 = vsel %vm160, %v174, %v178
  %183 = vst.msk [vmem:[#allocation2 + $0x4] sm:$0xf] %vm105, %v168
  %184 = vst.msk [vmem:[#allocation2 + $0xc] sm:$0xf] %vm105, %v173
  %185 = vst.msk [vmem:[#allocation2 + $0x14] sm:$0x3] %vm108, %v179
  %vm186 = vcmask 1040384
  %vm187 = vcmask 1044484
  %vm188 = vmor %vm186, %vm187
  %v189 = vrot.slane %v99, 7
  %v190 = vrot.slane %v189, 4
  %v191 = vrot.slane %v100, 7
  %v192 = vsel %vm188, %v190, %v191
  %v193 = vrot.slane %v191, 4
  %v194 = vrot.slane %v101, 7
  %v195 = vsel %vm188, %v193, %v194
  %v196 = vrot.slane %v194, 4
  %v197 = vrot.slane %v157, 7
  %v198 = vsel %vm188, %v196, %v197
  %199 = vrot.lane.b32.xlu0 %v192, 64
  %v200 = vpop.permute.xlu0 %199
  %201 = vrot.lane.b32.xlu0 %v195, 64
  %v202 = vpop.permute.xlu0 %201
  %203 = vrot.lane.b32.xlu0 %v198, 64
  %v204 = vpop.permute.xlu0 %203
  %208 = vst.msk [vmem:[#allocation2 + $0x4] sm:$0xf] %vm151, %v200
  %209 = vst.msk [vmem:[#allocation2 + $0xc] sm:$0xf] %vm151, %v202
  %210 = vst.msk [vmem:[#allocation2 + $0x14] sm:$0x3] %vm154, %v204
  %v213 = vunpack.c.l.b16 %v92
  %v214 = vunpack.c.h.b16 %v92
  %v215 = vunpack.c.l.b16 %v93
  %v216 = vpack.c.b16 %v213, %v213
  %v217 = vpack.c.b16 %v214, %v214
  %v218 = vpack.c.b16 %v215, %v215
  %vm219 = vcmask 1041408
  %vm220 = vcmask 1045508
  %vm221 = vmor %vm219, %vm220
  %v222 = vrot.slane %v216, 6
  %v223 = vrot.slane %v222, 4
  %v224 = vrot.slane %v217, 6
  %v225 = vsel %vm221, %v223, %v224
  %v226 = vrot.slane %v224, 4
  %v227 = vrot.slane %v218, 6
  %v228 = vsel %vm221, %v226, %v227
  %vm232 = vcmask 519170
  %233 = vst.msk [vmem:[#allocation2 + $0x10] sm:$0xc] %vm232, %v222
  %234 = vst.msk [vmem:[#allocation2 + $0x18] sm:$0xf] %vm105, %v225
  %235 = vst.msk [vmem:[#allocation2 + $0x20] sm:$0xf] %vm105, %v228
  %v237 = vshrl.u32 %v216, 16
  %v239 = vrot.slane %v237, 6
  %v240 = vshll.u32 %v216, 16
  %v242 = vrot.slane %v240, 7
  %v243 = vor.u32 %v239, %v242
  %v244 = vrot.slane %v243, 4
  %v246 = vshrl.u32 %v217, 16
  %v248 = vrot.slane %v246, 6
  %v249 = vshll.u32 %v217, 16
  %v251 = vrot.slane %v249, 7
  %v252 = vor.u32 %v248, %v251
  %v253 = vsel %vm160, %v244, %v252
  %v254 = vrot.slane %v252, 4
  %v256 = vshrl.u32 %v218, 16
  %v258 = vrot.slane %v256, 6
  %v259 = vshll.u32 %v218, 16
  %v261 = vrot.slane %v259, 7
  %v262 = vor.u32 %v258, %v261
  %v263 = vsel %vm160, %v254, %v262
  %264 = vrot.lane.b32.xlu0 %v243, 64
  %v265 = vpop.permute.xlu0 %264
  %266 = vrot.lane.b32.xlu0 %v253, 64
  %v267 = vpop.permute.xlu0 %266
  %268 = vrot.lane.b32.xlu0 %v263, 64
  %v269 = vpop.permute.xlu0 %268
  %vm273 = vcmask 1043970
  %274 = vst.msk [vmem:[#allocation2 + $0x10] sm:$0xc] %vm273, %v265
  %275 = vst.msk [vmem:[#allocation2 + $0x18] sm:$0xf] %vm151, %v267
  %276 = vst.msk [vmem:[#allocation2 + $0x20] sm:$0xf] %vm151, %v269
  %v277 = vunpack.c.h.b16 %v93
  %v278 = vpack.c.b16 %v277, %v277
  %v279 = vrot.slane %v237, 4
  %v280 = vrot.slane %v240, 5
  %v281 = vor.u32 %v279, %v280
  %v282 = vrot.slane %v281, 4
  %v283 = vrot.slane %v249, 5
  %v284 = vsel %vm112, %v282, %v283
  %v285 = vrot.slane %v246, 4
  %v286 = vor.u32 %v285, %v283
  %v287 = vrot.slane %v286, 4
  %v288 = vrot.slane %v259, 5
  %v289 = vsel %vm112, %v287, %v288
  %v290 = vrot.slane %v256, 4
  %v291 = vor.u32 %v290, %v288
  %v292 = vrot.slane %v291, 4
  %v294 = vshll.u32 %v278, 16
  %v296 = vrot.slane %v294, 5
  %v297 = vsel %vm112, %v292, %v296
  %301 = vst.msk [vmem:[#allocation2 + $0x14] sm:$0xc] %vm232, %v284
  %302 = vst.msk [vmem:[#allocation2 + $0x1c] sm:$0xf] %vm105, %v289
  %303 = vst.msk [vmem:[#allocation2 + $0x24] sm:$0xf] %vm105, %v297
  %vm304 = vcmask 1042432
  %vm305 = vcmask 1046532
  %vm306 = vmor %vm304, %vm305
  %v307 = vrot.slane %v216, 5
  %v308 = vrot.slane %v307, 4
  %v309 = vrot.slane %v217, 5
  %v310 = vsel %vm306, %v308, %v309
  %v311 = vrot.slane %v309, 4
  %v312 = vrot.slane %v218, 5
  %v313 = vsel %vm306, %v311, %v312
  %v314 = vrot.slane %v312, 4
  %v315 = vrot.slane %v278, 5
  %v316 = vsel %vm306, %v314, %v315
  %317 = vrot.lane.b32.xlu0 %v310, 64
  %v318 = vpop.permute.xlu0 %317
  %319 = vrot.lane.b32.xlu0 %v313, 64
  %v320 = vpop.permute.xlu0 %319
  %321 = vrot.lane.b32.xlu0 %v316, 64
  %v322 = vpop.permute.xlu0 %321
  %326 = vst.msk [vmem:[#allocation2 + $0x14] sm:$0xc] %vm273, %v318
  %327 = vst.msk [vmem:[#allocation2 + $0x1c] sm:$0xf] %vm151, %v320
  %328 = vst.msk [vmem:[#allocation2 + $0x24] sm:$0xf] %vm151, %v322
  %v329 = vld [vmem:[#allocation2] sm:$0xff]
  %v330 = vld [vmem:[#allocation2 + $0x8] sm:$0xff]
  %v331 = vld [vmem:[#allocation2 + $0x10] sm:$0xff]
  %v332 = vld [vmem:[#allocation2 + $0x18] sm:$0xff]
  %v333 = vld [vmem:[#allocation2 + $0x20] sm:$0xff]
  %v334 = vld [vmem:[%s3] sm:$0xf]
  %v335 = vld [vmem:[%s3 + $0x4] sm:$0xf]
  %v336 = vld [vmem:[%s3 + $0x8] sm:$0xf]
  %v337 = vld [vmem:[%s3 + $0xc] sm:$0xf]
  %v338 = vld [vmem:[%s3 + $0x10] sm:$0xf]
  %v339 = vld [vmem:[%s3 + $0x14] sm:$0xf]
  %v340 = vld [vmem:[%s3 + $0x18] sm:$0xf]
  %v341 = vld [vmem:[%s3 + $0x1c] sm:$0xf]
  %v342 = vld [vmem:[%s3 + $0x20] sm:$0xf]
  %v343 = vld [vmem:[%s3 + $0x24] sm:$0xf]
  %v344 = vld [vmem:[%s3 + $0x28] sm:$0xf]
  %v345 = vld [vmem:[%s3 + $0x2c] sm:$0xf]
  %v346 = vld [vmem:[%s3 + $0x30] sm:$0xf]
  %v347 = vld [vmem:[%s3 + $0x34] sm:$0xf]
  %v348 = vld [vmem:[%s3 + $0x38] sm:$0xf]
  %v349 = vld [vmem:[%s3 + $0x3c] sm:$0xf]
  %v350 = vld [vmem:[%s3 + $0x40] sm:$0xf]
  %v351 = vld [vmem:[%s3 + $0x44] sm:$0xf]
  %v352 = vld [vmem:[%s3 + $0x48] sm:$0xf]
  %v353 = vld [vmem:[%s3 + $0x4c] sm:$0xf]
  %v354 = vld [vmem:[%s3 + $0x50] sm:$0xf]
  %v355 = vld [vmem:[%s3 + $0x54] sm:$0xf]
  %v356 = vld [vmem:[%s3 + $0x58] sm:$0xf]
  %v357 = vld [vmem:[%s3 + $0x5c] sm:$0xf]
  %v358 = vld [vmem:[%s3 + $0x60] sm:$0xf]
  %v359 = vld [vmem:[%s3 + $0x64] sm:$0xf]
  %v360 = vld [vmem:[%s3 + $0x68] sm:$0xf]
  %v361 = vld [vmem:[%s3 + $0x6c] sm:$0xf]
  %v362 = vld [vmem:[%s3 + $0x70] sm:$0xf]
  %v363 = vld [vmem:[%s3 + $0x74] sm:$0xf]
  %v364 = vld [vmem:[%s3 + $0x78] sm:$0xf]
  %v365 = vld [vmem:[%s3 + $0x7c] sm:$0xf]
  %v371 = vunpack.c.l.b16 %v329
  %v372 = vunpack.c.h.b16 %v329
  %v373 = vunpack.c.l.b16 %v330
  %v374 = vunpack.c.h.b16 %v330
  %v375 = vunpack.c.l.b16 %v331
  %v376 = vunpack.c.h.b16 %v331
  %v377 = vunpack.c.l.b16 %v332
  %v378 = vunpack.c.h.b16 %v332
  %v379 = vunpack.c.l.b16 %v333
  %v380 = vunpack.c.h.b16 %v333
  %v381 = vpack.c.b16 %v373, %v371
  %v382 = vpack.c.b16 %v374, %v372
  %v383 = vpack.c.b16 %v377, %v375
  %v384 = vpack.c.b16 %v378, %v376
  %v385 = vpack.c.b16 %v379, %v379
  %v386 = vpack.c.b16 %v380, %v380
  %v425 = vunpack.c.l.b16 %v334
  %v426 = vunpack.c.l.b16 %v335
  %v427 = vunpack.c.l.b16 %v336
  %v428 = vunpack.c.l.b16 %v337
  %v429 = vunpack.c.l.b16 %v338
  %v430 = vunpack.c.l.b16 %v339
  %v431 = vunpack.c.l.b16 %v340
  %v432 = vunpack.c.l.b16 %v341
  %v433 = vunpack.c.l.b16 %v342
  %v434 = vunpack.c.l.b16 %v343
  %v435 = vunpack.c.l.b16 %v344
  %v436 = vunpack.c.l.b16 %v345
  %v437 = vunpack.c.l.b16 %v346
  %v438 = vunpack.c.l.b16 %v347
  %v439 = vunpack.c.l.b16 %v348
  %v440 = vunpack.c.l.b16 %v349
  %v441 = vunpack.c.l.b16 %v350
  %v442 = vunpack.c.l.b16 %v351
  %v443 = vunpack.c.l.b16 %v352
  %v444 = vunpack.c.l.b16 %v353
  %v445 = vunpack.c.l.b16 %v354
  %v446 = vunpack.c.l.b16 %v355
  %v447 = vunpack.c.l.b16 %v356
  %v448 = vunpack.c.l.b16 %v357
  %v449 = vunpack.c.l.b16 %v358
  %v450 = vunpack.c.l.b16 %v359
  %v451 = vunpack.c.l.b16 %v360
  %v452 = vunpack.c.l.b16 %v361
  %v453 = vunpack.c.l.b16 %v362
  %v454 = vunpack.c.l.b16 %v363
  %v455 = vunpack.c.l.b16 %v364
  %v456 = vunpack.c.l.b16 %v365
  %v457 = vpack.c.b16 %v426, %v425
  %v458 = vpack.c.b16 %v428, %v427
  %v459 = vpack.c.b16 %v430, %v429
  %v460 = vpack.c.b16 %v432, %v431
  %v461 = vpack.c.b16 %v434, %v433
  %v462 = vpack.c.b16 %v436, %v435
  %v463 = vpack.c.b16 %v438, %v437
  %v464 = vpack.c.b16 %v440, %v439
  %v465 = vpack.c.b16 %v442, %v441
  %v466 = vpack.c.b16 %v444, %v443
  %v467 = vpack.c.b16 %v446, %v445
  %v468 = vpack.c.b16 %v448, %v447
  %v469 = vpack.c.b16 %v450, %v449
  %v470 = vpack.c.b16 %v452, %v451
  %v471 = vpack.c.b16 %v454, %v453
  %v472 = vpack.c.b16 %v456, %v455
  %489 = vmatprep.subr.bf16.mxu0 0
  %490 = vmatpush1.bf16.msra.mxu0 %v457
  %491 = vmatprep.subr.bf16.mxu0 0
  %492 = vmatpush1.bf16.msra.mxu0 %v458
  %493 = vmatprep.subr.bf16.mxu0 0
  %494 = vmatpush1.bf16.msra.mxu0 %v459
  %495 = vmatprep.subr.bf16.mxu0 0
  %496 = vmatpush1.bf16.msra.mxu0 %v460
  %497 = vmatprep.subr.bf16.mxu0 0
  %498 = vmatpush1.bf16.msra.mxu0 %v461
  %499 = vmatprep.subr.bf16.mxu0 0
  %500 = vmatpush1.bf16.msra.mxu0 %v462
  %501 = vmatprep.subr.bf16.mxu0 0
  %502 = vmatpush1.bf16.msra.mxu0 %v463
  %503 = vmatprep.subr.bf16.mxu0 0
  %504 = vmatpush1.bf16.msra.mxu0 %v464
  %505 = vmatprep.subr.bf16.mxu0 0
  %506 = vmatpush1.bf16.msra.mxu0 %v465
  %507 = vmatprep.subr.bf16.mxu0 0
  %508 = vmatpush1.bf16.msra.mxu0 %v466
  %509 = vmatprep.subr.bf16.mxu0 0
  %510 = vmatpush1.bf16.msra.mxu0 %v467
  %511 = vmatprep.subr.bf16.mxu0 0
  %512 = vmatpush1.bf16.msra.mxu0 %v468
  %513 = vmatprep.subr.bf16.mxu0 0
  %514 = vmatpush1.bf16.msra.mxu0 %v469
  %515 = vmatprep.subr.bf16.mxu0 0
  %516 = vmatpush1.bf16.msra.mxu0 %v470
  %517 = vmatprep.subr.bf16.mxu0 0
  %518 = vmatpush1.bf16.msra.mxu0 %v471
  %519 = vmatprep.subr.bf16.mxu0 0
  %520 = vmatpush1.bf16.msra.mxu0 %v472
  %521 = vmatprep.mubr.bf16.mxu0 %v382
  %522 = vmatmul.mubr.bf16.gmra.mrb[0].mxu0 %v381
  %v523 = vpop.f32.mrb[0].mxu0
  %v524 = vadd.f32 0.0, %v523
  %v525 = vpop.f32.mrb[0].mxu0
  %v526 = vpop.f32.mrb[0].mxu0
  %v527 = vadd.f32 0.0, %v526
  %v528 = vpop.f32.mrb[0].mxu0
  %529 = vmatprep.mubr.bf16.mxu0 %v384
  %530 = vmatmul.mubr.bf16.gmra.mrb[0].mxu0 %v383
  %v531 = vpop.f32.mrb[0].mxu0
  %v532 = vadd.f32 0.0, %v531
  %v533 = vpop.f32.mrb[0].mxu0
  %v534 = vpop.f32.mrb[0].mxu0
  %v535 = vadd.f32 0.0, %v534
  %v536 = vpop.f32.mrb[0].mxu0
  %537 = vmatprep.mubr.bf16.mxu0 %v386
  %538 = vmatmul.mubr.bf16.gmra.mrb[0].mxu0 %v385
  %v539 = vpop.f32.mrb[0].mxu0
  %v540 = vadd.f32 0.0, %v539
  %v541 = vpop.f32.mrb[0].mxu0
  %v542 = vpop.f32.mrb[0].mxu0
  %v543 = vpop.f32.mrb[0].mxu0
  %544 = vdwg.mxu0
  %v545 = vpack.c.bf16 %v527, %v524
  %v546 = vpack.c.bf16 %v532, %v532
  %v549 = vunpack.c.l.b16 %v545
  %v550 = vunpack.c.h.b16 %v545
  %v551 = vunpack.c.l.b16 %v546
  %v552 = vpack.c.b16 %v549, %v549
  %v553 = vpack.c.b16 %v550, %v550
  %v554 = vpack.c.b16 %v551, %v551
  %vm558 = vcmask 257024
  %559 = vst.msk [vmem:[%s4] sm:$0xf] %vm558, %v552
  %560 = vst.msk [vmem:[%s4 + $0x4] sm:$0xf] %vm558, %v553
  %vm561 = vcmask 254976
  %562 = vst.msk [vmem:[%s4 + $0x8] sm:$0x3] %vm561, %v554
  %v563 = vpack.c.bf16 %v535, %v532
  %v564 = vpack.c.bf16 %v540, %v540
  %v567 = vunpack.c.l.b16 %v563
  %v568 = vunpack.c.h.b16 %v563
  %v569 = vunpack.c.l.b16 %v564
  %v570 = vpack.c.b16 %v567, %v567
  %v571 = vpack.c.b16 %v568, %v568
  %v572 = vpack.c.b16 %v569, %v569
  %v573 = vrot.slane %v570, 6
  %v574 = vrot.slane %v573, 4
  %v575 = vrot.slane %v571, 6
  %v576 = vsel %vm221, %v574, %v575
  %v577 = vrot.slane %v575, 4
  %v578 = vrot.slane %v572, 6
  %v579 = vsel %vm221, %v577, %v578
  %v580 = vrot.slane %v578, 4
  %s584 = scalar_lea.vmem %s4, 12
  %585 = vst.msk [vmem:[%s584] sm:$0xf] %vm558, %v576
  %586 = vst.msk [vmem:[%s584 + $0x4] sm:$0xf] %vm558, %v579
  %587 = vst.msk [vmem:[%s584 + $0x8] sm:$0x3] %vm561, %v580
  %v588 = vlaneseq
  %v589 = vshrl.u32 %v588, 7
  %v590 = vadd.s32 %v589, 8
  %v591 = vadd.s32 %v589, 16
  %v592 = vadd.s32 %v589, 24
  %v593 = vadd.s32 %v589, 32
  %vm594 = vcmp.lt.s32.totalorder %v589, 0
  %v595 = vsub.s32 0, %v589
  %v596 = vsel %vm594, %v595, %v589
  %v597 = vmul.u32.u64.compose %v596, 3435973837
  %v598 = vextract.low.u32 %v597
  %v599 = vextract.high.u32 %v597
  %v600 = vshrl.u32 %v599, 2
  %v601 = vmul.u32 %v600, 5
  %v602 = vsub.s32 %v596, %v601
  %v603 = vsub.s32 0, %v602
  %v604 = vsel %vm594, %v603, %v602
  %vm605 = vcmp.lt.s32.totalorder %v590, 0
  %v606 = vsub.s32 0, %v590
  %v607 = vsel %vm605, %v606, %v590
  %v608 = vmul.u32.u64.compose %v607, 3435973837
  %v609 = vextract.low.u32 %v608
  %v610 = vextract.high.u32 %v608
  %v611 = vshrl.u32 %v610, 2
  %v612 = vmul.u32 %v611, 5
  %v613 = vsub.s32 %v607, %v612
  %v614 = vsub.s32 0, %v613
  %v615 = vsel %vm605, %v614, %v613
  %vm616 = vcmp.lt.s32.totalorder %v591, 0
  %v617 = vsub.s32 0, %v591
  %v618 = vsel %vm616, %v617, %v591
  %v619 = vmul.u32.u64.compose %v618, 3435973837
  %v620 = vextract.low.u32 %v619
  %v621 = vextract.high.u32 %v619
  %v622 = vshrl.u32 %v621, 2
  %v623 = vmul.u32 %v622, 5
  %v624 = vsub.s32 %v618, %v623
  %v625 = vsub.s32 0, %v624
  %v626 = vsel %vm616, %v625, %v624
  %vm627 = vcmp.lt.s32.totalorder %v592, 0
  %v628 = vsub.s32 0, %v592
  %v629 = vsel %vm627, %v628, %v592
  %v630 = vmul.u32.u64.compose %v629, 3435973837
  %v631 = vextract.low.u32 %v630
  %v632 = vextract.high.u32 %v630
  %v633 = vshrl.u32 %v632, 2
  %v634 = vmul.u32 %v633, 5
  %v635 = vsub.s32 %v629, %v634
  %v636 = vsub.s32 0, %v635
  %v637 = vsel %vm627, %v636, %v635
  %vm638 = vcmp.lt.s32.totalorder %v593, 0
  %v639 = vsub.s32 0, %v593
  %v640 = vsel %vm638, %v639, %v593
  %v641 = vmul.u32.u64.compose %v640, 3435973837
  %v642 = vextract.low.u32 %v641
  %v643 = vextract.high.u32 %v641
  %v644 = vshrl.u32 %v643, 2
  %v645 = vmul.u32 %v644, 5
  %v646 = vsub.s32 %v640, %v645
  %v647 = vsub.s32 0, %v646
  %v648 = vsel %vm638, %v647, %v646
  %vm649 = vcmp.ne.s32.totalorder %v604, 0
  %vm650 = vcmp.ne.s32.totalorder %v615, 0
  %vm651 = vcmp.ne.s32.totalorder %v626, 0
  %vm652 = vcmp.ne.s32.totalorder %v637, 0
  %vm653 = vcmp.ne.s32.totalorder %v648, 0
  %vm654 = vcmp.lt.s32.totalorder %v604, 0
  %vm655 = vcmp.lt.s32.totalorder %v615, 0
  %vm656 = vcmp.lt.s32.totalorder %v626, 0
  %vm657 = vcmp.lt.s32.totalorder %v637, 0
  %vm658 = vcmp.lt.s32.totalorder %v648, 0
  %vm659 = vmand %vm654, %vm649
  %vm660 = vmand %vm655, %vm650
  %vm661 = vmand %vm656, %vm651
  %vm662 = vmand %vm657, %vm652
  %vm663 = vmand %vm658, %vm653
  %v664 = vadd.s32 %v604, 5
  %v665 = vadd.s32 %v615, 5
  %v666 = vadd.s32 %v626, 5
  %v667 = vadd.s32 %v637, 5
  %v668 = vadd.s32 %v648, 5
  %v669 = vsel %vm659, %v664, %v604
  %v670 = vsel %vm660, %v665, %v615
  %v671 = vsel %vm661, %v666, %v626
  %v672 = vsel %vm662, %v667, %v637
  %v673 = vsel %vm663, %v668, %v648
  %vm674 = vcmp.lt.s32.totalorder %v669, 4
  %vm675 = vcmp.lt.s32.totalorder %v670, 4
  %vm676 = vcmp.lt.s32.totalorder %v671, 4
  %vm677 = vcmp.lt.s32.totalorder %v672, 4
  %vm678 = vcmp.lt.s32.totalorder %v673, 4
  %v679 = vsel %vm674, 1, 0
  %v680 = vsel %vm675, 1, 0
  %v681 = vsel %vm676, 1, 0
  %v682 = vsel %vm677, 1, 0
  %v683 = vsel %vm678, 1, 0
  %vm684 = vcmp.eq.s32.totalorder %v679, 1
  %vm685 = vcmp.eq.s32.totalorder %v680, 1
  %vm686 = vcmp.eq.s32.totalorder %v681, 1
  %vm687 = vcmp.eq.s32.totalorder %v682, 1
  %vm688 = vcmp.eq.s32.totalorder %v683, 1
  %v689 = vsel %vm684, %v524, 0.0
  %v690 = vsel %vm685, %v527, 0.0
  %v691 = vsel %vm686, %v532, 0.0
  %v692 = vsel %vm687, %v535, 0.0
  %v693 = vsel %vm688, %v540, 0.0
  %v694 = vadd.f32 %v689, %v690
  %v695 = vadd.f32 %v694, %v691
  %v696 = vadd.f32 %v695, %v692
  %v697 = vadd.f32 %v696, %v693
  %v698 = vrot.slane %v697, 4
  %v699 = vadd.f32 %v697, %v698
  %v700 = vrot.slane %v699, 2
  %v701 = vadd.f32 %v699, %v700
  %v702 = vrot.slane %v701, 1
  %v703 = vadd.f32 %v701, %v702
  %704 = vst [vmem:[%s5] sm:$0x1] %v703
  %v705 = vmul.f32 %v689, %v689
  %v706 = vmul.f32 %v690, %v690
  %v707 = vmul.f32 %v691, %v691
  %v708 = vmul.f32 %v692, %v692
  %v709 = vmul.f32 %v693, %v693
  %v710 = vadd.f32 %v705, %v706
  %v711 = vadd.f32 %v710, %v707
  %v712 = vadd.f32 %v711, %v708
  %v713 = vadd.f32 %v712, %v709
  %v714 = vrot.slane %v713, 4
  %v715 = vadd.f32 %v713, %v714
  %v716 = vrot.slane %v715, 2
  %v717 = vadd.f32 %v715, %v716
  %v718 = vrot.slane %v717, 1
  %v719 = vadd.f32 %v717, %v718
  %720 = vst [vmem:[%s5 + $0x1] sm:$0x1] %v719
  // Predicated region
  $region18: #{encoder_forward.4} parent=0 // pred_check
    _
  $region19: #{encoder_forward.4} parent=0 // pred_check_branch
    %722 = sbr.rel (0) target = $region21
  $region20: #{encoder_forward.4} parent=0 // pred_region
    _
  $region21: #{encoder_forward.4} parent=0 // pred_fallthru
    _
  // Predicated region
  $region22: #{encoder_forward.4} parent=0 // pred_check
    _
  $region23: #{encoder_forward.4} parent=0 // pred_check_branch
    %724 = sbr.rel (0) target = $region25
  $region24: #{encoder_forward.4} parent=0 // pred_region
    _
  $region25: #{encoder_forward.4} parent=0 // pred_fallthru
    _
  // Predicated region
  $region26: #{encoder_forward.4} parent=0 // pred_check
    _
  $region27: #{encoder_forward.4} parent=0 // pred_check_branch
    %726 = sbr.rel (0) target = $region29
  $region28: #{encoder_forward.4} parent=0 // pred_region
    _
  $region29: #{encoder_forward.4} parent=0 // pred_fallthru
    _
  // Predicated region
  $region30: #{encoder_forward.4} parent=0 // pred_check
    _
  $region31: #{encoder_forward.4} parent=0 // pred_check_branch
    %728 = sbr.rel (0) target = $region33
  $region32: #{encoder_forward.4} parent=0 // pred_region
    _
  $region33: #{encoder_forward.4} parent=0 // pred_fallthru
    _

// kernel: encoder_forward.3
$region0: #{encoder_forward.3}
  #allocation0 [shape = 'u32[]', space=smem, size = 0x4, offset = 0x4, fixed_abs, tag = 'smem constant byte address 0x4 - core index']
  #allocation1 [shape = 'u32[144,128]{1,0:T(1,128)}', space=vmem, size = 0x12000, scoped, tag = 'internal scratch']
  #allocation2 [shape = 'bf16[180,64]{1,0:T(8,128)(2,1)}', space=vmem, size = 0xb800, scoped, tag = 'scratch operand']
  %s0 = inlined_call_operand.vmem [shape: bf16[2,104,16], index: 0, kind: input, shape index: {}]
  %s1 = inlined_call_operand.vmem [shape: bf16[64,128], index: 1, kind: input, shape index: {}]
  %s2 = inlined_call_operand.vmem [shape: bf16[2,90,16], index: 2, kind: output, shape index: {0}]
  %s3 = inlined_call_operand.vmem [shape: f32[1,2,128], index: 3, kind: output, shape index: {1}]
  %4 = xla_tuple %s2, %s3
  %s5 = sld [smem:[#allocation0]]
  $region26: #{encoder_forward.3} parent=0
    _
  %s7 = ssub.s32 1, %s5
  %s8 = scalar_select 0, %s7, %s5
  // Predicated region
  $region2: #{encoder_forward.3} parent=0 // pred_check
    _
  $region3: #{encoder_forward.3} parent=0 // pred_check_branch
    %10 = sbr.rel (0) target = $region5
  $region4: #{encoder_forward.3} parent=0 // pred_region
    _
  $region5: #{encoder_forward.3} parent=0 // pred_fallthru
    _
  // Predicated region
  $region6: #{encoder_forward.3} parent=0 // pred_check
    _
  $region7: #{encoder_forward.3} parent=0 // pred_check_branch
    %12 = sbr.rel (0) target = $region9
  $region8: #{encoder_forward.3} parent=0 // pred_region
    _
  $region9: #{encoder_forward.3} parent=0 // pred_fallthru
    _
  %v14 = vld [vmem:[%s0] sm:$0xf]
  %v15 = vld [vmem:[%s0 + $0x4] sm:$0xf]
  %v16 = vld [vmem:[%s0 + $0x8] sm:$0xf]
  %v17 = vld [vmem:[%s0 + $0xc] sm:$0xf]
  %v18 = vld [vmem:[%s0 + $0x10] sm:$0xf]
  %v19 = vld [vmem:[%s0 + $0x14] sm:$0xf]
  %v20 = vld [vmem:[%s0 + $0x18] sm:$0xf]
  %v21 = vld [vmem:[%s0 + $0x1c] sm:$0xf]
  %v22 = vld [vmem:[%s0 + $0x20] sm:$0xf]
  %v23 = vld [vmem:[%s0 + $0x24] sm:$0xf]
  %v24 = vld [vmem:[%s0 + $0x28] sm:$0xf]
  %v25 = vld [vmem:[%s0 + $0x2c] sm:$0x1]
  %vm26 = vcmask 125952
  %27 = vst.msk [vmem:[#allocation2] sm:$0xf] %vm26, %v14
  %28 = vst.msk [vmem:[#allocation2 + $0x4] sm:$0xf] %vm26, %v15
  %29 = vst.msk [vmem:[#allocation2 + $0x8] sm:$0xf] %vm26, %v16
  %30 = vst.msk [vmem:[#allocation2 + $0xc] sm:$0xf] %vm26, %v17
  %31 = vst.msk [vmem:[#allocation2 + $0x10] sm:$0xf] %vm26, %v18
  %32 = vst.msk [vmem:[#allocation2 + $0x14] sm:$0xf] %vm26, %v19
  %33 = vst.msk [vmem:[#allocation2 + $0x18] sm:$0xf] %vm26, %v20
  %34 = vst.msk [vmem:[#allocation2 + $0x1c] sm:$0xf] %vm26, %v21
  %35 = vst.msk [vmem:[#allocation2 + $0x20] sm:$0xf] %vm26, %v22
  %36 = vst.msk [vmem:[#allocation2 + $0x24] sm:$0xf] %vm26, %v23
  %37 = vst.msk [vmem:[#allocation2 + $0x28] sm:$0xf] %vm26, %v24
  %vm38 = vcmask 122880
  %39 = vst.msk [vmem:[#allocation2 + $0x2c] sm:$0x1] %vm38, %v25
  %v40 = vld [vmem:[%s0] sm:$0xf]
  %v41 = vld [vmem:[%s0 + $0x4] sm:$0xf]
  %v42 = vld [vmem:[%s0 + $0x8] sm:$0xf]
  %v43 = vld [vmem:[%s0 + $0xc] sm:$0xf]
  %v44 = vld [vmem:[%s0 + $0x10] sm:$0xf]
  %v45 = vld [vmem:[%s0 + $0x14] sm:$0xf]
  %v46 = vld [vmem:[%s0 + $0x18] sm:$0xf]
  %v47 = vld [vmem:[%s0 + $0x1c] sm:$0xf]
  %v48 = vld [vmem:[%s0 + $0x20] sm:$0xf]
  %v49 = vld [vmem:[%s0 + $0x24] sm:$0xf]
  %v50 = vld [vmem:[%s0 + $0x28] sm:$0xf]
  %v51 = vld [vmem:[%s0 + $0x2c] sm:$0x3]
  %vm52 = vsmask.f32 3328
  %vm53 = vsmask.f32 7440
  %vm54 = vmor %vm52, %vm53
  %v56 = vshrl.u32 %v40, 16
  %v58 = vrot.slane %v56, 4
  %v59 = vshll.u32 %v40, 16
  %v61 = vrot.slane %v59, 5
  %v62 = vor.u32 %v58, %v61
  %v63 = vrot.slane %v62, 4
  %v65 = vshll.u32 %v41, 16
  %v67 = vrot.slane %v65, 5
  %v68 = vsel %vm54, %v63, %v67
  %v69 = vshrl.u32 %v41, 16
  %v71 = vrot.slane %v69, 4
  %v72 = vor.u32 %v71, %v67
  %v73 = vrot.slane %v72, 4
  %v75 = vshll.u32 %v42, 16
  %v77 = vrot.slane %v75, 5
  %v78 = vsel %vm54, %v73, %v77
  %v79 = vshrl.u32 %v42, 16
  %v81 = vrot.slane %v79, 4
  %v82 = vor.u32 %v81, %v77
  %v83 = vrot.slane %v82, 4
  %v85 = vshll.u32 %v43, 16
  %v87 = vrot.slane %v85, 5
  %v88 = vsel %vm54, %v83, %v87
  %v89 = vshrl.u32 %v43, 16
  %v91 = vrot.slane %v89, 4
  %v92 = vor.u32 %v91, %v87
  %v93 = vrot.slane %v92, 4
  %v95 = vshll.u32 %v44, 16
  %v97 = vrot.slane %v95, 5
  %v98 = vsel %vm54, %v93, %v97
  %v99 = vshrl.u32 %v44, 16
  %v101 = vrot.slane %v99, 4
  %v102 = vor.u32 %v101, %v97
  %v103 = vrot.slane %v102, 4
  %v105 = vshll.u32 %v45, 16
  %v107 = vrot.slane %v105, 5
  %v108 = vsel %vm54, %v103, %v107
  %v109 = vshrl.u32 %v45, 16
  %v111 = vrot.slane %v109, 4
  %v112 = vor.u32 %v111, %v107
  %v113 = vrot.slane %v112, 4
  %v115 = vshll.u32 %v46, 16
  %v117 = vrot.slane %v115, 5
  %v118 = vsel %vm54, %v113, %v117
  %v119 = vshrl.u32 %v46, 16
  %v121 = vrot.slane %v119, 4
  %v122 = vor.u32 %v121, %v117
  %v123 = vrot.slane %v122, 4
  %v125 = vshll.u32 %v47, 16
  %v127 = vrot.slane %v125, 5
  %v128 = vsel %vm54, %v123, %v127
  %v129 = vshrl.u32 %v47, 16
  %v131 = vrot.slane %v129, 4
  %v132 = vor.u32 %v131, %v127
  %v133 = vrot.slane %v132, 4
  %v135 = vshll.u32 %v48, 16
  %v137 = vrot.slane %v135, 5
  %v138 = vsel %vm54, %v133, %v137
  %v139 = vshrl.u32 %v48, 16
  %v141 = vrot.slane %v139, 4
  %v142 = vor.u32 %v141, %v137
  %v143 = vrot.slane %v142, 4
  %v145 = vshll.u32 %v49, 16
  %v147 = vrot.slane %v145, 5
  %v148 = vsel %vm54, %v143, %v147
  %v149 = vshrl.u32 %v49, 16
  %v151 = vrot.slane %v149, 4
  %v152 = vor.u32 %v151, %v147
  %v153 = vrot.slane %v152, 4
  %v155 = vshll.u32 %v50, 16
  %v157 = vrot.slane %v155, 5
  %v158 = vsel %vm54, %v153, %v157
  %v159 = vshrl.u32 %v50, 16
  %v161 = vrot.slane %v159, 4
  %v162 = vor.u32 %v161, %v157
  %v163 = vrot.slane %v162, 4
  %v165 = vshll.u32 %v51, 16
  %v167 = vrot.slane %v165, 5
  %v168 = vsel %vm54, %v163, %v167
  %v169 = vshrl.u32 %v51, 16
  %v171 = vrot.slane %v169, 4
  %v172 = vor.u32 %v171, %v167
  %v173 = vrot.slane %v172, 4
  %174 = vrot.lane.b32.xlu0 %v68, 16
  %v175 = vpop.permute.xlu0 %174
  %176 = vrot.lane.b32.xlu0 %v78, 16
  %v177 = vpop.permute.xlu0 %176
  %178 = vrot.lane.b32.xlu0 %v88, 16
  %v179 = vpop.permute.xlu0 %178
  %180 = vrot.lane.b32.xlu0 %v98, 16
  %v181 = vpop.permute.xlu0 %180
  %182 = vrot.lane.b32.xlu0 %v108, 16
  %v183 = vpop.permute.xlu0 %182
  %184 = vrot.lane.b32.xlu0 %v118, 16
  %v185 = vpop.permute.xlu0 %184
  %186 = vrot.lane.b32.xlu0 %v128, 16
  %v187 = vpop.permute.xlu0 %186
  %188 = vrot.lane.b32.xlu0 %v138, 16
  %v189 = vpop.permute.xlu0 %188
  %190 = vrot.lane.b32.xlu0 %v148, 16
  %v191 = vpop.permute.xlu0 %190
  %192 = vrot.lane.b32.xlu0 %v158, 16
  %v193 = vpop.permute.xlu0 %192
  %194 = vrot.lane.b32.xlu0 %v168, 16
  %v195 = vpop.permute.xlu0 %194
  %196 = vrot.lane.b32.xlu0 %v173, 16
  %v197 = vpop.permute.xlu0 %196
  %vm210 = vcmask 257152
  %211 = vst.msk [vmem:[#allocation2] sm:$0xf] %vm210, %v175
  %212 = vst.msk [vmem:[#allocation2 + $0x4] sm:$0xf] %vm210, %v177
  %213 = vst.msk [vmem:[#allocation2 + $0x8] sm:$0xf] %vm210, %v179
  %214 = vst.msk [vmem:[#allocation2 + $0xc] sm:$0xf] %vm210, %v181
  %215 = vst.msk [vmem:[#allocation2 + $0x10] sm:$0xf] %vm210, %v183
  %216 = vst.msk [vmem:[#allocation2 + $0x14] sm:$0xf] %vm210, %v185
  %217 = vst.msk [vmem:[#allocation2 + $0x18] sm:$0xf] %vm210, %v187
  %218 = vst.msk [vmem:[#allocation2 + $0x1c] sm:$0xf] %vm210, %v189
  %219 = vst.msk [vmem:[#allocation2 + $0x20] sm:$0xf] %vm210, %v191
  %220 = vst.msk [vmem:[#allocation2 + $0x24] sm:$0xf] %vm210, %v193
  %221 = vst.msk [vmem:[#allocation2 + $0x28] sm:$0xf] %vm210, %v195
  %vm222 = vcmask 254080
  %223 = vst.msk [vmem:[#allocation2 + $0x2c] sm:$0x1] %vm222, %v197
  %v224 = vld [vmem:[%s0 + $0x4] sm:$0xe]
  %v225 = vld [vmem:[%s0 + $0x8] sm:$0xf]
  %v226 = vld [vmem:[%s0 + $0xc] sm:$0xf]
  %v227 = vld [vmem:[%s0 + $0x10] sm:$0xf]
  %v228 = vld [vmem:[%s0 + $0x14] sm:$0xf]
  %v229 = vld [vmem:[%s0 + $0x18] sm:$0xf]
  %v230 = vld [vmem:[%s0 + $0x1c] sm:$0xf]
  %v231 = vld [vmem:[%s0 + $0x20] sm:$0xf]
  %v232 = vld [vmem:[%s0 + $0x24] sm:$0xf]
  %v233 = vld [vmem:[%s0 + $0x28] sm:$0xf]
  %v234 = vld [vmem:[%s0 + $0x2c] sm:$0xf]
  %v235 = vld [vmem:[%s0 + $0x30] sm:$0x3]
  %vm248 = vcmask 1042432
  %vm249 = vcmask 1046532
  %vm250 = vmor %vm248, %vm249
  %v251 = vrot.slane %v224, 5
  %v252 = vrot.slane %v251, 4
  %v253 = vrot.slane %v225, 5
  %v254 = vsel %vm250, %v252, %v253
  %v255 = vrot.slane %v253, 4
  %v256 = vrot.slane %v226, 5
  %v257 = vsel %vm250, %v255, %v256
  %v258 = vrot.slane %v256, 4
  %v259 = vrot.slane %v227, 5
  %v260 = vsel %vm250, %v258, %v259
  %v261 = vrot.slane %v259, 4
  %v262 = vrot.slane %v228, 5
  %v263 = vsel %vm250, %v261, %v262
  %v264 = vrot.slane %v262, 4
  %v265 = vrot.slane %v229, 5
  %v266 = vsel %vm250, %v264, %v265
  %v267 = vrot.slane %v265, 4
  %v268 = vrot.slane %v230, 5
  %v269 = vsel %vm250, %v267, %v268
  %v270 = vrot.slane %v268, 4
  %v271 = vrot.slane %v231, 5
  %v272 = vsel %vm250, %v270, %v271
  %v273 = vrot.slane %v271, 4
  %v274 = vrot.slane %v232, 5
  %v275 = vsel %vm250, %v273, %v274
  %v276 = vrot.slane %v274, 4
  %v277 = vrot.slane %v233, 5
  %v278 = vsel %vm250, %v276, %v277
  %v279 = vrot.slane %v277, 4
  %v280 = vrot.slane %v234, 5
  %v281 = vsel %vm250, %v279, %v280
  %v282 = vrot.slane %v280, 4
  %v283 = vrot.slane %v235, 5
  %v284 = vsel %vm250, %v282, %v283
  %v285 = vrot.slane %v283, 4
  %286 = vrot.lane.b32.xlu0 %v254, 32
  %v287 = vpop.permute.xlu0 %286
  %288 = vrot.lane.b32.xlu0 %v257, 32
  %v289 = vpop.permute.xlu0 %288
  %290 = vrot.lane.b32.xlu0 %v260, 32
  %v291 = vpop.permute.xlu0 %290
  %292 = vrot.lane.b32.xlu0 %v263, 32
  %v293 = vpop.permute.xlu0 %292
  %294 = vrot.lane.b32.xlu0 %v266, 32
  %v295 = vpop.permute.xlu0 %294
  %296 = vrot.lane.b32.xlu0 %v269, 32
  %v297 = vpop.permute.xlu0 %296
  %298 = vrot.lane.b32.xlu0 %v272, 32
  %v299 = vpop.permute.xlu0 %298
  %300 = vrot.lane.b32.xlu0 %v275, 32
  %v301 = vpop.permute.xlu0 %300
  %302 = vrot.lane.b32.xlu0 %v278, 32
  %v303 = vpop.permute.xlu0 %302
  %304 = vrot.lane.b32.xlu0 %v281, 32
  %v305 = vpop.permute.xlu0 %304
  %306 = vrot.lane.b32.xlu0 %v284, 32
  %v307 = vpop.permute.xlu0 %306
  %308 = vrot.lane.b32.xlu0 %v285, 32
  %v309 = vpop.permute.xlu0 %308
  %vm322 = vcmask 388352
  %323 = vst.msk [vmem:[#allocation2] sm:$0xf] %vm322, %v287
  %324 = vst.msk [vmem:[#allocation2 + $0x4] sm:$0xf] %vm322, %v289
  %325 = vst.msk [vmem:[#allocation2 + $0x8] sm:$0xf] %vm322, %v291
  %326 = vst.msk [vmem:[#allocation2 + $0xc] sm:$0xf] %vm322, %v293
  %327 = vst.msk [vmem:[#allocation2 + $0x10] sm:$0xf] %vm322, %v295
  %328 = vst.msk [vmem:[#allocation2 + $0x14] sm:$0xf] %vm322, %v297
  %329 = vst.msk [vmem:[#allocation2 + $0x18] sm:$0xf] %vm322, %v299
  %330 = vst.msk [vmem:[#allocation2 + $0x1c] sm:$0xf] %vm322, %v301
  %331 = vst.msk [vmem:[#allocation2 + $0x20] sm:$0xf] %vm322, %v303
  %332 = vst.msk [vmem:[#allocation2 + $0x24] sm:$0xf] %vm322, %v305
  %333 = vst.msk [vmem:[#allocation2 + $0x28] sm:$0xf] %vm322, %v307
  %vm334 = vcmask 385280
  %335 = vst.msk [vmem:[#allocation2 + $0x2c] sm:$0x1] %vm334, %v309
  %v336 = vld [vmem:[%s0 + $0x4] sm:$0xe]
  %v337 = vld [vmem:[%s0 + $0x8] sm:$0xf]
  %v338 = vld [vmem:[%s0 + $0xc] sm:$0xf]
  %v339 = vld [vmem:[%s0 + $0x10] sm:$0xf]
  %v340 = vld [vmem:[%s0 + $0x14] sm:$0xf]
  %v341 = vld [vmem:[%s0 + $0x18] sm:$0xf]
  %v342 = vld [vmem:[%s0 + $0x1c] sm:$0xf]
  %v343 = vld [vmem:[%s0 + $0x20] sm:$0xf]
  %v344 = vld [vmem:[%s0 + $0x24] sm:$0xf]
  %v345 = vld [vmem:[%s0 + $0x28] sm:$0xf]
  %v346 = vld [vmem:[%s0 + $0x2c] sm:$0xf]
  %v347 = vld [vmem:[%s0 + $0x30] sm:$0x7]
  %vm348 = vsmask.f32 2304
  %vm349 = vsmask.f32 6416
  %vm350 = vmor %vm348, %vm349
  %v352 = vshrl.u32 %v336, 16
  %v354 = vrot.slane %v352, 5
  %v355 = vshll.u32 %v336, 16
  %v357 = vrot.slane %v355, 6
  %v358 = vor.u32 %v354, %v357
  %v359 = vrot.slane %v358, 4
  %v361 = vshrl.u32 %v337, 16
  %v363 = vrot.slane %v361, 5
  %v364 = vshll.u32 %v337, 16
  %v366 = vrot.slane %v364, 6
  %v367 = vor.u32 %v363, %v366
  %v368 = vsel %vm350, %v359, %v367
  %v369 = vrot.slane %v367, 4
  %v371 = vshrl.u32 %v338, 16
  %v373 = vrot.slane %v371, 5
  %v374 = vshll.u32 %v338, 16
  %v376 = vrot.slane %v374, 6
  %v377 = vor.u32 %v373, %v376
  %v378 = vsel %vm350, %v369, %v377
  %v379 = vrot.slane %v377, 4
  %v381 = vshrl.u32 %v339, 16
  %v383 = vrot.slane %v381, 5
  %v384 = vshll.u32 %v339, 16
  %v386 = vrot.slane %v384, 6
  %v387 = vor.u32 %v383, %v386
  %v388 = vsel %vm350, %v379, %v387
  %v389 = vrot.slane %v387, 4
  %v391 = vshrl.u32 %v340, 16
  %v393 = vrot.slane %v391, 5
  %v394 = vshll.u32 %v340, 16
  %v396 = vrot.slane %v394, 6
  %v397 = vor.u32 %v393, %v396
  %v398 = vsel %vm350, %v389, %v397
  %v399 = vrot.slane %v397, 4
  %v401 = vshrl.u32 %v341, 16
  %v403 = vrot.slane %v401, 5
  %v404 = vshll.u32 %v341, 16
  %v406 = vrot.slane %v404, 6
  %v407 = vor.u32 %v403, %v406
  %v408 = vsel %vm350, %v399, %v407
  %v409 = vrot.slane %v407, 4
  %v411 = vshrl.u32 %v342, 16
  %v413 = vrot.slane %v411, 5
  %v414 = vshll.u32 %v342, 16
  %v416 = vrot.slane %v414, 6
  %v417 = vor.u32 %v413, %v416
  %v418 = vsel %vm350, %v409, %v417
  %v419 = vrot.slane %v417, 4
  %v421 = vshrl.u32 %v343, 16
  %v423 = vrot.slane %v421, 5
  %v424 = vshll.u32 %v343, 16
  %v426 = vrot.slane %v424, 6
  %v427 = vor.u32 %v423, %v426
  %v428 = vsel %vm350, %v419, %v427
  %v429 = vrot.slane %v427, 4
  %v431 = vshrl.u32 %v344, 16
  %v433 = vrot.slane %v431, 5
  %v434 = vshll.u32 %v344, 16
  %v436 = vrot.slane %v434, 6
  %v437 = vor.u32 %v433, %v436
  %v438 = vsel %vm350, %v429, %v437
  %v439 = vrot.slane %v437, 4
  %v441 = vshrl.u32 %v345, 16
  %v443 = vrot.slane %v441, 5
  %v444 = vshll.u32 %v345, 16
  %v446 = vrot.slane %v444, 6
  %v447 = vor.u32 %v443, %v446
  %v448 = vsel %vm350, %v439, %v447
  %v449 = vrot.slane %v447, 4
  %v451 = vshrl.u32 %v346, 16
  %v453 = vrot.slane %v451, 5
  %v454 = vshll.u32 %v346, 16
  %v456 = vrot.slane %v454, 6
  %v457 = vor.u32 %v453, %v456
  %v458 = vsel %vm350, %v449, %v457
  %v459 = vrot.slane %v457, 4
  %v461 = vshrl.u32 %v347, 16
  %v463 = vrot.slane %v461, 5
  %v464 = vshll.u32 %v347, 16
  %v466 = vrot.slane %v464, 6
  %v467 = vor.u32 %v463, %v466
  %v468 = vsel %vm350, %v459, %v467
  %v469 = vrot.slane %v467, 4
  %470 = vrot.lane.b32.xlu0 %v368, 48
  %v471 = vpop.permute.xlu0 %470
  %472 = vrot.lane.b32.xlu0 %v378, 48
  %v473 = vpop.permute.xlu0 %472
  %474 = vrot.lane.b32.xlu0 %v388, 48
  %v475 = vpop.permute.xlu0 %474
  %476 = vrot.lane.b32.xlu0 %v398, 48
  %v477 = vpop.permute.xlu0 %476
  %478 = vrot.lane.b32.xlu0 %v408, 48
  %v479 = vpop.permute.xlu0 %478
  %480 = vrot.lane.b32.xlu0 %v418, 48
  %v481 = vpop.permute.xlu0 %480
  %482 = vrot.lane.b32.xlu0 %v428, 48
  %v483 = vpop.permute.xlu0 %482
  %484 = vrot.lane.b32.xlu0 %v438, 48
  %v485 = vpop.permute.xlu0 %484
  %486 = vrot.lane.b32.xlu0 %v448, 48
  %v487 = vpop.permute.xlu0 %486
  %488 = vrot.lane.b32.xlu0 %v458, 48
  %v489 = vpop.permute.xlu0 %488
  %490 = vrot.lane.b32.xlu0 %v468, 48
  %v491 = vpop.permute.xlu0 %490
  %492 = vrot.lane.b32.xlu0 %v469, 48
  %v493 = vpop.permute.xlu0 %492
  %vm506 = vcmask 519552
  %507 = vst.msk [vmem:[#allocation2] sm:$0xf] %vm506, %v471
  %508 = vst.msk [vmem:[#allocation2 + $0x4] sm:$0xf] %vm506, %v473
  %509 = vst.msk [vmem:[#allocation2 + $0x8] sm:$0xf] %vm506, %v475
  %510 = vst.msk [vmem:[#allocation2 + $0xc] sm:$0xf] %vm506, %v477
  %511 = vst.msk [vmem:[#allocation2 + $0x10] sm:$0xf] %vm506, %v479
  %512 = vst.msk [vmem:[#allocation2 + $0x14] sm:$0xf] %vm506, %v481
  %513 = vst.msk [vmem:[#allocation2 + $0x18] sm:$0xf] %vm506, %v483
  %514 = vst.msk [vmem:[#allocation2 + $0x1c] sm:$0xf] %vm506, %v485
  %515 = vst.msk [vmem:[#allocation2 + $0x20] sm:$0xf] %vm506, %v487
  %516 = vst.msk [vmem:[#allocation2 + $0x24] sm:$0xf] %vm506, %v489
  %517 = vst.msk [vmem:[#allocation2 + $0x28] sm:$0xf] %vm506, %v491
  %vm518 = vcmask 516480
  %519 = vst.msk [vmem:[#allocation2 + $0x2c] sm:$0x1] %vm518, %v493
  %s520 = scalar_lea.vmem %s0, 52
  %v521 = vld [vmem:[%s520] sm:$0xf]
  %v522 = vld [vmem:[%s520 + $0x4] sm:$0xf]
  %v523 = vld [vmem:[%s520 + $0x8] sm:$0xf]
  %v524 = vld [vmem:[%s520 + $0xc] sm:$0xf]
  %v525 = vld [vmem:[%s520 + $0x10] sm:$0xf]
  %v526 = vld [vmem:[%s520 + $0x14] sm:$0xf]
  %v527 = vld [vmem:[%s520 + $0x18] sm:$0xf]
  %v528 = vld [vmem:[%s520 + $0x1c] sm:$0xf]
  %v529 = vld [vmem:[%s520 + $0x20] sm:$0xf]
  %v530 = vld [vmem:[%s520 + $0x24] sm:$0xf]
  %v531 = vld [vmem:[%s520 + $0x28] sm:$0xf]
  %v532 = vld [vmem:[%s520 + $0x2c] sm:$0x1]
  %vm545 = vcmask 1040384
  %vm546 = vcmask 1044484
  %vm547 = vmor %vm545, %vm546
  %v548 = vrot.slane %v521, 7
  %v549 = vrot.slane %v548, 4
  %v550 = vrot.slane %v522, 7
  %v551 = vsel %vm547, %v549, %v550
  %v552 = vrot.slane %v550, 4
  %v553 = vrot.slane %v523, 7
  %v554 = vsel %vm547, %v552, %v553
  %v555 = vrot.slane %v553, 4
  %v556 = vrot.slane %v524, 7
  %v557 = vsel %vm547, %v555, %v556
  %v558 = vrot.slane %v556, 4
  %v559 = vrot.slane %v525, 7
  %v560 = vsel %vm547, %v558, %v559
  %v561 = vrot.slane %v559, 4
  %v562 = vrot.slane %v526, 7
  %v563 = vsel %vm547, %v561, %v562
  %v564 = vrot.slane %v562, 4
  %v565 = vrot.slane %v527, 7
  %v566 = vsel %vm547, %v564, %v565
  %v567 = vrot.slane %v565, 4
  %v568 = vrot.slane %v528, 7
  %v569 = vsel %vm547, %v567, %v568
  %v570 = vrot.slane %v568, 4
  %v571 = vrot.slane %v529, 7
  %v572 = vsel %vm547, %v570, %v571
  %v573 = vrot.slane %v571, 4
  %v574 = vrot.slane %v530, 7
  %v575 = vsel %vm547, %v573, %v574
  %v576 = vrot.slane %v574, 4
  %v577 = vrot.slane %v531, 7
  %v578 = vsel %vm547, %v576, %v577
  %v579 = vrot.slane %v577, 4
  %v580 = vrot.slane %v532, 7
  %v581 = vsel %vm547, %v579, %v580
  %vm594 = vcmask 125953
  %595 = vst.msk [vmem:[#allocation2 + $0x2c] sm:$0xe] %vm594, %v548
  %596 = vst.msk [vmem:[#allocation2 + $0x30] sm:$0xf] %vm26, %v551
  %597 = vst.msk [vmem:[#allocation2 + $0x34] sm:$0xf] %vm26, %v554
  %598 = vst.msk [vmem:[#allocation2 + $0x38] sm:$0xf] %vm26, %v557
  %599 = vst.msk [vmem:[#allocation2 + $0x3c] sm:$0xf] %vm26, %v560
  %600 = vst.msk [vmem:[#allocation2 + $0x40] sm:$0xf] %vm26, %v563
  %601 = vst.msk [vmem:[#allocation2 + $0x44] sm:$0xf] %vm26, %v566
  %602 = vst.msk [vmem:[#allocation2 + $0x48] sm:$0xf] %vm26, %v569
  %603 = vst.msk [vmem:[#allocation2 + $0x4c] sm:$0xf] %vm26, %v572
  %604 = vst.msk [vmem:[#allocation2 + $0x50] sm:$0xf] %vm26, %v575
  %605 = vst.msk [vmem:[#allocation2 + $0x54] sm:$0xf] %vm26, %v578
  %vm606 = vcmask 123904
  %607 = vst.msk [vmem:[#allocation2 + $0x58] sm:$0x3] %vm606, %v581
  %v608 = vld [vmem:[%s520] sm:$0xf]
  %v609 = vld [vmem:[%s520 + $0x4] sm:$0xf]
  %v610 = vld [vmem:[%s520 + $0x8] sm:$0xf]
  %v611 = vld [vmem:[%s520 + $0xc] sm:$0xf]
  %v612 = vld [vmem:[%s520 + $0x10] sm:$0xf]
  %v613 = vld [vmem:[%s520 + $0x14] sm:$0xf]
  %v614 = vld [vmem:[%s520 + $0x18] sm:$0xf]
  %v615 = vld [vmem:[%s520 + $0x1c] sm:$0xf]
  %v616 = vld [vmem:[%s520 + $0x20] sm:$0xf]
  %v617 = vld [vmem:[%s520 + $0x24] sm:$0xf]
  %v618 = vld [vmem:[%s520 + $0x28] sm:$0xf]
  %v619 = vld [vmem:[%s520 + $0x2c] sm:$0x3]
  %vm620 = vsmask.f32 256
  %vm621 = vsmask.f32 4368
  %vm622 = vmor %vm620, %vm621
  %v624 = vshrl.u32 %v608, 16
  %v626 = vrot.slane %v624, 7
  %v627 = vshll.u32 %v608, 16
  %v629 = vor.u32 %v626, %v627
  %v630 = vrot.slane %v626, 4
  %v632 = vshrl.u32 %v609, 16
  %v634 = vrot.slane %v632, 7
  %v635 = vshll.u32 %v609, 16
  %v637 = vor.u32 %v634, %v635
  %v638 = vsel %vm622, %v630, %v637
  %v639 = vrot.slane %v634, 4
  %v641 = vshrl.u32 %v610, 16
  %v643 = vrot.slane %v641, 7
  %v644 = vshll.u32 %v610, 16
  %v646 = vor.u32 %v643, %v644
  %v647 = vsel %vm622, %v639, %v646
  %v648 = vrot.slane %v643, 4
  %v650 = vshrl.u32 %v611, 16
  %v652 = vrot.slane %v650, 7
  %v653 = vshll.u32 %v611, 16
  %v655 = vor.u32 %v652, %v653
  %v656 = vsel %vm622, %v648, %v655
  %v657 = vrot.slane %v652, 4
  %v659 = vshrl.u32 %v612, 16
  %v661 = vrot.slane %v659, 7
  %v662 = vshll.u32 %v612, 16
  %v664 = vor.u32 %v661, %v662
  %v665 = vsel %vm622, %v657, %v664
  %v666 = vrot.slane %v661, 4
  %v668 = vshrl.u32 %v613, 16
  %v670 = vrot.slane %v668, 7
  %v671 = vshll.u32 %v613, 16
  %v673 = vor.u32 %v670, %v671
  %v674 = vsel %vm622, %v666, %v673
  %v675 = vrot.slane %v670, 4
  %v677 = vshrl.u32 %v614, 16
  %v679 = vrot.slane %v677, 7
  %v680 = vshll.u32 %v614, 16
  %v682 = vor.u32 %v679, %v680
  %v683 = vsel %vm622, %v675, %v682
  %v684 = vrot.slane %v679, 4
  %v686 = vshrl.u32 %v615, 16
  %v688 = vrot.slane %v686, 7
  %v689 = vshll.u32 %v615, 16
  %v691 = vor.u32 %v688, %v689
  %v692 = vsel %vm622, %v684, %v691
  %v693 = vrot.slane %v688, 4
  %v695 = vshrl.u32 %v616, 16
  %v697 = vrot.slane %v695, 7
  %v698 = vshll.u32 %v616, 16
  %v700 = vor.u32 %v697, %v698
  %v701 = vsel %vm622, %v693, %v700
  %v702 = vrot.slane %v697, 4
  %v704 = vshrl.u32 %v617, 16
  %v706 = vrot.slane %v704, 7
  %v707 = vshll.u32 %v617, 16
  %v709 = vor.u32 %v706, %v707
  %v710 = vsel %vm622, %v702, %v709
  %v711 = vrot.slane %v706, 4
  %v713 = vshrl.u32 %v618, 16
  %v715 = vrot.slane %v713, 7
  %v716 = vshll.u32 %v618, 16
  %v718 = vor.u32 %v715, %v716
  %v719 = vsel %vm622, %v711, %v718
  %v720 = vrot.slane %v715, 4
  %v722 = vshrl.u32 %v619, 16
  %v724 = vrot.slane %v722, 7
  %v725 = vshll.u32 %v619, 16
  %v727 = vor.u32 %v724, %v725
  %v728 = vsel %vm622, %v720, %v727
  %729 = vrot.lane.b32.xlu0 %v629, 16
  %v730 = vpop.permute.xlu0 %729
  %731 = vrot.lane.b32.xlu0 %v638, 16
  %v732 = vpop.permute.xlu0 %731
  %733 = vrot.lane.b32.xlu0 %v647, 16
  %v734 = vpop.permute.xlu0 %733
  %735 = vrot.lane.b32.xlu0 %v656, 16
  %v736 = vpop.permute.xlu0 %735
  %737 = vrot.lane.b32.xlu0 %v665, 16
  %v738 = vpop.permute.xlu0 %737
  %739 = vrot.lane.b32.xlu0 %v674, 16
  %v740 = vpop.permute.xlu0 %739
  %741 = vrot.lane.b32.xlu0 %v683, 16
  %v742 = vpop.permute.xlu0 %741
  %743 = vrot.lane.b32.xlu0 %v692, 16
  %v744 = vpop.permute.xlu0 %743
  %745 = vrot.lane.b32.xlu0 %v701, 16
  %v746 = vpop.permute.xlu0 %745
  %747 = vrot.lane.b32.xlu0 %v710, 16
  %v748 = vpop.permute.xlu0 %747
  %749 = vrot.lane.b32.xlu0 %v719, 16
  %v750 = vpop.permute.xlu0 %749
  %751 = vrot.lane.b32.xlu0 %v728, 16
  %v752 = vpop.permute.xlu0 %751
  %vm765 = vcmask 257153
  %766 = vst.msk [vmem:[#allocation2 + $0x2c] sm:$0xe] %vm765, %v730
  %767 = vst.msk [vmem:[#allocation2 + $0x30] sm:$0xf] %vm210, %v732
  %768 = vst.msk [vmem:[#allocation2 + $0x34] sm:$0xf] %vm210, %v734
  %769 = vst.msk [vmem:[#allocation2 + $0x38] sm:$0xf] %vm210, %v736
  %770 = vst.msk [vmem:[#allocation2 + $0x3c] sm:$0xf] %vm210, %v738
  %771 = vst.msk [vmem:[#allocation2 + $0x40] sm:$0xf] %vm210, %v740
  %772 = vst.msk [vmem:[#allocation2 + $0x44] sm:$0xf] %vm210, %v742
  %773 = vst.msk [vmem:[#allocation2 + $0x48] sm:$0xf] %vm210, %v744
  %774 = vst.msk [vmem:[#allocation2 + $0x4c] sm:$0xf] %vm210, %v746
  %775 = vst.msk [vmem:[#allocation2 + $0x50] sm:$0xf] %vm210, %v748
  %776 = vst.msk [vmem:[#allocation2 + $0x54] sm:$0xf] %vm210, %v750
  %vm777 = vcmask 255104
  %778 = vst.msk [vmem:[#allocation2 + $0x58] sm:$0x3] %vm777, %v752
  %v779 = vld [vmem:[%s520 + $0x4] sm:$0xe]
  %v780 = vld [vmem:[%s520 + $0x8] sm:$0xf]
  %v781 = vld [vmem:[%s520 + $0xc] sm:$0xf]
  %v782 = vld [vmem:[%s520 + $0x10] sm:$0xf]
  %v783 = vld [vmem:[%s520 + $0x14] sm:$0xf]
  %v784 = vld [vmem:[%s520 + $0x18] sm:$0xf]
  %v785 = vld [vmem:[%s520 + $0x1c] sm:$0xf]
  %v786 = vld [vmem:[%s520 + $0x20] sm:$0xf]
  %v787 = vld [vmem:[%s520 + $0x24] sm:$0xf]
  %v788 = vld [vmem:[%s520 + $0x28] sm:$0xf]
  %v789 = vld [vmem:[%s520 + $0x2c] sm:$0xf]
  %v790 = vld [vmem:[%s520 + $0x30] sm:$0x3]
  %803 = vrot.lane.b32.xlu0 %v779, 32
  %v804 = vpop.permute.xlu0 %803
  %805 = vrot.lane.b32.xlu0 %v780, 32
  %v806 = vpop.permute.xlu0 %805
  %807 = vrot.lane.b32.xlu0 %v781, 32
  %v808 = vpop.permute.xlu0 %807
  %809 = vrot.lane.b32.xlu0 %v782, 32
  %v810 = vpop.permute.xlu0 %809
  %811 = vrot.lane.b32.xlu0 %v783, 32
  %v812 = vpop.permute.xlu0 %811
  %813 = vrot.lane.b32.xlu0 %v784, 32
  %v814 = vpop.permute.xlu0 %813
  %815 = vrot.lane.b32.xlu0 %v785, 32
  %v816 = vpop.permute.xlu0 %815
  %817 = vrot.lane.b32.xlu0 %v786, 32
  %v818 = vpop.permute.xlu0 %817
  %819 = vrot.lane.b32.xlu0 %v787, 32
  %v820 = vpop.permute.xlu0 %819
  %821 = vrot.lane.b32.xlu0 %v788, 32
  %v822 = vpop.permute.xlu0 %821
  %823 = vrot.lane.b32.xlu0 %v789, 32
  %v824 = vpop.permute.xlu0 %823
  %825 = vrot.lane.b32.xlu0 %v790, 32
  %v826 = vpop.permute.xlu0 %825
  %vm839 = vcmask 388353
  %840 = vst.msk [vmem:[#allocation2 + $0x2c] sm:$0xe] %vm839, %v804
  %841 = vst.msk [vmem:[#allocation2 + $0x30] sm:$0xf] %vm322, %v806
  %842 = vst.msk [vmem:[#allocation2 + $0x34] sm:$0xf] %vm322, %v808
  %843 = vst.msk [vmem:[#allocation2 + $0x38] sm:$0xf] %vm322, %v810
  %844 = vst.msk [vmem:[#allocation2 + $0x3c] sm:$0xf] %vm322, %v812
  %845 = vst.msk [vmem:[#allocation2 + $0x40] sm:$0xf] %vm322, %v814
  %846 = vst.msk [vmem:[#allocation2 + $0x44] sm:$0xf] %vm322, %v816
  %847 = vst.msk [vmem:[#allocation2 + $0x48] sm:$0xf] %vm322, %v818
  %848 = vst.msk [vmem:[#allocation2 + $0x4c] sm:$0xf] %vm322, %v820
  %849 = vst.msk [vmem:[#allocation2 + $0x50] sm:$0xf] %vm322, %v822
  %850 = vst.msk [vmem:[#allocation2 + $0x54] sm:$0xf] %vm322, %v824
  %vm851 = vcmask 386304
  %852 = vst.msk [vmem:[#allocation2 + $0x58] sm:$0x3] %vm851, %v826
  %v853 = vld [vmem:[%s520 + $0x4] sm:$0xe]
  %v854 = vld [vmem:[%s520 + $0x8] sm:$0xf]
  %v855 = vld [vmem:[%s520 + $0xc] sm:$0xf]
  %v856 = vld [vmem:[%s520 + $0x10] sm:$0xf]
  %v857 = vld [vmem:[%s520 + $0x14] sm:$0xf]
  %v858 = vld [vmem:[%s520 + $0x18] sm:$0xf]
  %v859 = vld [vmem:[%s520 + $0x1c] sm:$0xf]
  %v860 = vld [vmem:[%s520 + $0x20] sm:$0xf]
  %v861 = vld [vmem:[%s520 + $0x24] sm:$0xf]
  %v862 = vld [vmem:[%s520 + $0x28] sm:$0xf]
  %v863 = vld [vmem:[%s520 + $0x2c] sm:$0xf]
  %v864 = vld [vmem:[%s520 + $0x30] sm:$0x7]
  %v866 = vshrl.u32 %v853, 16
  %v868 = vrot.slane %v866, 4
  %v869 = vshll.u32 %v853, 16
  %v871 = vrot.slane %v869, 5
  %v872 = vor.u32 %v868, %v871
  %v873 = vrot.slane %v872, 4
  %v875 = vshll.u32 %v854, 16
  %v877 = vrot.slane %v875, 5
  %v878 = vsel %vm54, %v873, %v877
  %v879 = vshrl.u32 %v854, 16
  %v881 = vrot.slane %v879, 4
  %v882 = vor.u32 %v881, %v877
  %v883 = vrot.slane %v882, 4
  %v885 = vshll.u32 %v855, 16
  %v887 = vrot.slane %v885, 5
  %v888 = vsel %vm54, %v883, %v887
  %v889 = vshrl.u32 %v855, 16
  %v891 = vrot.slane %v889, 4
  %v892 = vor.u32 %v891, %v887
  %v893 = vrot.slane %v892, 4
  %v895 = vshll.u32 %v856, 16
  %v897 = vrot.slane %v895, 5
  %v898 = vsel %vm54, %v893, %v897
  %v899 = vshrl.u32 %v856, 16
  %v901 = vrot.slane %v899, 4
  %v902 = vor.u32 %v901, %v897
  %v903 = vrot.slane %v902, 4
  %v905 = vshll.u32 %v857, 16
  %v907 = vrot.slane %v905, 5
  %v908 = vsel %vm54, %v903, %v907
  %v909 = vshrl.u32 %v857, 16
  %v911 = vrot.slane %v909, 4
  %v912 = vor.u32 %v911, %v907
  %v913 = vrot.slane %v912, 4
  %v915 = vshll.u32 %v858, 16
  %v917 = vrot.slane %v915, 5
  %v918 = vsel %vm54, %v913, %v917
  %v919 = vshrl.u32 %v858, 16
  %v921 = vrot.slane %v919, 4
  %v922 = vor.u32 %v921, %v917
  %v923 = vrot.slane %v922, 4
  %v925 = vshll.u32 %v859, 16
  %v927 = vrot.slane %v925, 5
  %v928 = vsel %vm54, %v923, %v927
  %v929 = vshrl.u32 %v859, 16
  %v931 = vrot.slane %v929, 4
  %v932 = vor.u32 %v931, %v927
  %v933 = vrot.slane %v932, 4
  %v935 = vshll.u32 %v860, 16
  %v937 = vrot.slane %v935, 5
  %v938 = vsel %vm54, %v933, %v937
  %v939 = vshrl.u32 %v860, 16
  %v941 = vrot.slane %v939, 4
  %v942 = vor.u32 %v941, %v937
  %v943 = vrot.slane %v942, 4
  %v945 = vshll.u32 %v861, 16
  %v947 = vrot.slane %v945, 5
  %v948 = vsel %vm54, %v943, %v947
  %v949 = vshrl.u32 %v861, 16
  %v951 = vrot.slane %v949, 4
  %v952 = vor.u32 %v951, %v947
  %v953 = vrot.slane %v952, 4
  %v955 = vshll.u32 %v862, 16
  %v957 = vrot.slane %v955, 5
  %v958 = vsel %vm54, %v953, %v957
  %v959 = vshrl.u32 %v862, 16
  %v961 = vrot.slane %v959, 4
  %v962 = vor.u32 %v961, %v957
  %v963 = vrot.slane %v962, 4
  %v965 = vshll.u32 %v863, 16
  %v967 = vrot.slane %v965, 5
  %v968 = vsel %vm54, %v963, %v967
  %v969 = vshrl.u32 %v863, 16
  %v971 = vrot.slane %v969, 4
  %v972 = vor.u32 %v971, %v967
  %v973 = vrot.slane %v972, 4
  %v975 = vshll.u32 %v864, 16
  %v977 = vrot.slane %v975, 5
  %v978 = vsel %vm54, %v973, %v977
  %v979 = vshrl.u32 %v864, 16
  %v981 = vrot.slane %v979, 4
  %v982 = vor.u32 %v981, %v977
  %v983 = vrot.slane %v982, 4
  %984 = vrot.lane.b32.xlu0 %v878, 48
  %v985 = vpop.permute.xlu0 %984
  %986 = vrot.lane.b32.xlu0 %v888, 48
  %v987 = vpop.permute.xlu0 %986
  %988 = vrot.lane.b32.xlu0 %v898, 48
  %v989 = vpop.permute.xlu0 %988
  %990 = vrot.lane.b32.xlu0 %v908, 48
  %v991 = vpop.permute.xlu0 %990
  %992 = vrot.lane.b32.xlu0 %v918, 48
  %v993 = vpop.permute.xlu0 %992
  %994 = vrot.lane.b32.xlu0 %v928, 48
  %v995 = vpop.permute.xlu0 %994
  %996 = vrot.lane.b32.xlu0 %v938, 48
  %v997 = vpop.permute.xlu0 %996
  %998 = vrot.lane.b32.xlu0 %v948, 48
  %v999 = vpop.permute.xlu0 %998
  %1000 = vrot.lane.b32.xlu0 %v958, 48
  %v1001 = vpop.permute.xlu0 %1000
  %1002 = vrot.lane.b32.xlu0 %v968, 48
  %v1003 = vpop.permute.xlu0 %1002
  %1004 = vrot.lane.b32.xlu0 %v978, 48
  %v1005 = vpop.permute.xlu0 %1004
  %1006 = vrot.lane.b32.xlu0 %v983, 48
  %v1007 = vpop.permute.xlu0 %1006
  %vm1020 = vcmask 519553
  %1021 = vst.msk [vmem:[#allocation2 + $0x2c] sm:$0xe] %vm1020, %v985
  %1022 = vst.msk [vmem:[#allocation2 + $0x30] sm:$0xf] %vm506, %v987
  %1023 = vst.msk [vmem:[#allocation2 + $0x34] sm:$0xf] %vm506, %v989
  %1024 = vst.msk [vmem:[#allocation2 + $0x38] sm:$0xf] %vm506, %v991
  %1025 = vst.msk [vmem:[#allocation2 + $0x3c] sm:$0xf] %vm506, %v993
  %1026 = vst.msk [vmem:[#allocation2 + $0x40] sm:$0xf] %vm506, %v995
  %1027 = vst.msk [vmem:[#allocation2 + $0x44] sm:$0xf] %vm506, %v997
  %1028 = vst.msk [vmem:[#allocation2 + $0x48] sm:$0xf] %vm506, %v999
  %1029 = vst.msk [vmem:[#allocation2 + $0x4c] sm:$0xf] %vm506, %v1001
  %1030 = vst.msk [vmem:[#allocation2 + $0x50] sm:$0xf] %vm506, %v1003
  %1031 = vst.msk [vmem:[#allocation2 + $0x54] sm:$0xf] %vm506, %v1005
  %vm1032 = vcmask 517504
  %1033 = vst.msk [vmem:[#allocation2 + $0x58] sm:$0x3] %vm1032, %v1007
  %v1034 = vld [vmem:[#allocation2] sm:$0xf]
  %v1035 = vld [vmem:[#allocation2 + $0x4] sm:$0xf]
  %v1036 = vld [vmem:[#allocation2 + $0x8] sm:$0xf]
  %v1037 = vld [vmem:[#allocation2 + $0xc] sm:$0xf]
  %v1038 = vld [vmem:[#allocation2 + $0x10] sm:$0xf]
  %v1039 = vld [vmem:[#allocation2 + $0x14] sm:$0xf]
  %v1040 = vld [vmem:[#allocation2 + $0x18] sm:$0xf]
  %v1041 = vld [vmem:[#allocation2 + $0x1c] sm:$0xf]
  %v1042 = vld [vmem:[#allocation2 + $0x20] sm:$0xf]
  %v1043 = vld [vmem:[#allocation2 + $0x24] sm:$0xf]
  %v1044 = vld [vmem:[#allocation2 + $0x28] sm:$0xf]
  %v1045 = vld [vmem:[#allocation2 + $0x2c] sm:$0xf]
  %v1046 = vld [vmem:[#allocation2 + $0x30] sm:$0xf]
  %v1047 = vld [vmem:[#allocation2 + $0x34] sm:$0xf]
  %v1048 = vld [vmem:[#allocation2 + $0x38] sm:$0xf]
  %v1049 = vld [vmem:[#allocation2 + $0x3c] sm:$0xf]
  %v1050 = vld [vmem:[#allocation2 + $0x40] sm:$0xf]
  %v1051 = vld [vmem:[#allocation2 + $0x44] sm:$0xf]
  %v1052 = vld [vmem:[#allocation2 + $0x48] sm:$0xf]
  %v1053 = vld [vmem:[#allocation2 + $0x4c] sm:$0xf]
  %v1054 = vld [vmem:[#allocation2 + $0x50] sm:$0xf]
  %v1055 = vld [vmem:[#allocation2 + $0x54] sm:$0xf]
  %v1056 = vld [vmem:[#allocation2 + $0x58] sm:$0x3]
  %v1057 = vld [vmem:[%s1] sm:$0xf]
  %v1058 = vld [vmem:[%s1 + $0x4] sm:$0xf]
  %v1059 = vld [vmem:[%s1 + $0x8] sm:$0xf]
  %v1060 = vld [vmem:[%s1 + $0xc] sm:$0xf]
  %v1061 = vld [vmem:[%s1 + $0x10] sm:$0xf]
  %v1062 = vld [vmem:[%s1 + $0x14] sm:$0xf]
  %v1063 = vld [vmem:[%s1 + $0x18] sm:$0xf]
  %v1064 = vld [vmem:[%s1 + $0x1c] sm:$0xf]
  %v1088 = vunpack.c.l.b16 %v1034
  %v1089 = vunpack.c.l.b16 %v1035
  %v1090 = vunpack.c.l.b16 %v1036
  %v1091 = vunpack.c.l.b16 %v1037
  %v1092 = vunpack.c.l.b16 %v1038
  %v1093 = vunpack.c.l.b16 %v1039
  %v1094 = vunpack.c.l.b16 %v1040
  %v1095 = vunpack.c.l.b16 %v1041
  %v1096 = vunpack.c.l.b16 %v1042
  %v1097 = vunpack.c.l.b16 %v1043
  %v1098 = vunpack.c.l.b16 %v1044
  %v1099 = vunpack.c.l.b16 %v1045
  %v1100 = vunpack.c.l.b16 %v1046
  %v1101 = vunpack.c.l.b16 %v1047
  %v1102 = vunpack.c.l.b16 %v1048
  %v1103 = vunpack.c.l.b16 %v1049
  %v1104 = vunpack.c.l.b16 %v1050
  %v1105 = vunpack.c.l.b16 %v1051
  %v1106 = vunpack.c.l.b16 %v1052
  %v1107 = vunpack.c.l.b16 %v1053
  %v1108 = vunpack.c.l.b16 %v1054
  %v1109 = vunpack.c.l.b16 %v1055
  %v1110 = vunpack.c.l.b16 %v1056
  %v1111 = vpack.c.b16 %v1089, %v1088
  %v1112 = vpack.c.b16 %v1091, %v1090
  %v1113 = vpack.c.b16 %v1093, %v1092
  %v1114 = vpack.c.b16 %v1095, %v1094
  %v1115 = vpack.c.b16 %v1097, %v1096
  %v1116 = vpack.c.b16 %v1099, %v1098
  %v1117 = vpack.c.b16 %v1101, %v1100
  %v1118 = vpack.c.b16 %v1103, %v1102
  %v1119 = vpack.c.b16 %v1105, %v1104
  %v1120 = vpack.c.b16 %v1107, %v1106
  %v1121 = vpack.c.b16 %v1109, %v1108
  %v1122 = vpack.c.b16 %v1110, %v1110
  %v1131 = vunpack.c.l.b16 %v1057
  %v1132 = vunpack.c.l.b16 %v1058
  %v1133 = vunpack.c.l.b16 %v1059
  %v1134 = vunpack.c.l.b16 %v1060
  %v1135 = vunpack.c.l.b16 %v1061
  %v1136 = vunpack.c.l.b16 %v1062
  %v1137 = vunpack.c.l.b16 %v1063
  %v1138 = vunpack.c.l.b16 %v1064
  %v1139 = vpack.c.b16 %v1132, %v1131
  %v1140 = vpack.c.b16 %v1134, %v1133
  %v1141 = vpack.c.b16 %v1136, %v1135
  %v1142 = vpack.c.b16 %v1138, %v1137
  %vm1147 = vcmask 523264
  %v1149 = vsel %vm1147, %v1111, 0
  %v1152 = vsel %vm1147, %v1112, 0
  %v1155 = vsel %vm1147, %v1113, 0
  %v1158 = vsel %vm1147, %v1114, 0
  %v1161 = vsel %vm1147, %v1115, 0
  %v1164 = vsel %vm1147, %v1116, 0
  %v1167 = vsel %vm1147, %v1117, 0
  %v1170 = vsel %vm1147, %v1118, 0
  %v1173 = vsel %vm1147, %v1119, 0
  %v1176 = vsel %vm1147, %v1120, 0
  %v1179 = vsel %vm1147, %v1121, 0
  %v1182 = vsel %vm1147, %v1122, 0
  %1184 = vmatprep.subr.bf16.mxu0 0
  %1185 = vmatpush1.bf16.msra.mxu0 %v1139
  %1186 = vmatprep.subr.bf16.mxu0 0
  %1187 = vmatpush1.bf16.msra.mxu0 %v1140
  %1188 = vmatprep.subr.bf16.mxu0 0
  %1189 = vmatpush1.bf16.msra.mxu0 %v1141
  %1190 = vmatprep.subr.bf16.mxu0 0
  %1191 = vmatpush1.bf16.msra.mxu0 %v1142
  %1192 = vmatprep.subr.bf16.mxu0 0
  %1193 = vmatpush1.bf16.msra.mxu0 0
  %1194 = vmatprep.subr.bf16.mxu0 0
  %1195 = vmatpush1.bf16.msra.mxu0 0
  %1196 = vmatprep.subr.bf16.mxu0 0
  %1197 = vmatpush1.bf16.msra.mxu0 0
  %1198 = vmatprep.subr.bf16.mxu0 0
  %1199 = vmatpush1.bf16.msra.mxu0 0
  %1200 = vmatprep.subr.bf16.mxu0 0
  %1201 = vmatpush1.bf16.msra.mxu0 0
  %1202 = vmatprep.subr.bf16.mxu0 0
  %1203 = vmatpush1.bf16.msra.mxu0 0
  %1204 = vmatprep.subr.bf16.mxu0 0
  %1205 = vmatpush1.bf16.msra.mxu0 0
  %1206 = vmatprep.subr.bf16.mxu0 0
  %1207 = vmatpush1.bf16.msra.mxu0 0
  %1208 = vmatprep.subr.bf16.mxu0 0
  %1209 = vmatpush1.bf16.msra.mxu0 0
  %1210 = vmatprep.subr.bf16.mxu0 0
  %1211 = vmatpush1.bf16.msra.mxu0 0
  %1212 = vmatprep.subr.bf16.mxu0 0
  %1213 = vmatpush1.bf16.msra.mxu0 0
  %1214 = vmatprep.subr.bf16.mxu0 0
  %1215 = vmatpush1.bf16.msra.mxu0 0
  %1216 = vmatprep.mubr.bf16.mxu0 0
  %1217 = vmatmul.mubr.bf16.gmra.mrb[0].mxu0 %v1149
  %v1218 = vpop.f32.mrb[0].mxu0
  %v1219 = vadd.f32 0.0, %v1218
  %v1220 = vpop.f32.mrb[0].mxu0
  %v1221 = vpop.f32.mrb[0].mxu0
  %v1222 = vadd.f32 0.0, %v1221
  %v1223 = vpop.f32.mrb[0].mxu0
  %1224 = vmatprep.mubr.bf16.mxu0 0
  %1225 = vmatmul.mubr.bf16.gmra.mrb[0].mxu0 %v1152
  %v1226 = vpop.f32.mrb[0].mxu0
  %v1227 = vadd.f32 0.0, %v1226
  %v1228 = vpop.f32.mrb[0].mxu0
  %v1229 = vpop.f32.mrb[0].mxu0
  %v1230 = vadd.f32 0.0, %v1229
  %v1231 = vpop.f32.mrb[0].mxu0
  %1232 = vmatprep.mubr.bf16.mxu0 0
  %1233 = vmatmul.mubr.bf16.gmra.mrb[0].mxu0 %v1155
  %v1234 = vpop.f32.mrb[0].mxu0
  %v1235 = vadd.f32 0.0, %v1234
  %v1236 = vpop.f32.mrb[0].mxu0
  %v1237 = vpop.f32.mrb[0].mxu0
  %v1238 = vadd.f32 0.0, %v1237
  %v1239 = vpop.f32.mrb[0].mxu0
  %1240 = vmatprep.mubr.bf16.mxu0 0
  %1241 = vmatmul.mubr.bf16.gmra.mrb[0].mxu0 %v1158
  %v1242 = vpop.f32.mrb[0].mxu0
  %v1243 = vadd.f32 0.0, %v1242
  %v1244 = vpop.f32.mrb[0].mxu0
  %v1245 = vpop.f32.mrb[0].mxu0
  %v1246 = vadd.f32 0.0, %v1245
  %v1247 = vpop.f32.mrb[0].mxu0
  %1248 = vmatprep.mubr.bf16.mxu0 0
  %1249 = vmatmul.mubr.bf16.gmra.mrb[0].mxu0 %v1161
  %v1250 = vpop.f32.mrb[0].mxu0
  %v1251 = vadd.f32 0.0, %v1250
  %v1252 = vpop.f32.mrb[0].mxu0
  %v1253 = vpop.f32.mrb[0].mxu0
  %v1254 = vadd.f32 0.0, %v1253
  %v1255 = vpop.f32.mrb[0].mxu0
  %1256 = vmatprep.mubr.bf16.mxu0 0
  %1257 = vmatmul.mubr.bf16.gmra.mrb[0].mxu0 %v1164
  %v1258 = vpop.f32.mrb[0].mxu0
  %v1259 = vadd.f32 0.0, %v1258
  %v1260 = vpop.f32.mrb[0].mxu0
  %v1261 = vpop.f32.mrb[0].mxu0
  %v1262 = vadd.f32 0.0, %v1261
  %v1263 = vpop.f32.mrb[0].mxu0
  %1264 = vmatprep.mubr.bf16.mxu0 0
  %1265 = vmatmul.mubr.bf16.gmra.mrb[0].mxu0 %v1167
  %v1266 = vpop.f32.mrb[0].mxu0
  %v1267 = vadd.f32 0.0, %v1266
  %v1268 = vpop.f32.mrb[0].mxu0
  %v1269 = vpop.f32.mrb[0].mxu0
  %v1270 = vadd.f32 0.0, %v1269
  %v1271 = vpop.f32.mrb[0].mxu0
  %1272 = vmatprep.mubr.bf16.mxu0 0
  %1273 = vmatmul.mubr.bf16.gmra.mrb[0].mxu0 %v1170
  %v1274 = vpop.f32.mrb[0].mxu0
  %v1275 = vadd.f32 0.0, %v1274
  %v1276 = vpop.f32.mrb[0].mxu0
  %v1277 = vpop.f32.mrb[0].mxu0
  %v1278 = vadd.f32 0.0, %v1277
  %v1279 = vpop.f32.mrb[0].mxu0
  %1280 = vmatprep.mubr.bf16.mxu0 0
  %1281 = vmatmul.mubr.bf16.gmra.mrb[0].mxu0 %v1173
  %v1282 = vpop.f32.mrb[0].mxu0
  %v1283 = vadd.f32 0.0, %v1282
  %v1284 = vpop.f32.mrb[0].mxu0
  %v1285 = vpop.f32.mrb[0].mxu0
  %v1286 = vadd.f32 0.0, %v1285
  %v1287 = vpop.f32.mrb[0].mxu0
  %1288 = vmatprep.mubr.bf16.mxu0 0
  %1289 = vmatmul.mubr.bf16.gmra.mrb[0].mxu0 %v1176
  %v1290 = vpop.f32.mrb[0].mxu0
  %v1291 = vadd.f32 0.0, %v1290
  %v1292 = vpop.f32.mrb[0].mxu0
  %v1293 = vpop.f32.mrb[0].mxu0
  %v1294 = vadd.f32 0.0, %v1293
  %v1295 = vpop.f32.mrb[0].mxu0
  %1296 = vmatprep.mubr.bf16.mxu0 0
  %1297 = vmatmul.mubr.bf16.gmra.mrb[0].mxu0 %v1179
  %v1298 = vpop.f32.mrb[0].mxu0
  %v1299 = vadd.f32 0.0, %v1298
  %v1300 = vpop.f32.mrb[0].mxu0
  %v1301 = vpop.f32.mrb[0].mxu0
  %v1302 = vadd.f32 0.0, %v1301
  %v1303 = vpop.f32.mrb[0].mxu0
  %1304 = vmatprep.mubr.bf16.mxu0 0
  %1305 = vmatmul.mubr.bf16.gmra.mrb[0].mxu0 %v1182
  %v1306 = vpop.f32.mrb[0].mxu0
  %v1307 = vadd.f32 0.0, %v1306
  %v1308 = vpop.f32.mrb[0].mxu0
  %v1309 = vpop.f32.mrb[0].mxu0
  %v1310 = vpop.f32.mrb[0].mxu0
  %1311 = vdwg.mxu0
  %v1312 = vpack.c.bf16 %v1222, %v1219
  %v1313 = vpack.c.bf16 %v1230, %v1227
  %v1314 = vpack.c.bf16 %v1238, %v1235
  %v1315 = vpack.c.bf16 %v1246, %v1243
  %v1316 = vpack.c.bf16 %v1254, %v1251
  %v1317 = vpack.c.bf16 %v1262, %v1259
  %v1324 = vunpack.c.l.b16 %v1312
  %v1325 = vunpack.c.h.b16 %v1312
  %v1326 = vunpack.c.l.b16 %v1313
  %v1327 = vunpack.c.h.b16 %v1313
  %v1328 = vunpack.c.l.b16 %v1314
  %v1329 = vunpack.c.h.b16 %v1314
  %v1330 = vunpack.c.l.b16 %v1315
  %v1331 = vunpack.c.h.b16 %v1315
  %v1332 = vunpack.c.l.b16 %v1316
  %v1333 = vunpack.c.h.b16 %v1316
  %v1334 = vunpack.c.l.b16 %v1317
  %v1335 = vunpack.c.h.b16 %v1317
  %v1336 = vpack.c.b16 %v1324, %v1324
  %v1337 = vpack.c.b16 %v1325, %v1325
  %v1338 = vpack.c.b16 %v1326, %v1326
  %v1339 = vpack.c.b16 %v1327, %v1327
  %v1340 = vpack.c.b16 %v1328, %v1328
  %v1341 = vpack.c.b16 %v1329, %v1329
  %v1342 = vpack.c.b16 %v1330, %v1330
  %v1343 = vpack.c.b16 %v1331, %v1331
  %v1344 = vpack.c.b16 %v1332, %v1332
  %v1345 = vpack.c.b16 %v1333, %v1333
  %v1346 = vpack.c.b16 %v1334, %v1334
  %v1347 = vpack.c.b16 %v1335, %v1335
  %1360 = vst.msk [vmem:[%s2] sm:$0xf] %vm26, %v1336
  %1361 = vst.msk [vmem:[%s2 + $0x4] sm:$0xf] %vm26, %v1337
  %1362 = vst.msk [vmem:[%s2 + $0x8] sm:$0xf] %vm26, %v1338
  %1363 = vst.msk [vmem:[%s2 + $0xc] sm:$0xf] %vm26, %v1339
  %1364 = vst.msk [vmem:[%s2 + $0x10] sm:$0xf] %vm26, %v1340
  %1365 = vst.msk [vmem:[%s2 + $0x14] sm:$0xf] %vm26, %v1341
  %1366 = vst.msk [vmem:[%s2 + $0x18] sm:$0xf] %vm26, %v1342
  %1367 = vst.msk [vmem:[%s2 + $0x1c] sm:$0xf] %vm26, %v1343
  %1368 = vst.msk [vmem:[%s2 + $0x20] sm:$0xf] %vm26, %v1344
  %1369 = vst.msk [vmem:[%s2 + $0x24] sm:$0xf] %vm26, %v1345
  %1370 = vst.msk [vmem:[%s2 + $0x28] sm:$0xf] %vm26, %v1346
  %1371 = vst.msk [vmem:[%s2 + $0x2c] sm:$0x1] %vm38, %v1347
  %v1372 = vpack.c.bf16 %v1267, %v1262
  %v1373 = vpack.c.bf16 %v1275, %v1270
  %v1374 = vpack.c.bf16 %v1283, %v1278
  %v1375 = vpack.c.bf16 %v1291, %v1286
  %v1376 = vpack.c.bf16 %v1299, %v1294
  %v1377 = vpack.c.bf16 %v1307, %v1302
  %v1384 = vunpack.c.l.b16 %v1372
  %v1385 = vunpack.c.h.b16 %v1372
  %v1386 = vunpack.c.l.b16 %v1373
  %v1387 = vunpack.c.h.b16 %v1373
  %v1388 = vunpack.c.l.b16 %v1374
  %v1389 = vunpack.c.h.b16 %v1374
  %v1390 = vunpack.c.l.b16 %v1375
  %v1391 = vunpack.c.h.b16 %v1375
  %v1392 = vunpack.c.l.b16 %v1376
  %v1393 = vunpack.c.h.b16 %v1376
  %v1394 = vunpack.c.l.b16 %v1377
  %v1395 = vunpack.c.h.b16 %v1377
  %v1396 = vpack.c.b16 %v1384, %v1384
  %v1397 = vpack.c.b16 %v1385, %v1385
  %v1398 = vpack.c.b16 %v1386, %v1386
  %v1399 = vpack.c.b16 %v1387, %v1387
  %v1400 = vpack.c.b16 %v1388, %v1388
  %v1401 = vpack.c.b16 %v1389, %v1389
  %v1402 = vpack.c.b16 %v1390, %v1390
  %v1403 = vpack.c.b16 %v1391, %v1391
  %v1404 = vpack.c.b16 %v1392, %v1392
  %v1405 = vpack.c.b16 %v1393, %v1393
  %v1406 = vpack.c.b16 %v1394, %v1394
  %v1407 = vpack.c.b16 %v1395, %v1395
  %v1408 = vrot.slane %v1396, 5
  %v1409 = vrot.slane %v1408, 4
  %v1410 = vrot.slane %v1397, 5
  %v1411 = vsel %vm250, %v1409, %v1410
  %v1412 = vrot.slane %v1410, 4
  %v1413 = vrot.slane %v1398, 5
  %v1414 = vsel %vm250, %v1412, %v1413
  %v1415 = vrot.slane %v1413, 4
  %v1416 = vrot.slane %v1399, 5
  %v1417 = vsel %vm250, %v1415, %v1416
  %v1418 = vrot.slane %v1416, 4
  %v1419 = vrot.slane %v1400, 5
  %v1420 = vsel %vm250, %v1418, %v1419
  %v1421 = vrot.slane %v1419, 4
  %v1422 = vrot.slane %v1401, 5
  %v1423 = vsel %vm250, %v1421, %v1422
  %v1424 = vrot.slane %v1422, 4
  %v1425 = vrot.slane %v1402, 5
  %v1426 = vsel %vm250, %v1424, %v1425
  %v1427 = vrot.slane %v1425, 4
  %v1428 = vrot.slane %v1403, 5
  %v1429 = vsel %vm250, %v1427, %v1428
  %v1430 = vrot.slane %v1428, 4
  %v1431 = vrot.slane %v1404, 5
  %v1432 = vsel %vm250, %v1430, %v1431
  %v1433 = vrot.slane %v1431, 4
  %v1434 = vrot.slane %v1405, 5
  %v1435 = vsel %vm250, %v1433, %v1434
  %v1436 = vrot.slane %v1434, 4
  %v1437 = vrot.slane %v1406, 5
  %v1438 = vsel %vm250, %v1436, %v1437
  %v1439 = vrot.slane %v1437, 4
  %v1440 = vrot.slane %v1407, 5
  %v1441 = vsel %vm250, %v1439, %v1440
  %v1442 = vrot.slane %v1440, 4
  %s1455 = scalar_lea.vmem %s2, 48
  %1456 = vst.msk [vmem:[%s1455] sm:$0xf] %vm26, %v1411
  %1457 = vst.msk [vmem:[%s1455 + $0x4] sm:$0xf] %vm26, %v1414
  %1458 = vst.msk [vmem:[%s1455 + $0x8] sm:$0xf] %vm26, %v1417
  %1459 = vst.msk [vmem:[%s1455 + $0xc] sm:$0xf] %vm26, %v1420
  %1460 = vst.msk [vmem:[%s1455 + $0x10] sm:$0xf] %vm26, %v1423
  %1461 = vst.msk [vmem:[%s1455 + $0x14] sm:$0xf] %vm26, %v1426
  %1462 = vst.msk [vmem:[%s1455 + $0x18] sm:$0xf] %vm26, %v1429
  %1463 = vst.msk [vmem:[%s1455 + $0x1c] sm:$0xf] %vm26, %v1432
  %1464 = vst.msk [vmem:[%s1455 + $0x20] sm:$0xf] %vm26, %v1435
  %1465 = vst.msk [vmem:[%s1455 + $0x24] sm:$0xf] %vm26, %v1438
  %1466 = vst.msk [vmem:[%s1455 + $0x28] sm:$0xf] %vm26, %v1441
  %1467 = vst.msk [vmem:[%s1455 + $0x2c] sm:$0x1] %vm38, %v1442
  %v1468 = vlaneseq
  %v1469 = vshrl.u32 %v1468, 7
  %v1470 = vadd.s32 %v1469, 8
  %v1471 = vadd.s32 %v1469, 16
  %v1472 = vadd.s32 %v1469, 24
  %v1473 = vadd.s32 %v1469, 32
  %v1474 = vadd.s32 %v1469, 40
  %v1475 = vadd.s32 %v1469, 48
  %v1476 = vadd.s32 %v1469, 56
  %v1477 = vadd.s32 %v1469, 64
  %v1478 = vadd.s32 %v1469, 72
  %v1479 = vadd.s32 %v1469, 80
  %v1480 = vadd.s32 %v1469, 88
  %v1481 = vadd.s32 %v1469, 96
  %v1482 = vadd.s32 %v1469, 104
  %v1483 = vadd.s32 %v1469, 112
  %v1484 = vadd.s32 %v1469, 120
  %v1485 = vadd.s32 %v1469, 128
  %v1486 = vadd.s32 %v1469, 136
  %v1487 = vadd.s32 %v1469, 144
  %v1488 = vadd.s32 %v1469, 152
  %v1489 = vadd.s32 %v1469, 160
  %v1490 = vadd.s32 %v1469, 168
  %v1491 = vadd.s32 %v1469, 176
  %vm1492 = vcmp.lt.s32.totalorder %v1469, 0
  %v1493 = vsub.s32 0, %v1469
  %v1494 = vsel %vm1492, %v1493, %v1469
  %v1495 = vmul.u32.u64.compose %v1494, 3435973837
  %v1496 = vextract.low.u32 %v1495
  %v1497 = vextract.high.u32 %v1495
  %v1498 = vshrl.u32 %v1497, 3
  %v1499 = vmul.u32 %v1498, 10
  %v1500 = vsub.s32 %v1494, %v1499
  %v1501 = vsub.s32 0, %v1500
  %v1502 = vsel %vm1492, %v1501, %v1500
  %vm1503 = vcmp.lt.s32.totalorder %v1470, 0
  %v1504 = vsub.s32 0, %v1470
  %v1505 = vsel %vm1503, %v1504, %v1470
  %v1506 = vmul.u32.u64.compose %v1505, 3435973837
  %v1507 = vextract.low.u32 %v1506
  %v1508 = vextract.high.u32 %v1506
  %v1509 = vshrl.u32 %v1508, 3
  %v1510 = vmul.u32 %v1509, 10
  %v1511 = vsub.s32 %v1505, %v1510
  %v1512 = vsub.s32 0, %v1511
  %v1513 = vsel %vm1503, %v1512, %v1511
  %vm1514 = vcmp.lt.s32.totalorder %v1471, 0
  %v1515 = vsub.s32 0, %v1471
  %v1516 = vsel %vm1514, %v1515, %v1471
  %v1517 = vmul.u32.u64.compose %v1516, 3435973837
  %v1518 = vextract.low.u32 %v1517
  %v1519 = vextract.high.u32 %v1517
  %v1520 = vshrl.u32 %v1519, 3
  %v1521 = vmul.u32 %v1520, 10
  %v1522 = vsub.s32 %v1516, %v1521
  %v1523 = vsub.s32 0, %v1522
  %v1524 = vsel %vm1514, %v1523, %v1522
  %vm1525 = vcmp.lt.s32.totalorder %v1472, 0
  %v1526 = vsub.s32 0, %v1472
  %v1527 = vsel %vm1525, %v1526, %v1472
  %v1528 = vmul.u32.u64.compose %v1527, 3435973837
  %v1529 = vextract.low.u32 %v1528
  %v1530 = vextract.high.u32 %v1528
  %v1531 = vshrl.u32 %v1530, 3
  %v1532 = vmul.u32 %v1531, 10
  %v1533 = vsub.s32 %v1527, %v1532
  %v1534 = vsub.s32 0, %v1533
  %v1535 = vsel %vm1525, %v1534, %v1533
  %vm1536 = vcmp.lt.s32.totalorder %v1473, 0
  %v1537 = vsub.s32 0, %v1473
  %v1538 = vsel %vm1536, %v1537, %v1473
  %v1539 = vmul.u32.u64.compose %v1538, 3435973837
  %v1540 = vextract.low.u32 %v1539
  %v1541 = vextract.high.u32 %v1539
  %v1542 = vshrl.u32 %v1541, 3
  %v1543 = vmul.u32 %v1542, 10
  %v1544 = vsub.s32 %v1538, %v1543
  %v1545 = vsub.s32 0, %v1544
  %v1546 = vsel %vm1536, %v1545, %v1544
  %vm1547 = vcmp.lt.s32.totalorder %v1474, 0
  %v1548 = vsub.s32 0, %v1474
  %v1549 = vsel %vm1547, %v1548, %v1474
  %v1550 = vmul.u32.u64.compose %v1549, 3435973837
  %v1551 = vextract.low.u32 %v1550
  %v1552 = vextract.high.u32 %v1550
  %v1553 = vshrl.u32 %v1552, 3
  %v1554 = vmul.u32 %v1553, 10
  %v1555 = vsub.s32 %v1549, %v1554
  %v1556 = vsub.s32 0, %v1555
  %v1557 = vsel %vm1547, %v1556, %v1555
  %vm1558 = vcmp.lt.s32.totalorder %v1475, 0
  %v1559 = vsub.s32 0, %v1475
  %v1560 = vsel %vm1558, %v1559, %v1475
  %v1561 = vmul.u32.u64.compose %v1560, 3435973837
  %v1562 = vextract.low.u32 %v1561
  %v1563 = vextract.high.u32 %v1561
  %v1564 = vshrl.u32 %v1563, 3
  %v1565 = vmul.u32 %v1564, 10
  %v1566 = vsub.s32 %v1560, %v1565
  %v1567 = vsub.s32 0, %v1566
  %v1568 = vsel %vm1558, %v1567, %v1566
  %vm1569 = vcmp.lt.s32.totalorder %v1476, 0
  %v1570 = vsub.s32 0, %v1476
  %v1571 = vsel %vm1569, %v1570, %v1476
  %v1572 = vmul.u32.u64.compose %v1571, 3435973837
  %v1573 = vextract.low.u32 %v1572
  %v1574 = vextract.high.u32 %v1572
  %v1575 = vshrl.u32 %v1574, 3
  %v1576 = vmul.u32 %v1575, 10
  %v1577 = vsub.s32 %v1571, %v1576
  %v1578 = vsub.s32 0, %v1577
  %v1579 = vsel %vm1569, %v1578, %v1577
  %vm1580 = vcmp.lt.s32.totalorder %v1477, 0
  %v1581 = vsub.s32 0, %v1477
  %v1582 = vsel %vm1580, %v1581, %v1477
  %v1583 = vmul.u32.u64.compose %v1582, 3435973837
  %v1584 = vextract.low.u32 %v1583
  %v1585 = vextract.high.u32 %v1583
  %v1586 = vshrl.u32 %v1585, 3
  %v1587 = vmul.u32 %v1586, 10
  %v1588 = vsub.s32 %v1582, %v1587
  %v1589 = vsub.s32 0, %v1588
  %v1590 = vsel %vm1580, %v1589, %v1588
  %vm1591 = vcmp.lt.s32.totalorder %v1478, 0
  %v1592 = vsub.s32 0, %v1478
  %v1593 = vsel %vm1591, %v1592, %v1478
  %v1594 = vmul.u32.u64.compose %v1593, 3435973837
  %v1595 = vextract.low.u32 %v1594
  %v1596 = vextract.high.u32 %v1594
  %v1597 = vshrl.u32 %v1596, 3
  %v1598 = vmul.u32 %v1597, 10
  %v1599 = vsub.s32 %v1593, %v1598
  %v1600 = vsub.s32 0, %v1599
  %v1601 = vsel %vm1591, %v1600, %v1599
  %vm1602 = vcmp.lt.s32.totalorder %v1479, 0
  %v1603 = vsub.s32 0, %v1479
  %v1604 = vsel %vm1602, %v1603, %v1479
  %v1605 = vmul.u32.u64.compose %v1604, 3435973837
  %v1606 = vextract.low.u32 %v1605
  %v1607 = vextract.high.u32 %v1605
  %v1608 = vshrl.u32 %v1607, 3
  %v1609 = vmul.u32 %v1608, 10
  %v1610 = vsub.s32 %v1604, %v1609
  %v1611 = vsub.s32 0, %v1610
  %v1612 = vsel %vm1602, %v1611, %v1610
  %vm1613 = vcmp.lt.s32.totalorder %v1480, 0
  %v1614 = vsub.s32 0, %v1480
  %v1615 = vsel %vm1613, %v1614, %v1480
  %v1616 = vmul.u32.u64.compose %v1615, 3435973837
  %v1617 = vextract.low.u32 %v1616
  %v1618 = vextract.high.u32 %v1616
  %v1619 = vshrl.u32 %v1618, 3
  %v1620 = vmul.u32 %v1619, 10
  %v1621 = vsub.s32 %v1615, %v1620
  %v1622 = vsub.s32 0, %v1621
  %v1623 = vsel %vm1613, %v1622, %v1621
  %vm1624 = vcmp.lt.s32.totalorder %v1481, 0
  %v1625 = vsub.s32 0, %v1481
  %v1626 = vsel %vm1624, %v1625, %v1481
  %v1627 = vmul.u32.u64.compose %v1626, 3435973837
  %v1628 = vextract.low.u32 %v1627
  %v1629 = vextract.high.u32 %v1627
  %v1630 = vshrl.u32 %v1629, 3
  %v1631 = vmul.u32 %v1630, 10
  %v1632 = vsub.s32 %v1626, %v1631
  %v1633 = vsub.s32 0, %v1632
  %v1634 = vsel %vm1624, %v1633, %v1632
  %vm1635 = vcmp.lt.s32.totalorder %v1482, 0
  %v1636 = vsub.s32 0, %v1482
  %v1637 = vsel %vm1635, %v1636, %v1482
  %v1638 = vmul.u32.u64.compose %v1637, 3435973837
  %v1639 = vextract.low.u32 %v1638
  %v1640 = vextract.high.u32 %v1638
  %v1641 = vshrl.u32 %v1640, 3
  %v1642 = vmul.u32 %v1641, 10
  %v1643 = vsub.s32 %v1637, %v1642
  %v1644 = vsub.s32 0, %v1643
  %v1645 = vsel %vm1635, %v1644, %v1643
  %vm1646 = vcmp.lt.s32.totalorder %v1483, 0
  %v1647 = vsub.s32 0, %v1483
  %v1648 = vsel %vm1646, %v1647, %v1483
  %v1649 = vmul.u32.u64.compose %v1648, 3435973837
  %v1650 = vextract.low.u32 %v1649
  %v1651 = vextract.high.u32 %v1649
  %v1652 = vshrl.u32 %v1651, 3
  %v1653 = vmul.u32 %v1652, 10
  %v1654 = vsub.s32 %v1648, %v1653
  %v1655 = vsub.s32 0, %v1654
  %v1656 = vsel %vm1646, %v1655, %v1654
  %vm1657 = vcmp.lt.s32.totalorder %v1484, 0
  %v1658 = vsub.s32 0, %v1484
  %v1659 = vsel %vm1657, %v1658, %v1484
  %v1660 = vmul.u32.u64.compose %v1659, 3435973837
  %v1661 = vextract.low.u32 %v1660
  %v1662 = vextract.high.u32 %v1660
  %v1663 = vshrl.u32 %v1662, 3
  %v1664 = vmul.u32 %v1663, 10
  %v1665 = vsub.s32 %v1659, %v1664
  %v1666 = vsub.s32 0, %v1665
  %v1667 = vsel %vm1657, %v1666, %v1665
  %vm1668 = vcmp.lt.s32.totalorder %v1485, 0
  %v1669 = vsub.s32 0, %v1485
  %v1670 = vsel %vm1668, %v1669, %v1485
  %v1671 = vmul.u32.u64.compose %v1670, 3435973837
  %v1672 = vextract.low.u32 %v1671
  %v1673 = vextract.high.u32 %v1671
  %v1674 = vshrl.u32 %v1673, 3
  %v1675 = vmul.u32 %v1674, 10
  %v1676 = vsub.s32 %v1670, %v1675
  %v1677 = vsub.s32 0, %v1676
  %v1678 = vsel %vm1668, %v1677, %v1676
  %vm1679 = vcmp.lt.s32.totalorder %v1486, 0
  %v1680 = vsub.s32 0, %v1486
  %v1681 = vsel %vm1679, %v1680, %v1486
  %v1682 = vmul.u32.u64.compose %v1681, 3435973837
  %v1683 = vextract.low.u32 %v1682
  %v1684 = vextract.high.u32 %v1682
  %v1685 = vshrl.u32 %v1684, 3
  %v1686 = vmul.u32 %v1685, 10
  %v1687 = vsub.s32 %v1681, %v1686
  %v1688 = vsub.s32 0, %v1687
  %v1689 = vsel %vm1679, %v1688, %v1687
  %vm1690 = vcmp.lt.s32.totalorder %v1487, 0
  %v1691 = vsub.s32 0, %v1487
  %v1692 = vsel %vm1690, %v1691, %v1487
  %v1693 = vmul.u32.u64.compose %v1692, 3435973837
  %v1694 = vextract.low.u32 %v1693
  %v1695 = vextract.high.u32 %v1693
  %v1696 = vshrl.u32 %v1695, 3
  %v1697 = vmul.u32 %v1696, 10
  %v1698 = vsub.s32 %v1692, %v1697
  %v1699 = vsub.s32 0, %v1698
  %v1700 = vsel %vm1690, %v1699, %v1698
  %vm1701 = vcmp.lt.s32.totalorder %v1488, 0
  %v1702 = vsub.s32 0, %v1488
  %v1703 = vsel %vm1701, %v1702, %v1488
  %v1704 = vmul.u32.u64.compose %v1703, 3435973837
  %v1705 = vextract.low.u32 %v1704
  %v1706 = vextract.high.u32 %v1704
  %v1707 = vshrl.u32 %v1706, 3
  %v1708 = vmul.u32 %v1707, 10
  %v1709 = vsub.s32 %v1703, %v1708
  %v1710 = vsub.s32 0, %v1709
  %v1711 = vsel %vm1701, %v1710, %v1709
  %vm1712 = vcmp.lt.s32.totalorder %v1489, 0
  %v1713 = vsub.s32 0, %v1489
  %v1714 = vsel %vm1712, %v1713, %v1489
  %v1715 = vmul.u32.u64.compose %v1714, 3435973837
  %v1716 = vextract.low.u32 %v1715
  %v1717 = vextract.high.u32 %v1715
  %v1718 = vshrl.u32 %v1717, 3
  %v1719 = vmul.u32 %v1718, 10
  %v1720 = vsub.s32 %v1714, %v1719
  %v1721 = vsub.s32 0, %v1720
  %v1722 = vsel %vm1712, %v1721, %v1720
  %vm1723 = vcmp.lt.s32.totalorder %v1490, 0
  %v1724 = vsub.s32 0, %v1490
  %v1725 = vsel %vm1723, %v1724, %v1490
  %v1726 = vmul.u32.u64.compose %v1725, 3435973837
  %v1727 = vextract.low.u32 %v1726
  %v1728 = vextract.high.u32 %v1726
  %v1729 = vshrl.u32 %v1728, 3
  %v1730 = vmul.u32 %v1729, 10
  %v1731 = vsub.s32 %v1725, %v1730
  %v1732 = vsub.s32 0, %v1731
  %v1733 = vsel %vm1723, %v1732, %v1731
  %vm1734 = vcmp.lt.s32.totalorder %v1491, 0
  %v1735 = vsub.s32 0, %v1491
  %v1736 = vsel %vm1734, %v1735, %v1491
  %v1737 = vmul.u32.u64.compose %v1736, 3435973837
  %v1738 = vextract.low.u32 %v1737
  %v1739 = vextract.high.u32 %v1737
  %v1740 = vshrl.u32 %v1739, 3
  %v1741 = vmul.u32 %v1740, 10
  %v1742 = vsub.s32 %v1736, %v1741
  %v1743 = vsub.s32 0, %v1742
  %v1744 = vsel %vm1734, %v1743, %v1742
  %vm1745 = vcmp.ne.s32.totalorder %v1502, 0
  %vm1746 = vcmp.ne.s32.totalorder %v1513, 0
  %vm1747 = vcmp.ne.s32.totalorder %v1524, 0
  %vm1748 = vcmp.ne.s32.totalorder %v1535, 0
  %vm1749 = vcmp.ne.s32.totalorder %v1546, 0
  %vm1750 = vcmp.ne.s32.totalorder %v1557, 0
  %vm1751 = vcmp.ne.s32.totalorder %v1568, 0
  %vm1752 = vcmp.ne.s32.totalorder %v1579, 0
  %vm1753 = vcmp.ne.s32.totalorder %v1590, 0
  %vm1754 = vcmp.ne.s32.totalorder %v1601, 0
  %vm1755 = vcmp.ne.s32.totalorder %v1612, 0
  %vm1756 = vcmp.ne.s32.totalorder %v1623, 0
  %vm1757 = vcmp.ne.s32.totalorder %v1634, 0
  %vm1758 = vcmp.ne.s32.totalorder %v1645, 0
  %vm1759 = vcmp.ne.s32.totalorder %v1656, 0
  %vm1760 = vcmp.ne.s32.totalorder %v1667, 0
  %vm1761 = vcmp.ne.s32.totalorder %v1678, 0
  %vm1762 = vcmp.ne.s32.totalorder %v1689, 0
  %vm1763 = vcmp.ne.s32.totalorder %v1700, 0
  %vm1764 = vcmp.ne.s32.totalorder %v1711, 0
  %vm1765 = vcmp.ne.s32.totalorder %v1722, 0
  %vm1766 = vcmp.ne.s32.totalorder %v1733, 0
  %vm1767 = vcmp.ne.s32.totalorder %v1744, 0
  %vm1768 = vcmp.lt.s32.totalorder %v1502, 0
  %vm1769 = vcmp.lt.s32.totalorder %v1513, 0
  %vm1770 = vcmp.lt.s32.totalorder %v1524, 0
  %vm1771 = vcmp.lt.s32.totalorder %v1535, 0
  %vm1772 = vcmp.lt.s32.totalorder %v1546, 0
  %vm1773 = vcmp.lt.s32.totalorder %v1557, 0
  %vm1774 = vcmp.lt.s32.totalorder %v1568, 0
  %vm1775 = vcmp.lt.s32.totalorder %v1579, 0
  %vm1776 = vcmp.lt.s32.totalorder %v1590, 0
  %vm1777 = vcmp.lt.s32.totalorder %v1601, 0
  %vm1778 = vcmp.lt.s32.totalorder %v1612, 0
  %vm1779 = vcmp.lt.s32.totalorder %v1623, 0
  %vm1780 = vcmp.lt.s32.totalorder %v1634, 0
  %vm1781 = vcmp.lt.s32.totalorder %v1645, 0
  %vm1782 = vcmp.lt.s32.totalorder %v1656, 0
  %vm1783 = vcmp.lt.s32.totalorder %v1667, 0
  %vm1784 = vcmp.lt.s32.totalorder %v1678, 0
  %vm1785 = vcmp.lt.s32.totalorder %v1689, 0
  %vm1786 = vcmp.lt.s32.totalorder %v1700, 0
  %vm1787 = vcmp.lt.s32.totalorder %v1711, 0
  %vm1788 = vcmp.lt.s32.totalorder %v1722, 0
  %vm1789 = vcmp.lt.s32.totalorder %v1733, 0
  %vm1790 = vcmp.lt.s32.totalorder %v1744, 0
  %vm1791 = vmand %vm1768, %vm1745
  %vm1792 = vmand %vm1769, %vm1746
  %vm1793 = vmand %vm1770, %vm1747
  %vm1794 = vmand %vm1771, %vm1748
  %vm1795 = vmand %vm1772, %vm1749
  %vm1796 = vmand %vm1773, %vm1750
  %vm1797 = vmand %vm1774, %vm1751
  %vm1798 = vmand %vm1775, %vm1752
  %vm1799 = vmand %vm1776, %vm1753
  %vm1800 = vmand %vm1777, %vm1754
  %vm1801 = vmand %vm1778, %vm1755
  %vm1802 = vmand %vm1779, %vm1756
  %vm1803 = vmand %vm1780, %vm1757
  %vm1804 = vmand %vm1781, %vm1758
  %vm1805 = vmand %vm1782, %vm1759
  %vm1806 = vmand %vm1783, %vm1760
  %vm1807 = vmand %vm1784, %vm1761
  %vm1808 = vmand %vm1785, %vm1762
  %vm1809 = vmand %vm1786, %vm1763
  %vm1810 = vmand %vm1787, %vm1764
  %vm1811 = vmand %vm1788, %vm1765
  %vm1812 = vmand %vm1789, %vm1766
  %vm1813 = vmand %vm1790, %vm1767
  %v1814 = vadd.s32 %v1502, 10
  %v1815 = vadd.s32 %v1513, 10
  %v1816 = vadd.s32 %v1524, 10
  %v1817 = vadd.s32 %v1535, 10
  %v1818 = vadd.s32 %v1546, 10
  %v1819 = vadd.s32 %v1557, 10
  %v1820 = vadd.s32 %v1568, 10
  %v1821 = vadd.s32 %v1579, 10
  %v1822 = vadd.s32 %v1590, 10
  %v1823 = vadd.s32 %v1601, 10
  %v1824 = vadd.s32 %v1612, 10
  %v1825 = vadd.s32 %v1623, 10
  %v1826 = vadd.s32 %v1634, 10
  %v1827 = vadd.s32 %v1645, 10
  %v1828 = vadd.s32 %v1656, 10
  %v1829 = vadd.s32 %v1667, 10
  %v1830 = vadd.s32 %v1678, 10
  %v1831 = vadd.s32 %v1689, 10
  %v1832 = vadd.s32 %v1700, 10
  %v1833 = vadd.s32 %v1711, 10
  %v1834 = vadd.s32 %v1722, 10
  %v1835 = vadd.s32 %v1733, 10
  %v1836 = vadd.s32 %v1744, 10
  %v1837 = vsel %vm1791, %v1814, %v1502
  %v1838 = vsel %vm1792, %v1815, %v1513
  %v1839 = vsel %vm1793, %v1816, %v1524
  %v1840 = vsel %vm1794, %v1817, %v1535
  %v1841 = vsel %vm1795, %v1818, %v1546
  %v1842 = vsel %vm1796, %v1819, %v1557
  %v1843 = vsel %vm1797, %v1820, %v1568
  %v1844 = vsel %vm1798, %v1821, %v1579
  %v1845 = vsel %vm1799, %v1822, %v1590
  %v1846 = vsel %vm1800, %v1823, %v1601
  %v1847 = vsel %vm1801, %v1824, %v1612
  %v1848 = vsel %vm1802, %v1825, %v1623
  %v1849 = vsel %vm1803, %v1826, %v1634
  %v1850 = vsel %vm1804, %v1827, %v1645
  %v1851 = vsel %vm1805, %v1828, %v1656
  %v1852 = vsel %vm1806, %v1829, %v1667
  %v1853 = vsel %vm1807, %v1830, %v1678
  %v1854 = vsel %vm1808, %v1831, %v1689
  %v1855 = vsel %vm1809, %v1832, %v1700
  %v1856 = vsel %vm1810, %v1833, %v1711
  %v1857 = vsel %vm1811, %v1834, %v1722
  %v1858 = vsel %vm1812, %v1835, %v1733
  %v1859 = vsel %vm1813, %v1836, %v1744
  %vm1860 = vcmp.lt.s32.totalorder %v1837, 9
  %vm1861 = vcmp.lt.s32.totalorder %v1838, 9
  %vm1862 = vcmp.lt.s32.totalorder %v1839, 9
  %vm1863 = vcmp.lt.s32.totalorder %v1840, 9
  %vm1864 = vcmp.lt.s32.totalorder %v1841, 9
  %vm1865 = vcmp.lt.s32.totalorder %v1842, 9
  %vm1866 = vcmp.lt.s32.totalorder %v1843, 9
  %vm1867 = vcmp.lt.s32.totalorder %v1844, 9
  %vm1868 = vcmp.lt.s32.totalorder %v1845, 9
  %vm1869 = vcmp.lt.s32.totalorder %v1846, 9
  %vm1870 = vcmp.lt.s32.totalorder %v1847, 9
  %vm1871 = vcmp.lt.s32.totalorder %v1848, 9
  %vm1872 = vcmp.lt.s32.totalorder %v1849, 9
  %vm1873 = vcmp.lt.s32.totalorder %v1850, 9
  %vm1874 = vcmp.lt.s32.totalorder %v1851, 9
  %vm1875 = vcmp.lt.s32.totalorder %v1852, 9
  %vm1876 = vcmp.lt.s32.totalorder %v1853, 9
  %vm1877 = vcmp.lt.s32.totalorder %v1854, 9
  %vm1878 = vcmp.lt.s32.totalorder %v1855, 9
  %vm1879 = vcmp.lt.s32.totalorder %v1856, 9
  %vm1880 = vcmp.lt.s32.totalorder %v1857, 9
  %vm1881 = vcmp.lt.s32.totalorder %v1858, 9
  %vm1882 = vcmp.lt.s32.totalorder %v1859, 9
  %v1883 = vsel %vm1860, 1, 0
  %v1884 = vsel %vm1861, 1, 0
  %v1885 = vsel %vm1862, 1, 0
  %v1886 = vsel %vm1863, 1, 0
  %v1887 = vsel %vm1864, 1, 0
  %v1888 = vsel %vm1865, 1, 0
  %v1889 = vsel %vm1866, 1, 0
  %v1890 = vsel %vm1867, 1, 0
  %v1891 = vsel %vm1868, 1, 0
  %v1892 = vsel %vm1869, 1, 0
  %v1893 = vsel %vm1870, 1, 0
  %v1894 = vsel %vm1871, 1, 0
  %v1895 = vsel %vm1872, 1, 0
  %v1896 = vsel %vm1873, 1, 0
  %v1897 = vsel %vm1874, 1, 0
  %v1898 = vsel %vm1875, 1, 0
  %v1899 = vsel %vm1876, 1, 0
  %v1900 = vsel %vm1877, 1, 0
  %v1901 = vsel %vm1878, 1, 0
  %v1902 = vsel %vm1879, 1, 0
  %v1903 = vsel %vm1880, 1, 0
  %v1904 = vsel %vm1881, 1, 0
  %v1905 = vsel %vm1882, 1, 0
  %vm1906 = vcmp.eq.s32.totalorder %v1883, 1
  %vm1907 = vcmp.eq.s32.totalorder %v1884, 1
  %vm1908 = vcmp.eq.s32.totalorder %v1885, 1
  %vm1909 = vcmp.eq.s32.totalorder %v1886, 1
  %vm1910 = vcmp.eq.s32.totalorder %v1887, 1
  %vm1911 = vcmp.eq.s32.totalorder %v1888, 1
  %vm1912 = vcmp.eq.s32.totalorder %v1889, 1
  %vm1913 = vcmp.eq.s32.totalorder %v1890, 1
  %vm1914 = vcmp.eq.s32.totalorder %v1891, 1
  %vm1915 = vcmp.eq.s32.totalorder %v1892, 1
  %vm1916 = vcmp.eq.s32.totalorder %v1893, 1
  %vm1917 = vcmp.eq.s32.totalorder %v1894, 1
  %vm1918 = vcmp.eq.s32.totalorder %v1895, 1
  %vm1919 = vcmp.eq.s32.totalorder %v1896, 1
  %vm1920 = vcmp.eq.s32.totalorder %v1897, 1
  %vm1921 = vcmp.eq.s32.totalorder %v1898, 1
  %vm1922 = vcmp.eq.s32.totalorder %v1899, 1
  %vm1923 = vcmp.eq.s32.totalorder %v1900, 1
  %vm1924 = vcmp.eq.s32.totalorder %v1901, 1
  %vm1925 = vcmp.eq.s32.totalorder %v1902, 1
  %vm1926 = vcmp.eq.s32.totalorder %v1903, 1
  %vm1927 = vcmp.eq.s32.totalorder %v1904, 1
  %vm1928 = vcmp.eq.s32.totalorder %v1905, 1
  %v1929 = vsel %vm1906, %v1219, 0.0
  %v1930 = vsel %vm1907, %v1222, 0.0
  %v1931 = vsel %vm1908, %v1227, 0.0
  %v1932 = vsel %vm1909, %v1230, 0.0
  %v1933 = vsel %vm1910, %v1235, 0.0
  %v1934 = vsel %vm1911, %v1238, 0.0
  %v1935 = vsel %vm1912, %v1243, 0.0
  %v1936 = vsel %vm1913, %v1246, 0.0
  %v1937 = vsel %vm1914, %v1251, 0.0
  %v1938 = vsel %vm1915, %v1254, 0.0
  %v1939 = vsel %vm1916, %v1259, 0.0
  %v1940 = vsel %vm1917, %v1262, 0.0
  %v1941 = vsel %vm1918, %v1267, 0.0
  %v1942 = vsel %vm1919, %v1270, 0.0
  %v1943 = vsel %vm1920, %v1275, 0.0
  %v1944 = vsel %vm1921, %v1278, 0.0
  %v1945 = vsel %vm1922, %v1283, 0.0
  %v1946 = vsel %vm1923, %v1286, 0.0
  %v1947 = vsel %vm1924, %v1291, 0.0
  %v1948 = vsel %vm1925, %v1294, 0.0
  %v1949 = vsel %vm1926, %v1299, 0.0
  %v1950 = vsel %vm1927, %v1302, 0.0
  %v1951 = vsel %vm1928, %v1307, 0.0
  %v1952 = vadd.f32 %v1929, %v1930
  %v1953 = vadd.f32 %v1952, %v1931
  %v1954 = vadd.f32 %v1953, %v1932
  %v1955 = vadd.f32 %v1954, %v1933
  %v1956 = vadd.f32 %v1955, %v1934
  %v1957 = vadd.f32 %v1956, %v1935
  %v1958 = vadd.f32 %v1957, %v1936
  %v1959 = vadd.f32 %v1958, %v1937
  %v1960 = vadd.f32 %v1959, %v1938
  %v1961 = vadd.f32 %v1960, %v1939
  %v1962 = vadd.f32 %v1961, %v1940
  %v1963 = vadd.f32 %v1962, %v1941
  %v1964 = vadd.f32 %v1963, %v1942
  %v1965 = vadd.f32 %v1964, %v1943
  %v1966 = vadd.f32 %v1965, %v1944
  %v1967 = vadd.f32 %v1966, %v1945
  %v1968 = vadd.f32 %v1967, %v1946
  %v1969 = vadd.f32 %v1968, %v1947
  %v1970 = vadd.f32 %v1969, %v1948
  %v1971 = vadd.f32 %v1970, %v1949
  %v1972 = vadd.f32 %v1971, %v1950
  %vm1973 = vcmask 1043456
  %v1974 = vsel %vm1973, %v1951, 0.0
  %v1975 = vadd.f32 %v1972, %v1974
  %v1976 = vrot.slane %v1975, 4
  %v1977 = vadd.f32 %v1975, %v1976
  %v1978 = vrot.slane %v1977, 2
  %v1979 = vadd.f32 %v1977, %v1978
  %v1980 = vrot.slane %v1979, 1
  %v1981 = vadd.f32 %v1979, %v1980
  %1982 = vst [vmem:[%s3] sm:$0x1] %v1981
  %v1983 = vmul.f32 %v1929, %v1929
  %v1984 = vmul.f32 %v1930, %v1930
  %v1985 = vmul.f32 %v1931, %v1931
  %v1986 = vmul.f32 %v1932, %v1932
  %v1987 = vmul.f32 %v1933, %v1933
  %v1988 = vmul.f32 %v1934, %v1934
  %v1989 = vmul.f32 %v1935, %v1935
  %v1990 = vmul.f32 %v1936, %v1936
  %v1991 = vmul.f32 %v1937, %v1937
  %v1992 = vmul.f32 %v1938, %v1938
  %v1993 = vmul.f32 %v1939, %v1939
  %v1994 = vmul.f32 %v1940, %v1940
  %v1995 = vmul.f32 %v1941, %v1941
  %v1996 = vmul.f32 %v1942, %v1942
  %v1997 = vmul.f32 %v1943, %v1943
  %v1998 = vmul.f32 %v1944, %v1944
  %v1999 = vmul.f32 %v1945, %v1945
  %v2000 = vmul.f32 %v1946, %v1946
  %v2001 = vmul.f32 %v1947, %v1947
  %v2002 = vmul.f32 %v1948, %v1948
  %v2003 = vmul.f32 %v1949, %v1949
  %v2004 = vmul.f32 %v1950, %v1950
  %v2005 = vmul.f32 %v1951, %v1951
  %v2006 = vadd.f32 %v1983, %v1984
  %v2007 = vadd.f32 %v2006, %v1985
  %v2008 = vadd.f32 %v2007, %v1986
  %v2009 = vadd.f32 %v2008, %v1987
  %v2010 = vadd.f32 %v2009, %v1988
  %v2011 = vadd.f32 %v2010, %v1989
  %v2012 = vadd.f32 %v2011, %v1990
  %v2013 = vadd.f32 %v2012, %v1991
  %v2014 = vadd.f32 %v2013, %v1992
  %v2015 = vadd.f32 %v2014, %v1993
  %v2016 = vadd.f32 %v2015, %v1994
  %v2017 = vadd.f32 %v2016, %v1995
  %v2018 = vadd.f32 %v2017, %v1996
  %v2019 = vadd.f32 %v2018, %v1997
  %v2020 = vadd.f32 %v2019, %v1998
  %v2021 = vadd.f32 %v2020, %v1999
  %v2022 = vadd.f32 %v2021, %v2000
  %v2023 = vadd.f32 %v2022, %v2001
  %v2024 = vadd.f32 %v2023, %v2002
  %v2025 = vadd.f32 %v2024, %v2003
  %v2026 = vadd.f32 %v2025, %v2004
  %v2027 = vsel %vm1973, %v2005, 0.0
  %v2028 = vadd.f32 %v2026, %v2027
  %v2029 = vrot.slane %v2028, 4
  %v2030 = vadd.f32 %v2028, %v2029
  %v2031 = vrot.slane %v2030, 2
  %v2032 = vadd.f32 %v2030, %v2031
  %v2033 = vrot.slane %v2032, 1
  %v2034 = vadd.f32 %v2032, %v2033
  %2035 = vst [vmem:[%s3 + $0x1] sm:$0x1] %v2034
  // Predicated region
  $region10: #{encoder_forward.3} parent=0 // pred_check
    _
  $region11: #{encoder_forward.3} parent=0 // pred_check_branch
    %2037 = sbr.rel (0) target = $region13
  $region12: #{encoder_forward.3} parent=0 // pred_region
    _
  $region13: #{encoder_forward.3} parent=0 // pred_fallthru
    _
  // Predicated region
  $region14: #{encoder_forward.3} parent=0 // pred_check
    _
  $region15: #{encoder_forward.3} parent=0 // pred_check_branch
    %2039 = sbr.rel (0) target = $region17
  $region16: #{encoder_forward.3} parent=0 // pred_region
    _
  $region17: #{encoder_forward.3} parent=0 // pred_fallthru
    _
  // Predicated region
  $region18: #{encoder_forward.3} parent=0 // pred_check
    _
  $region19: #{encoder_forward.3} parent=0 // pred_check_branch
    %2041 = sbr.rel (0) target = $region21
  $region20: #{encoder_forward.3} parent=0 // pred_region
    _
  $region21: #{encoder_forward.3} parent=0 // pred_fallthru
    _
  // Predicated region
  $region22: #{encoder_forward.3} parent=0 // pred_check
    _
  $region23: #{encoder_forward.3} parent=0 // pred_check_branch
    %2043 = sbr.rel (0) target = $region25
  $region24: #{encoder_forward.3} parent=0 // pred_region
    _
  $region25: #{encoder_forward.3} parent=0 // pred_fallthru
    _

// kernel: encoder_forward.5
$region0: #{encoder_forward.5}
  #allocation0 [shape = 'u32[]', space=smem, size = 0x4, offset = 0x4, fixed_abs, tag = 'smem constant byte address 0x4 - core index']
  #allocation1 [shape = 'u32[144,128]{1,0:T(1,128)}', space=vmem, size = 0x12000, scoped, tag = 'internal scratch']
  #allocation2 [shape = 'bf16[4,512]{1,0:T(4,128)(2,1)}', space=vmem, size = 0x1000, scoped, tag = 'scratch operand']
  %s0 = inlined_call_operand.vmem [shape: bf16[2,8,128], index: 0, kind: input, shape index: {}]
  %s1 = inlined_call_operand.vmem [shape: f32[1,128], index: 1, kind: input, shape index: {}]
  %s2 = inlined_call_operand.vmem [shape: f32[1,128], index: 2, kind: input, shape index: {}]
  %s3 = inlined_call_operand.vmem [shape: bf16[512,128], index: 3, kind: input, shape index: {}]
  %s4 = inlined_call_operand.vmem [shape: f32[1,128], index: 4, kind: input, shape index: {}]
  %s5 = inlined_call_operand.vmem [shape: f32[2,2,32], index: 5, kind: output, shape index: {}]
  %s6 = sld [smem:[#allocation0]]
  $region30: #{encoder_forward.5} parent=0
    _
  %s8 = ssub.s32 1, %s6
  %s9 = scalar_select 0, %s8, %s6
  // Predicated region
  $region2: #{encoder_forward.5} parent=0 // pred_check
    _
  $region3: #{encoder_forward.5} parent=0 // pred_check_branch
    %11 = sbr.rel (0) target = $region5
  $region4: #{encoder_forward.5} parent=0 // pred_region
    _
  $region5: #{encoder_forward.5} parent=0 // pred_fallthru
    _
  // Predicated region
  $region6: #{encoder_forward.5} parent=0 // pred_check
    _
  $region7: #{encoder_forward.5} parent=0 // pred_check_branch
    %13 = sbr.rel (0) target = $region9
  $region8: #{encoder_forward.5} parent=0 // pred_region
    _
  $region9: #{encoder_forward.5} parent=0 // pred_fallthru
    _
  // Predicated region
  $region10: #{encoder_forward.5} parent=0 // pred_check
    _
  $region11: #{encoder_forward.5} parent=0 // pred_check_branch
    %15 = sbr.rel (0) target = $region13
  $region12: #{encoder_forward.5} parent=0 // pred_region
    _
  $region13: #{encoder_forward.5} parent=0 // pred_fallthru
    _
  // Predicated region
  $region14: #{encoder_forward.5} parent=0 // pred_check
    _
  $region15: #{encoder_forward.5} parent=0 // pred_check_branch
    %17 = sbr.rel (0) target = $region17
  $region16: #{encoder_forward.5} parent=0 // pred_region
    _
  $region17: #{encoder_forward.5} parent=0 // pred_fallthru
    _
  // Predicated region
  $region18: #{encoder_forward.5} parent=0 // pred_check
    _
  $region19: #{encoder_forward.5} parent=0 // pred_check_branch
    %19 = sbr.rel (0) target = $region21
  $region20: #{encoder_forward.5} parent=0 // pred_region
    _
  $region21: #{encoder_forward.5} parent=0 // pred_fallthru
    _
  %v21 = vld [vmem:[%s0] sm:$0xf]
  %v22 = vld [vmem:[%s0 + $0x4] sm:$0xf]
  %v23 = vunpack.c.l.bf16 %v21
  %v24 = vunpack.c.l.bf16 %v22
  %v25 = vld [vmem:[%s1] sm:$0x1]
  %v27 = vlaneseq
  %v28 = vshrl.u32 %v27, 7
  %v29 = vsub.s32 0, %v28
  %v30 = vrot.slane %v25, %v29
  %v32 = vmul.f32 %v23, %v30
  %v33 = vmul.f32 %v24, %v30
  %v34 = vld [vmem:[%s2] sm:$0x1]
  %v36 = vlaneseq
  %v37 = vshrl.u32 %v36, 7
  %v38 = vsub.s32 0, %v37
  %v39 = vrot.slane %v34, %v38
  %v41 = vadd.f32 %v32, %v39
  %v42 = vadd.f32 %v33, %v39
  %vm43 = vcmp.ge.f32.partialorder %v41, 0.0
  %vm44 = vcmp.ge.f32.partialorder %v42, 0.0
  %v45 = vmul.f32 %v41, 0.2
  %v46 = vmul.f32 %v42, 0.2
  %v47 = vsel %vm43, %v41, %v45
  %v48 = vsel %vm44, %v42, %v46
  %v49 = vpack.c.bf16 %v47, %v47
  %v50 = vpack.c.bf16 %v48, %v48
  %51 = vst [vmem:[#allocation2] sm:$0x1] %v49
  %v54 = vunpack.c.l.s4 1983009808
  %v55 = vunpack.c.0.s8 %v54
  %v56 = vlaneseq
  %v57 = vshrl.u32 %v56, 7
  %v58 = vsub.s32 %v55, %v57
  %v59 = vrot.slane %v49, %v58
  %v61 = vshrl.u32 %v59, 16
  %v63 = vrot.slane %v61, 6
  %v64 = vshll.u32 %v59, 16
  %v66 = vrot.slane %v64, 7
  %v67 = vor.u32 %v63, %v66
  %v68 = vrot.slane %v67, 2
  %70 = vst [vmem:[#allocation2 + $0x2] sm:$0x1] %v68
  %v71 = vrot.slane %v59, 7
  %v72 = vrot.slane %v71, 2
  %74 = vst [vmem:[#allocation2 + $0x4] sm:$0x1] %v72
  %v75 = vcombine.high %v59, %v59
  %vm76 = vsmask.f32 256
  %vm77 = vsmask.f32 2312
  %vm78 = vmor %vm76, %vm77
  %vm79 = vsmask.f32 4368
  %vm80 = vmor %vm78, %vm79
  %vm81 = vsmask.f32 6424
  %vm82 = vmor %vm80, %vm81
  %v83 = vrot.slane %v61, 7
  %v84 = vrot.slane %v83, 2
  %v86 = vshll.u32 %v75, 16
  %v88 = vsel %vm82, %v84, %v86
  %90 = vst [vmem:[#allocation2 + $0x6] sm:$0x1] %v88
  %v93 = vunpack.c.l.s4 1983009808
  %v94 = vunpack.c.0.s8 %v93
  %v95 = vlaneseq
  %v96 = vshrl.u32 %v95, 7
  %v97 = vsub.s32 %v94, %v96
  %v98 = vrot.slane %v50, %v97
  %v99 = vrot.slane %v98, 7
  %101 = vst [vmem:[#allocation2] sm:$0x2] %v99
  %v103 = vshrl.u32 %v98, 16
  %v105 = vrot.slane %v103, 7
  %v106 = vshll.u32 %v98, 16
  %v108 = vor.u32 %v105, %v106
  %110 = vst [vmem:[#allocation2 + $0x2] sm:$0x2] %v108
  %111 = vst [vmem:[#allocation2 + $0x4] sm:$0x2] %v50
  %v112 = vcombine.high %v98, %v98
  %vm113 = vsmask.f32 1280
  %vm114 = vsmask.f32 3336
  %vm115 = vmor %vm113, %vm114
  %vm116 = vsmask.f32 5392
  %vm117 = vmor %vm115, %vm116
  %vm118 = vsmask.f32 7448
  %vm119 = vmor %vm117, %vm118
  %v120 = vrot.slane %v103, 6
  %v121 = vrot.slane %v120, 2
  %v123 = vshll.u32 %v112, 16
  %v125 = vrot.slane %v123, 7
  %v126 = vsel %vm119, %v121, %v125
  %128 = vst [vmem:[#allocation2 + $0x6] sm:$0x2] %v126
  %v129 = vld [vmem:[#allocation2] sm:$0xff]
  %v130 = vld [vmem:[%s3] sm:$0xf]
  %v131 = vld [vmem:[%s3 + $0x4] sm:$0xf]
  %v132 = vld [vmem:[%s3 + $0x8] sm:$0xf]
  %v133 = vld [vmem:[%s3 + $0xc] sm:$0xf]
  %v134 = vld [vmem:[%s3 + $0x10] sm:$0xf]
  %v135 = vld [vmem:[%s3 + $0x14] sm:$0xf]
  %v136 = vld [vmem:[%s3 + $0x18] sm:$0xf]
  %v137 = vld [vmem:[%s3 + $0x1c] sm:$0xf]
  %v138 = vld [vmem:[%s3 + $0x20] sm:$0xf]
  %v139 = vld [vmem:[%s3 + $0x24] sm:$0xf]
  %v140 = vld [vmem:[%s3 + $0x28] sm:$0xf]
  %v141 = vld [vmem:[%s3 + $0x2c] sm:$0xf]
  %v142 = vld [vmem:[%s3 + $0x30] sm:$0xf]
  %v143 = vld [vmem:[%s3 + $0x34] sm:$0xf]
  %v144 = vld [vmem:[%s3 + $0x38] sm:$0xf]
  %v145 = vld [vmem:[%s3 + $0x3c] sm:$0xf]
  %v146 = vld [vmem:[%s3 + $0x40] sm:$0xf]
  %v147 = vld [vmem:[%s3 + $0x44] sm:$0xf]
  %v148 = vld [vmem:[%s3 + $0x48] sm:$0xf]
  %v149 = vld [vmem:[%s3 + $0x4c] sm:$0xf]
  %v150 = vld [vmem:[%s3 + $0x50] sm:$0xf]
  %v151 = vld [vmem:[%s3 + $0x54] sm:$0xf]
  %v152 = vld [vmem:[%s3 + $0x58] sm:$0xf]
  %v153 = vld [vmem:[%s3 + $0x5c] sm:$0xf]
  %v154 = vld [vmem:[%s3 + $0x60] sm:$0xf]
  %v155 = vld [vmem:[%s3 + $0x64] sm:$0xf]
  %v156 = vld [vmem:[%s3 + $0x68] sm:$0xf]
  %v157 = vld [vmem:[%s3 + $0x6c] sm:$0xf]
  %v158 = vld [vmem:[%s3 + $0x70] sm:$0xf]
  %v159 = vld [vmem:[%s3 + $0x74] sm:$0xf]
  %v160 = vld [vmem:[%s3 + $0x78] sm:$0xf]
  %v161 = vld [vmem:[%s3 + $0x7c] sm:$0xf]
  %v162 = vld [vmem:[%s3 + $0x80] sm:$0xf]
  %v163 = vld [vmem:[%s3 + $0x84] sm:$0xf]
  %v164 = vld [vmem:[%s3 + $0x88] sm:$0xf]
  %v165 = vld [vmem:[%s3 + $0x8c] sm:$0xf]
  %v166 = vld [vmem:[%s3 + $0x90] sm:$0xf]
  %v167 = vld [vmem:[%s3 + $0x94] sm:$0xf]
  %v168 = vld [vmem:[%s3 + $0x98] sm:$0xf]
  %v169 = vld [vmem:[%s3 + $0x9c] sm:$0xf]
  %v170 = vld [vmem:[%s3 + $0xa0] sm:$0xf]
  %v171 = vld [vmem:[%s3 + $0xa4] sm:$0xf]
  %v172 = vld [vmem:[%s3 + $0xa8] sm:$0xf]
  %v173 = vld [vmem:[%s3 + $0xac] sm:$0xf]
  %v174 = vld [vmem:[%s3 + $0xb0] sm:$0xf]
  %v175 = vld [vmem:[%s3 + $0xb4] sm:$0xf]
  %v176 = vld [vmem:[%s3 + $0xb8] sm:$0xf]
  %v177 = vld [vmem:[%s3 + $0xbc] sm:$0xf]
  %v178 = vld [vmem:[%s3 + $0xc0] sm:$0xf]
  %v179 = vld [vmem:[%s3 + $0xc4] sm:$0xf]
  %v180 = vld [vmem:[%s3 + $0xc8] sm:$0xf]
  %v181 = vld [vmem:[%s3 + $0xcc] sm:$0xf]
  %v182 = vld [vmem:[%s3 + $0xd0] sm:$0xf]
  %v183 = vld [vmem:[%s3 + $0xd4] sm:$0xf]
  %v184 = vld [vmem:[%s3 + $0xd8] sm:$0xf]
  %v185 = vld [vmem:[%s3 + $0xdc] sm:$0xf]
  %v186 = vld [vmem:[%s3 + $0xe0] sm:$0xf]
  %v187 = vld [vmem:[%s3 + $0xe4] sm:$0xf]
  %v188 = vld [vmem:[%s3 + $0xe8] sm:$0xf]
  %v189 = vld [vmem:[%s3 + $0xec] sm:$0xf]
  %v190 = vld [vmem:[%s3 + $0xf0] sm:$0xf]
  %v191 = vld [vmem:[%s3 + $0xf4] sm:$0xf]
  %v192 = vld [vmem:[%s3 + $0xf8] sm:$0xf]
  %v193 = vld [vmem:[%s3 + $0xfc] sm:$0xf]
  %v194 = vld [vmem:[%s4] sm:$0x1]
  %v196 = vlaneseq
  %v197 = vshrl.u32 %v196, 7
  %v198 = vsub.s32 0, %v197
  %v199 = vrot.slane %v194, %v198
  %v202 = vcombine.high %v129, %v129
  %v204 = vunpack.c.l.s4 1983009808
  %v205 = vunpack.c.0.s8 %v204
  %v206 = vlaneseq
  %v207 = vshrl.u32 %v206, 7
  %v208 = vsub.s32 %v205, %v207
  %v209 = vrot.slane %v129, %v208
  %v211 = vunpack.c.l.s4 1983009808
  %v212 = vunpack.c.0.s8 %v211
  %v213 = vlaneseq
  %v214 = vshrl.u32 %v213, 7
  %v215 = vsub.s32 %v212, %v214
  %v216 = vrot.slane %v202, %v215
  %v217 = vcombine.high %v209, %v209
  %v218 = vcombine.high %v216, %v216
  %v287 = vunpack.c.l.b16 %v130
  %v288 = vunpack.c.l.b16 %v131
  %v289 = vunpack.c.l.b16 %v132
  %v290 = vunpack.c.l.b16 %v133
  %v291 = vunpack.c.l.b16 %v134
  %v292 = vunpack.c.l.b16 %v135
  %v293 = vunpack.c.l.b16 %v136
  %v294 = vunpack.c.l.b16 %v137
  %v295 = vunpack.c.l.b16 %v138
  %v296 = vunpack.c.l.b16 %v139
  %v297 = vunpack.c.l.b16 %v140
  %v298 = vunpack.c.l.b16 %v141
  %v299 = vunpack.c.l.b16 %v142
  %v300 = vunpack.c.l.b16 %v143
  %v301 = vunpack.c.l.b16 %v144
  %v302 = vunpack.c.l.b16 %v145
  %v303 = vunpack.c.l.b16 %v146
  %v304 = vunpack.c.l.b16 %v147
  %v305 = vunpack.c.l.b16 %v148
  %v306 = vunpack.c.l.b16 %v149
  %v307 = vunpack.c.l.b16 %v150
  %v308 = vunpack.c.l.b16 %v151
  %v309 = vunpack.c.l.b16 %v152
  %v310 = vunpack.c.l.b16 %v153
  %v311 = vunpack.c.l.b16 %v154
  %v312 = vunpack.c.l.b16 %v155
  %v313 = vunpack.c.l.b16 %v156
  %v314 = vunpack.c.l.b16 %v157
  %v315 = vunpack.c.l.b16 %v158
  %v316 = vunpack.c.l.b16 %v159
  %v317 = vunpack.c.l.b16 %v160
  %v318 = vunpack.c.l.b16 %v161
  %v319 = vunpack.c.l.b16 %v162
  %v320 = vunpack.c.l.b16 %v163
  %v321 = vunpack.c.l.b16 %v164
  %v322 = vunpack.c.l.b16 %v165
  %v323 = vunpack.c.l.b16 %v166
  %v324 = vunpack.c.l.b16 %v167
  %v325 = vunpack.c.l.b16 %v168
  %v326 = vunpack.c.l.b16 %v169
  %v327 = vunpack.c.l.b16 %v170
  %v328 = vunpack.c.l.b16 %v171
  %v329 = vunpack.c.l.b16 %v172
  %v330 = vunpack.c.l.b16 %v173
  %v331 = vunpack.c.l.b16 %v174
  %v332 = vunpack.c.l.b16 %v175
  %v333 = vunpack.c.l.b16 %v176
  %v334 = vunpack.c.l.b16 %v177
  %v335 = vunpack.c.l.b16 %v178
  %v336 = vunpack.c.l.b16 %v179
  %v337 = vunpack.c.l.b16 %v180
  %v338 = vunpack.c.l.b16 %v181
  %v339 = vunpack.c.l.b16 %v182
  %v340 = vunpack.c.l.b16 %v183
  %v341 = vunpack.c.l.b16 %v184
  %v342 = vunpack.c.l.b16 %v185
  %v343 = vunpack.c.l.b16 %v186
  %v344 = vunpack.c.l.b16 %v187
  %v345 = vunpack.c.l.b16 %v188
  %v346 = vunpack.c.l.b16 %v189
  %v347 = vunpack.c.l.b16 %v190
  %v348 = vunpack.c.l.b16 %v191
  %v349 = vunpack.c.l.b16 %v192
  %v350 = vunpack.c.l.b16 %v193
  %v351 = vpack.c.b16 %v288, %v287
  %v352 = vpack.c.b16 %v290, %v289
  %v353 = vpack.c.b16 %v292, %v291
  %v354 = vpack.c.b16 %v294, %v293
  %v355 = vpack.c.b16 %v296, %v295
  %v356 = vpack.c.b16 %v298, %v297
  %v357 = vpack.c.b16 %v300, %v299
  %v358 = vpack.c.b16 %v302, %v301
  %v359 = vpack.c.b16 %v304, %v303
  %v360 = vpack.c.b16 %v306, %v305
  %v361 = vpack.c.b16 %v308, %v307
  %v362 = vpack.c.b16 %v310, %v309
  %v363 = vpack.c.b16 %v312, %v311
  %v364 = vpack.c.b16 %v314, %v313
  %v365 = vpack.c.b16 %v316, %v315
  %v366 = vpack.c.b16 %v318, %v317
  %v367 = vpack.c.b16 %v320, %v319
  %v368 = vpack.c.b16 %v322, %v321
  %v369 = vpack.c.b16 %v324, %v323
  %v370 = vpack.c.b16 %v326, %v325
  %v371 = vpack.c.b16 %v328, %v327
  %v372 = vpack.c.b16 %v330, %v329
  %v373 = vpack.c.b16 %v332, %v331
  %v374 = vpack.c.b16 %v334, %v333
  %v375 = vpack.c.b16 %v336, %v335
  %v376 = vpack.c.b16 %v338, %v337
  %v377 = vpack.c.b16 %v340, %v339
  %v378 = vpack.c.b16 %v342, %v341
  %v379 = vpack.c.b16 %v344, %v343
  %v380 = vpack.c.b16 %v346, %v345
  %v381 = vpack.c.b16 %v348, %v347
  %v382 = vpack.c.b16 %v350, %v349
  %415 = vmatprep.subr.bf16.mxu0 0
  %416 = vmatpush1.bf16.msra.mxu0 %v351
  %417 = vmatprep.subr.bf16.mxu0 0
  %418 = vmatpush1.bf16.msra.mxu0 %v352
  %419 = vmatprep.subr.bf16.mxu0 0
  %420 = vmatpush1.bf16.msra.mxu0 %v353
  %421 = vmatprep.subr.bf16.mxu0 0
  %422 = vmatpush1.bf16.msra.mxu0 %v354
  %423 = vmatprep.subr.bf16.mxu0 0
  %424 = vmatpush1.bf16.msra.mxu0 %v355
  %425 = vmatprep.subr.bf16.mxu0 0
  %426 = vmatpush1.bf16.msra.mxu0 %v356
  %427 = vmatprep.subr.bf16.mxu0 0
  %428 = vmatpush1.bf16.msra.mxu0 %v357
  %429 = vmatprep.subr.bf16.mxu0 0
  %430 = vmatpush1.bf16.msra.mxu0 %v358
  %431 = vmatprep.subr.bf16.mxu0 0
  %432 = vmatpush1.bf16.msra.mxu0 %v359
  %433 = vmatprep.subr.bf16.mxu0 0
  %434 = vmatpush1.bf16.msra.mxu0 %v360
  %435 = vmatprep.subr.bf16.mxu0 0
  %436 = vmatpush1.bf16.msra.mxu0 %v361
  %437 = vmatprep.subr.bf16.mxu0 0
  %438 = vmatpush1.bf16.msra.mxu0 %v362
  %439 = vmatprep.subr.bf16.mxu0 0
  %440 = vmatpush1.bf16.msra.mxu0 %v363
  %441 = vmatprep.subr.bf16.mxu0 0
  %442 = vmatpush1.bf16.msra.mxu0 %v364
  %443 = vmatprep.subr.bf16.mxu0 0
  %444 = vmatpush1.bf16.msra.mxu0 %v365
  %445 = vmatprep.subr.bf16.mxu0 0
  %446 = vmatpush1.bf16.msra.mxu0 %v366
  %447 = vmatprep.mubr.bf16.mxu0 %v217
  %448 = vmatmul.mubr.bf16.gmra.mrb[0].mxu0 %v209
  %v449 = vpop.f32.mrb[0].mxu0
  %v450 = vadd.f32 %v199, %v449
  %v451 = vpop.f32.mrb[0].mxu0
  %v452 = vpop.f32.mrb[0].mxu0
  %v453 = vpop.f32.mrb[0].mxu0
  %454 = vdwg.mxu0
  %455 = vmatprep.subr.bf16.mxu0 0
  %456 = vmatpush1.bf16.msra.mxu0 %v367
  %457 = vmatprep.subr.bf16.mxu0 0
  %458 = vmatpush1.bf16.msra.mxu0 %v368
  %459 = vmatprep.subr.bf16.mxu0 0
  %460 = vmatpush1.bf16.msra.mxu0 %v369
  %461 = vmatprep.subr.bf16.mxu0 0
  %462 = vmatpush1.bf16.msra.mxu0 %v370
  %463 = vmatprep.subr.bf16.mxu0 0
  %464 = vmatpush1.bf16.msra.mxu0 %v371
  %465 = vmatprep.subr.bf16.mxu0 0
  %466 = vmatpush1.bf16.msra.mxu0 %v372
  %467 = vmatprep.subr.bf16.mxu0 0
  %468 = vmatpush1.bf16.msra.mxu0 %v373
  %469 = vmatprep.subr.bf16.mxu0 0
  %470 = vmatpush1.bf16.msra.mxu0 %v374
  %471 = vmatprep.subr.bf16.mxu0 0
  %472 = vmatpush1.bf16.msra.mxu0 %v375
  %473 = vmatprep.subr.bf16.mxu0 0
  %474 = vmatpush1.bf16.msra.mxu0 %v376
  %475 = vmatprep.subr.bf16.mxu0 0
  %476 = vmatpush1.bf16.msra.mxu0 %v377
  %477 = vmatprep.subr.bf16.mxu0 0
  %478 = vmatpush1.bf16.msra.mxu0 %v378
  %479 = vmatprep.subr.bf16.mxu0 0
  %480 = vmatpush1.bf16.msra.mxu0 %v379
  %481 = vmatprep.subr.bf16.mxu0 0
  %482 = vmatpush1.bf16.msra.mxu0 %v380
  %483 = vmatprep.subr.bf16.mxu0 0
  %484 = vmatpush1.bf16.msra.mxu0 %v381
  %485 = vmatprep.subr.bf16.mxu0 0
  %486 = vmatpush1.bf16.msra.mxu0 %v382
  %487 = vmatprep.mubr.bf16.mxu0 %v218
  %488 = vmatmul.mubr.bf16.gmra.mrb[0].mxu0 %v216
  %v489 = vpop.f32.mrb[0].mxu0
  %v490 = vadd.f32 %v450, %v489
  %v491 = vpop.f32.mrb[0].mxu0
  %v492 = vpop.f32.mrb[0].mxu0
  %v493 = vpop.f32.mrb[0].mxu0
  %494 = vdwg.mxu0
  %vm495 = vcmask 254976
  %496 = vst.msk [vmem:[%s5] sm:$0x3] %vm495, %v490
  %s497 = scalar_lea.vmem %s5, 2
  %vm498 = vcmask 257026
  %499 = vst.msk [vmem:[%s497 - $0x2] sm:$0xc] %vm498, %v490
  // Predicated region
  $region22: #{encoder_forward.5} parent=0 // pred_check
    _
  $region23: #{encoder_forward.5} parent=0 // pred_check_branch
    %501 = sbr.rel (0) target = $region25
  $region24: #{encoder_forward.5} parent=0 // pred_region
    _
  $region25: #{encoder_forward.5} parent=0 // pred_fallthru
    _
  // Predicated region
  $region26: #{encoder_forward.5} parent=0 // pred_check
    _
  $region27: #{encoder_forward.5} parent=0 // pred_check_branch
    %503 = sbr.rel (0) target = $region29
  $region28: #{encoder_forward.5} parent=0 // pred_region
    _
  $region29: #{encoder_forward.5} parent=0 // pred_fallthru
    _

</llo_original>
